<compile_context>
chip_gen: v5e
topology: v5e:2x2
jax: 0.10.0
libtpu: 0.0.40
codegen_flags: <defaults>
</compile_context>

<pallas_src>
import jax
import jax.numpy as jnp
from jax.experimental import pallas as pl
from jax.experimental.pallas import tpu as pltpu


def _encoder_kernel(x_ref, w1_ref, b1_ref, w2_ref, b2_ref, fcw_ref, fcb_ref,
                    out_ref, xm1_s, xp1_s, pool_s):
    """Fused conv1 -> relu -> conv2 -> relu -> maxpool(2,2) -> fc.

    x_ref  : (bb, 1, L)       f32 input block (PyTorch NCL layout)
    w1_ref : (3, c1, 1)       conv1 weight, one (c1, 1) column per tap
    b1_ref : (c1, 1)          conv1 bias
    w2_ref : (c2, 3*c1)       tap-concatenated conv2 weight (bf16)
    b2_ref : (c2, 1)          conv2 bias
    fcw_ref: (c2, L, latent)  zero-stuffed per-channel FC weight (bf16)
    fcb_ref: (1, latent)      FC bias
    out_ref: (bb, 1, latent)  output block
    xm1_s  : (bb, L)  f32 VMEM scratch -- hoisted left-shifted input
    xp1_s  : (bb, L)  f32 VMEM scratch -- hoisted right-shifted input
    pool_s : (bb, c2, L) f32 VMEM scratch -- pooled conv2 output per element
    """
    bb = x_ref.shape[0]
    L = x_ref.shape[2]
    latent = out_ref.shape[-1]
    c2 = w2_ref.shape[0]

    # Padding masks for Conv1d(padding=1): lane 0 has no left neighbour,
    # lane L-1 has no right neighbour.
    lane = jax.lax.broadcasted_iota(jnp.int32, (1, L), 1)
    first = lane == 0
    last = lane == L - 1

    # ---- hoisted: input shifts + padding masks on the whole (bb, L) slab ----
    x_all = x_ref[:, 0, :]                                           # (bb, L)
    xm1_s[...] = jnp.where(first, 0.0, pltpu.roll(x_all, 1, axis=1))      # x[l-1]
    xp1_s[...] = jnp.where(last, 0.0, pltpu.roll(x_all, L - 1, axis=1))   # x[l+1]

    # Small loop-invariant parameters (a handful of vregs held across the loop).
    w1_0 = w1_ref[0]        # (c1, 1) f32
    w1_1 = w1_ref[1]
    w1_2 = w1_ref[2]
    b1 = b1_ref[...]        # (c1, 1) f32
    w2 = w2_ref[...]        # (c2, 3*c1) bf16
    b2 = b2_ref[...]        # (c2, 1) f32

    def body(b, carry):
        xc = x_ref[b]                         # (1, L) f32
        xm1 = xm1_s[pl.ds(b, 1), :]           # (1, L)
        xp1 = xp1_s[pl.ds(b, 1), :]           # (1, L)

        # conv1 (Cin=1): three broadcast FMAs on the VPU, f32.
        h1 = w1_0 * xm1 + w1_1 * xc + w1_2 * xp1 + b1                # (c1, L)
        h1 = jnp.maximum(h1, 0.0)

        # conv2: one tap-fused MXU matmul (K = 3*c1), bf16 in / f32 acc.
        # Shifted copies stay f32 through roll/where (v5e-safe) and are cast
        # to bf16 just before the sublane concat (halves the live footprint).
        h1m = jnp.where(first, 0.0, pltpu.roll(h1, 1, axis=1))       # h1[:, l-1]
        h1p = jnp.where(last, 0.0, pltpu.roll(h1, L - 1, axis=1))    # h1[:, l+1]
        h1_cat = jnp.concatenate(
            [h1m.astype(jnp.bfloat16), h1.astype(jnp.bfloat16),
             h1p.astype(jnp.bfloat16)], axis=0)                      # (3*c1, L)
        h2 = jnp.dot(w2, h1_cat, preferred_element_type=jnp.float32)  # (c2, L)
        h2 = jnp.maximum(h2 + b2, 0.0)

        # MaxPool1d(2, 2): pairwise max with the next lane.  Odd lanes (and
        # the lane-(L-1) wraparound) are killed by the zero-stuffed FC weight.
        # Dense, 8-sublane-aligned (c2, L) store -- no register accumulation.
        pool_s[b] = jnp.maximum(h2, pltpu.roll(h2, L - 1, axis=1))
        return carry

    jax.lax.fori_loop(0, bb, body, 0)

    # ---- FC as c2 accumulated MXU matmuls (K = L each), bf16 in / f32 acc ----
    acc = jnp.zeros((bb, latent), jnp.float32)
    for o in range(c2):
        chunk = pool_s[:, o, :].astype(jnp.bfloat16)                 # (bb, L)
        acc = acc + jnp.dot(chunk, fcw_ref[o],
                            preferred_element_type=jnp.float32)      # (bb, latent)

    res = (acc + fcb_ref[...]).astype(out_ref.dtype)
    out_ref[...] = res[:, None, :]            # single bulk store


def _pick_block_b(batch):
    """Batch elements per grid step.  Large bb amortizes the ~0.35us/step
    overhead and raises FC MXU M-occupancy; keep >=2 grid steps so both v7x
    TensorCores get work; bb must divide the batch."""
    if batch <= 1:
        return 1
    target = min(64, max(1, batch // 2))
    for bb in range(target, 0, -1):
        if batch % bb == 0:
            return bb
    return 1


class ClassicalEncoderPallas:
    """Pallas port of ClassicalEncoder (deterministic synthetic parameters)."""

    def __init__(self, input_length=128, latent_dim=32, num_channels=8,
                 key=None):
        self.L = input_length * 5           # the module is built for length*5
        assert self.L % 2 == 0 and self.L % 128 == 0
        self.Lp = self.L // 2               # MaxPool1d(2, 2) output length
        self.latent_dim = latent_dim
        self.c1 = 32
        self.c2 = num_channels
        self.flattened_size = self.c2 * self.Lp

        if key is None:
            key = jax.random.PRNGKey(0)
        k1, k2, k3, k4, k5, k6 = jax.random.split(key, 6)
        # Parameters kept in native PyTorch layouts, init is synthetic.
        self.conv1_w = 0.10 * jax.random.normal(k1, (self.c1, 1, 3), jnp.float32)
        self.conv1_b = 0.10 * jax.random.normal(k2, (self.c1,), jnp.float32)
        self.conv2_w = 0.05 * jax.random.normal(k3, (self.c2, self.c1, 3), jnp.float32)
        self.conv2_b = 0.05 * jax.random.normal(k4, (self.c2,), jnp.float32)
        self.fc_w = 0.02 * jax.random.normal(k5, (latent_dim, self.flattened_size), jnp.float32)
        self.fc_b = 0.02 * jax.random.normal(k6, (latent_dim,), jnp.float32)

        # ---- kernel-side parameter layouts, packed ONCE here (not per call) ----
        c1, c2, L, Lp, latent = self.c1, self.c2, self.L, self.Lp, latent_dim
        # conv1: (3, c1, 1), one column per tap.
        self._w1 = jnp.transpose(self.conv1_w, (2, 0, 1))
        self._b1 = self.conv1_b.reshape(c1, 1)
        # conv2: tap-concatenated (c2, 3*c1) with [o, k*c1 + i] = w2[o, i, k].
        self._w2 = (jnp.transpose(self.conv2_w, (0, 2, 1))
                    .reshape(c2, 3 * c1).astype(jnp.bfloat16))
        self._b2 = self.conv2_b.reshape(c2, 1)
        # FC weight, per-channel zero-stuffed: fcw[o, 2p, j] = fc_w[j, o*Lp+p],
        # odd L-positions are zero so they absorb the maxpool's discarded
        # lanes (no strided gather in-kernel).  Shape (c2, L, latent) so the
        # kernel can do c2 accumulated (bb, L) @ (L, latent) MXU matmuls.
        fcw = self.fc_w.reshape(latent, c2, Lp)              # [j, o, p]
        fcw = jnp.transpose(fcw, (1, 2, 0))                  # (c2, Lp, latent)
        fcw = jnp.zeros((c2, Lp, 2, latent), jnp.float32).at[:, :, 0, :].set(fcw)
        self._fcw = fcw.reshape(c2, L, latent).astype(jnp.bfloat16)
        self._fcb = self.fc_b.reshape(1, latent)

    def __call__(self, x_ncl, block_b=None):
        B, cin, L = x_ncl.shape
        assert cin == 1 and L == self.L
        c1, c2, latent = self.c1, self.c2, self.latent_dim

        bb = block_b if block_b is not None else _pick_block_b(B)
        assert B % bb == 0
        grid = (B // bb,)

        out3 = pl.pallas_call(
            _encoder_kernel,
            out_shape=jax.ShapeDtypeStruct((B, 1, latent), jnp.float32),
            grid_spec=pltpu.PrefetchScalarGridSpec(
                num_scalar_prefetch=0,
                grid=grid,
                in_specs=[
                    pl.BlockSpec((bb, 1, L), lambda i: (i, 0, 0)),        # x
                    pl.BlockSpec((3, c1, 1), lambda i: (0, 0, 0)),        # w1
                    pl.BlockSpec((c1, 1), lambda i: (0, 0)),              # b1
                    pl.BlockSpec((c2, 3 * c1), lambda i: (0, 0)),         # w2 (bf16)
                    pl.BlockSpec((c2, 1), lambda i: (0, 0)),              # b2
                    pl.BlockSpec((c2, L, latent), lambda i: (0, 0, 0)),   # fc_w (bf16)
                    pl.BlockSpec((1, latent), lambda i: (0, 0)),          # fc_b
                ],
                out_specs=pl.BlockSpec((bb, 1, latent), lambda i: (i, 0, 0)),
                scratch_shapes=[
                    pltpu.VMEM((bb, L), jnp.float32),        # shifted x (l-1)
                    pltpu.VMEM((bb, L), jnp.float32),        # shifted x (l+1)
                    pltpu.VMEM((bb, c2, L), jnp.float32),    # pooled conv2 out
                ],
            ),
            compiler_params=pltpu.CompilerParams(
                dimension_semantics=("parallel",)),
        )(x_ncl.astype(jnp.float32), self._w1, self._b1, self._w2,
          self._b2, self._fcw, self._fcb)
        return out3.reshape(B, latent)


def reference_forward(enc, x_ncl):
    """Pure-JAX reference matching the PyTorch forward exactly (f32 weights)."""
    dn = ('NCH', 'OIH', 'NCH')
    h1 = jax.lax.conv_general_dilated(x_ncl, enc.conv1_w, (1,), [(1, 1)],
                                      dimension_numbers=dn)
    h1 = jnp.maximum(h1 + enc.conv1_b[None, :, None], 0.0)
    h2 = jax.lax.conv_general_dilated(h1, enc.conv2_w, (1,), [(1, 1)],
                                      dimension_numbers=dn)
    h2 = jnp.maximum(h2 + enc.conv2_b[None, :, None], 0.0)
    B, C, L = h2.shape
    pooled = h2.reshape(B, C, L // 2, 2).max(axis=-1)
    flat = pooled.reshape(B, -1)
    return flat @ enc.fc_w.T + enc.fc_b[None, :]


if __name__ == "__main__":
    root = jax.random.PRNGKey(0)
    pkey, xkey = jax.random.split(root)

    # Small shapes consistent with the module: input_length=128 -> L = 640.
    enc = ClassicalEncoderPallas(input_length=128, latent_dim=32,
                                 num_channels=8, key=pkey)
    B = 4                     # -> bb = 2, grid = (2,): exercises the batched
    x = jax.random.normal(xkey, (B, 1, enc.L), jnp.float32)   # loop + 2 steps

    out = jax.block_until_ready(enc(x))

    ref = reference_forward(enc, x)
    assert out.shape == (B, enc.latent_dim)
    err = float(jnp.max(jnp.abs(out - ref)))
    assert jnp.allclose(out, ref, rtol=2e-3, atol=2e-3), f"max abs err {err}"

    print("KERNEL_OK")
</pallas_src>

<mosaic_0001>
module attributes {stable_mosaic.version = 11 : i64} {
  func.func @_encoder_kernel(%arg0: i32, %arg1: memref<2x1x640xf32, #tpu.memory_space<vmem>>, %arg2: memref<3x32x1xf32, #tpu.memory_space<vmem>>, %arg3: memref<32x1xf32, #tpu.memory_space<vmem>>, %arg4: memref<8x96xbf16, #tpu.memory_space<vmem>>, %arg5: memref<8x1xf32, #tpu.memory_space<vmem>>, %arg6: memref<8x640x32xbf16, #tpu.memory_space<vmem>>, %arg7: memref<1x32xf32, #tpu.memory_space<vmem>>, %arg8: memref<2x1x32xf32, #tpu.memory_space<vmem>>, %arg9: memref<2x640xf32, #tpu.memory_space<vmem>>, %arg10: memref<2x640xf32, #tpu.memory_space<vmem>>, %arg11: memref<2x8x640xf32, #tpu.memory_space<vmem>>) attributes {dimension_semantics = [#tpu.dimension_semantics<parallel>], iteration_bounds = array<i64: 2>, scalar_prefetch = 0 : i64, scratch_operands = 3 : i64, tpu.core_type = #tpu.core_type<tc>, window_params = [{transform_indices = @transform_0, window_bounds = array<i64: 2, 1, 640>}, {pipeline_mode = #tpu.pipeline_mode<synchronous>, transform_indices = @transform_1, window_bounds = array<i64: 3, 32, 1>}, {pipeline_mode = #tpu.pipeline_mode<synchronous>, transform_indices = @transform_2, window_bounds = array<i64: 32, 1>}, {pipeline_mode = #tpu.pipeline_mode<synchronous>, transform_indices = @transform_3, window_bounds = array<i64: 8, 96>}, {pipeline_mode = #tpu.pipeline_mode<synchronous>, transform_indices = @transform_4, window_bounds = array<i64: 8, 1>}, {pipeline_mode = #tpu.pipeline_mode<synchronous>, transform_indices = @transform_5, window_bounds = array<i64: 8, 640, 32>}, {pipeline_mode = #tpu.pipeline_mode<synchronous>, transform_indices = @transform_6, window_bounds = array<i64: 1, 32>}, {transform_indices = @transform_7, window_bounds = array<i64: 2, 1, 32>}]} {
    %0 = tpu.iota {dimensions = array<i32: 1>} : vector<1x640xi32>
    %c0_i32 = arith.constant 0 : i32
    %1 = vector.broadcast %c0_i32 : i32 to vector<1x640xi32>
    %2 = arith.cmpi eq, %0, %1 : vector<1x640xi32>
    %c639_i32 = arith.constant 639 : i32
    %3 = vector.broadcast %c639_i32 : i32 to vector<1x640xi32>
    %4 = arith.cmpi eq, %0, %3 : vector<1x640xi32>
    %c0 = arith.constant 0 : index
    %c0_0 = arith.constant 0 : index
    %c0_1 = arith.constant 0 : index
    %5 = vector.load %arg1[%c0, %c0_0, %c0_1] : memref<2x1x640xf32, #tpu.memory_space<vmem>>, vector<2x1x640xf32>
    %6 = vector.shape_cast %5 : vector<2x1x640xf32> to vector<2x640xf32>
    %c1_i32 = arith.constant 1 : i32
    %7 = tpu.dynamic_rotate %6 by %c1_i32 dim 1 : vector<2x640xf32>, i32 -> vector<2x640xf32>
    %cst = arith.constant 0.000000e+00 : f32
    %8 = vector.shape_cast %2 : vector<1x640xi1> to vector<1x640xi1>
    %9 = vector.broadcast %8 : vector<1x640xi1> to vector<2x640xi1>
    %10 = vector.broadcast %cst : f32 to vector<2x640xf32>
    %11 = arith.select %9, %10, %7 : vector<2x640xi1>, vector<2x640xf32>
    %c0_2 = arith.constant 0 : index
    %c0_3 = arith.constant 0 : index
    %12 = vector.load %arg9[%c0_2, %c0_3] : memref<2x640xf32, #tpu.memory_space<vmem>>, vector<2x640xf32>
    tpu.vector_store %arg9[%c0_2, %c0_3], %11 {strides = array<i32>} : memref<2x640xf32, #tpu.memory_space<vmem>>, vector<2x640xf32>,
    %c639_i32_4 = arith.constant 639 : i32
    %13 = tpu.dynamic_rotate %6 by %c639_i32_4 dim 1 : vector<2x640xf32>, i32 -> vector<2x640xf32>
    %cst_5 = arith.constant 0.000000e+00 : f32
    %14 = vector.shape_cast %4 : vector<1x640xi1> to vector<1x640xi1>
    %15 = vector.broadcast %14 : vector<1x640xi1> to vector<2x640xi1>
    %16 = vector.broadcast %cst_5 : f32 to vector<2x640xf32>
    %17 = arith.select %15, %16, %13 : vector<2x640xi1>, vector<2x640xf32>
    %c0_6 = arith.constant 0 : index
    %c0_7 = arith.constant 0 : index
    %18 = vector.load %arg10[%c0_6, %c0_7] : memref<2x640xf32, #tpu.memory_space<vmem>>, vector<2x640xf32>
    tpu.vector_store %arg10[%c0_6, %c0_7], %17 {strides = array<i32>} : memref<2x640xf32, #tpu.memory_space<vmem>>, vector<2x640xf32>,
    %c0_8 = arith.constant 0 : index
    %c0_9 = arith.constant 0 : index
    %c0_10 = arith.constant 0 : index
    %19 = vector.load %arg2[%c0_8, %c0_9, %c0_10] : memref<3x32x1xf32, #tpu.memory_space<vmem>>, vector<1x32x1xf32>
    %20 = vector.shape_cast %19 : vector<1x32x1xf32> to vector<32x1xf32>
    %c1 = arith.constant 1 : index
    %c0_11 = arith.constant 0 : index
    %c0_12 = arith.constant 0 : index
    %21 = vector.load %arg2[%c1, %c0_11, %c0_12] : memref<3x32x1xf32, #tpu.memory_space<vmem>>, vector<1x32x1xf32>
    %22 = vector.shape_cast %21 : vector<1x32x1xf32> to vector<32x1xf32>
    %c2 = arith.constant 2 : index
    %c0_13 = arith.constant 0 : index
    %c0_14 = arith.constant 0 : index
    %23 = vector.load %arg2[%c2, %c0_13, %c0_14] : memref<3x32x1xf32, #tpu.memory_space<vmem>>, vector<1x32x1xf32>
    %24 = vector.shape_cast %23 : vector<1x32x1xf32> to vector<32x1xf32>
    %c0_15 = arith.constant 0 : index
    %c0_16 = arith.constant 0 : index
    %25 = vector.load %arg3[%c0_15, %c0_16] : memref<32x1xf32, #tpu.memory_space<vmem>>, vector<32x1xf32>
    %c0_17 = arith.constant 0 : index
    %c0_18 = arith.constant 0 : index
    %26 = vector.load %arg4[%c0_17, %c0_18] : memref<8x96xbf16, #tpu.memory_space<vmem>>, vector<8x96xbf16>
    %c0_19 = arith.constant 0 : index
    %c0_20 = arith.constant 0 : index
    %27 = vector.load %arg5[%c0_19, %c0_20] : memref<8x1xf32, #tpu.memory_space<vmem>>, vector<8x1xf32>
    %c0_i32_21 = arith.constant 0 : i32
    %c2_i32 = arith.constant 2 : i32
    %28 = arith.addi %c0_i32_21, %c2_i32 : i32
    %c1_i32_22 = arith.constant 1 : i32
    scf.for %arg12 = %c0_i32_21 to %28 step %c1_i32_22  : i32 {
      %91 = arith.index_cast %arg12 : i32 to index
      %c0_81 = arith.constant 0 : index
      %c0_82 = arith.constant 0 : index
      %92 = vector.load %arg1[%91, %c0_81, %c0_82] : memref<2x1x640xf32, #tpu.memory_space<vmem>>, vector<1x1x640xf32>
      %93 = vector.shape_cast %92 : vector<1x1x640xf32> to vector<1x640xf32>
      %94 = arith.index_cast %arg12 : i32 to index
      %c0_83 = arith.constant 0 : index
      %95 = vector.load %arg9[%94, %c0_83] : memref<2x640xf32, #tpu.memory_space<vmem>>, vector<1x640xf32>
      %96 = arith.index_cast %arg12 : i32 to index
      %c0_84 = arith.constant 0 : index
      %97 = vector.load %arg10[%96, %c0_84] : memref<2x640xf32, #tpu.memory_space<vmem>>, vector<1x640xf32>
      %98 = vector.broadcast %20 : vector<32x1xf32> to vector<32x640xf32>
      %99 = vector.broadcast %95 : vector<1x640xf32> to vector<32x640xf32>
      %100 = arith.mulf %98, %99 : vector<32x640xf32>
      %101 = vector.broadcast %22 : vector<32x1xf32> to vector<32x640xf32>
      %102 = vector.broadcast %93 : vector<1x640xf32> to vector<32x640xf32>
      %103 = arith.mulf %101, %102 : vector<32x640xf32>
      %104 = arith.addf %100, %103 : vector<32x640xf32>
      %105 = vector.broadcast %24 : vector<32x1xf32> to vector<32x640xf32>
      %106 = vector.broadcast %97 : vector<1x640xf32> to vector<32x640xf32>
      %107 = arith.mulf %105, %106 : vector<32x640xf32>
      %108 = arith.addf %104, %107 : vector<32x640xf32>
      %109 = vector.broadcast %25 : vector<32x1xf32> to vector<32x640xf32>
      %110 = arith.addf %108, %109 : vector<32x640xf32>
      %cst_85 = arith.constant 0.000000e+00 : f32
      %111 = vector.broadcast %cst_85 : f32 to vector<32x640xf32>
      %112 = arith.maximumf %110, %111 : vector<32x640xf32>
      %c1_i32_86 = arith.constant 1 : i32
      %113 = tpu.dynamic_rotate %112 by %c1_i32_86 dim 1 : vector<32x640xf32>, i32 -> vector<32x640xf32>
      %cst_87 = arith.constant 0.000000e+00 : f32
      %114 = vector.shape_cast %2 : vector<1x640xi1> to vector<1x640xi1>
      %115 = vector.broadcast %114 : vector<1x640xi1> to vector<32x640xi1>
      %116 = vector.broadcast %cst_87 : f32 to vector<32x640xf32>
      %117 = arith.select %115, %116, %113 : vector<32x640xi1>, vector<32x640xf32>
      %c639_i32_88 = arith.constant 639 : i32
      %118 = tpu.dynamic_rotate %112 by %c639_i32_88 dim 1 : vector<32x640xf32>, i32 -> vector<32x640xf32>
      %cst_89 = arith.constant 0.000000e+00 : f32
      %119 = vector.shape_cast %4 : vector<1x640xi1> to vector<1x640xi1>
      %120 = vector.broadcast %119 : vector<1x640xi1> to vector<32x640xi1>
      %121 = vector.broadcast %cst_89 : f32 to vector<32x640xf32>
      %122 = arith.select %120, %121, %118 : vector<32x640xi1>, vector<32x640xf32>
      %123 = arith.truncf %117 : vector<32x640xf32> to vector<32x640xbf16>
      %124 = arith.truncf %112 : vector<32x640xf32> to vector<32x640xbf16>
      %125 = arith.truncf %122 : vector<32x640xf32> to vector<32x640xbf16>
      %126 = tpu.concatenate %123, %124, %125 in 0 : vector<32x640xbf16>, vector<32x640xbf16>, vector<32x640xbf16> -> vector<96x640xbf16>
      %cst_90 = arith.constant dense<0.000000e+00> : vector<8x640xf32>
      %127 = tpu.matmul %26, %126, %cst_90 {dimension_numbers = #tpu.dot_dimension_numbers<[1], [0], [0], [1], [0, 0, 1, 1], [], []>} : vector<8x96xbf16>, vector<96x640xbf16>, vector<8x640xf32> -> vector<8x640xf32>
      %128 = vector.broadcast %27 : vector<8x1xf32> to vector<8x640xf32>
      %129 = arith.addf %127, %128 : vector<8x640xf32>
      %cst_91 = arith.constant 0.000000e+00 : f32
      %130 = vector.broadcast %cst_91 : f32 to vector<8x640xf32>
      %131 = arith.maximumf %129, %130 : vector<8x640xf32>
      %c639_i32_92 = arith.constant 639 : i32
      %132 = tpu.dynamic_rotate %131 by %c639_i32_92 dim 1 : vector<8x640xf32>, i32 -> vector<8x640xf32>
      %133 = arith.maximumf %131, %132 : vector<8x640xf32>
      %134 = arith.index_cast %arg12 : i32 to index
      %c0_93 = arith.constant 0 : index
      %c0_94 = arith.constant 0 : index
      %135 = vector.load %arg11[%134, %c0_93, %c0_94] : memref<2x8x640xf32, #tpu.memory_space<vmem>>, vector<1x8x640xf32>
      %136 = vector.shape_cast %135 : vector<1x8x640xf32> to vector<8x640xf32>
      %137 = vector.shape_cast %133 : vector<8x640xf32> to vector<1x8x640xf32>
      tpu.vector_store %arg11[%134, %c0_93, %c0_94], %137 {strides = array<i32>} : memref<2x8x640xf32, #tpu.memory_space<vmem>>, vector<1x8x640xf32>,
    }
    %c2_i32_23 = arith.constant 2 : i32
    %cst_24 = arith.constant 0.000000e+00 : f32
    %29 = vector.broadcast %cst_24 : f32 to vector<2x32xf32>
    %c0_25 = arith.constant 0 : index
    %c0_26 = arith.constant 0 : index
    %c0_27 = arith.constant 0 : index
    %30 = vector.load %arg11[%c0_25, %c0_26, %c0_27] : memref<2x8x640xf32, #tpu.memory_space<vmem>>, vector<2x1x640xf32>
    %31 = vector.shape_cast %30 : vector<2x1x640xf32> to vector<2x640xf32>
    %32 = arith.truncf %31 : vector<2x640xf32> to vector<2x640xbf16>
    %c0_28 = arith.constant 0 : index
    %c0_29 = arith.constant 0 : index
    %c0_30 = arith.constant 0 : index
    %33 = vector.load %arg6[%c0_28, %c0_29, %c0_30] : memref<8x640x32xbf16, #tpu.memory_space<vmem>>, vector<1x640x32xbf16>
    %34 = vector.shape_cast %33 : vector<1x640x32xbf16> to vector<640x32xbf16>
    %cst_31 = arith.constant dense<0.000000e+00> : vector<2x32xf32>
    %35 = tpu.matmul %32, %34, %cst_31 {dimension_numbers = #tpu.dot_dimension_numbers<[1], [0], [0], [1], [0, 0, 1, 1], [], []>} : vector<2x640xbf16>, vector<640x32xbf16>, vector<2x32xf32> -> vector<2x32xf32>
    %36 = arith.addf %29, %35 : vector<2x32xf32>
    %c0_32 = arith.constant 0 : index
    %c1_33 = arith.constant 1 : index
    %c0_34 = arith.constant 0 : index
    %37 = vector.load %arg11[%c0_32, %c1_33, %c0_34] : memref<2x8x640xf32, #tpu.memory_space<vmem>>, vector<2x1x640xf32>
    %38 = vector.shape_cast %37 : vector<2x1x640xf32> to vector<2x640xf32>
    %39 = arith.truncf %38 : vector<2x640xf32> to vector<2x640xbf16>
    %c1_35 = arith.constant 1 : index
    %c0_36 = arith.constant 0 : index
    %c0_37 = arith.constant 0 : index
    %40 = vector.load %arg6[%c1_35, %c0_36, %c0_37] : memref<8x640x32xbf16, #tpu.memory_space<vmem>>, vector<1x640x32xbf16>
    %41 = vector.shape_cast %40 : vector<1x640x32xbf16> to vector<640x32xbf16>
    %cst_38 = arith.constant dense<0.000000e+00> : vector<2x32xf32>
    %42 = tpu.matmul %39, %41, %cst_38 {dimension_numbers = #tpu.dot_dimension_numbers<[1], [0], [0], [1], [0, 0, 1, 1], [], []>} : vector<2x640xbf16>, vector<640x32xbf16>, vector<2x32xf32> -> vector<2x32xf32>
    %43 = arith.addf %36, %42 : vector<2x32xf32>
    %c0_39 = arith.constant 0 : index
    %c2_40 = arith.constant 2 : index
    %c0_41 = arith.constant 0 : index
    %44 = vector.load %arg11[%c0_39, %c2_40, %c0_41] : memref<2x8x640xf32, #tpu.memory_space<vmem>>, vector<2x1x640xf32>
    %45 = vector.shape_cast %44 : vector<2x1x640xf32> to vector<2x640xf32>
    %46 = arith.truncf %45 : vector<2x640xf32> to vector<2x640xbf16>
    %c2_42 = arith.constant 2 : index
    %c0_43 = arith.constant 0 : index
    %c0_44 = arith.constant 0 : index
    %47 = vector.load %arg6[%c2_42, %c0_43, %c0_44] : memref<8x640x32xbf16, #tpu.memory_space<vmem>>, vector<1x640x32xbf16>
    %48 = vector.shape_cast %47 : vector<1x640x32xbf16> to vector<640x32xbf16>
    %cst_45 = arith.constant dense<0.000000e+00> : vector<2x32xf32>
    %49 = tpu.matmul %46, %48, %cst_45 {dimension_numbers = #tpu.dot_dimension_numbers<[1], [0], [0], [1], [0, 0, 1, 1], [], []>} : vector<2x640xbf16>, vector<640x32xbf16>, vector<2x32xf32> -> vector<2x32xf32>
    %50 = arith.addf %43, %49 : vector<2x32xf32>
    %c0_46 = arith.constant 0 : index
    %c3 = arith.constant 3 : index
    %c0_47 = arith.constant 0 : index
    %51 = vector.load %arg11[%c0_46, %c3, %c0_47] : memref<2x8x640xf32, #tpu.memory_space<vmem>>, vector<2x1x640xf32>
    %52 = vector.shape_cast %51 : vector<2x1x640xf32> to vector<2x640xf32>
    %53 = arith.truncf %52 : vector<2x640xf32> to vector<2x640xbf16>
    %c3_48 = arith.constant 3 : index
    %c0_49 = arith.constant 0 : index
    %c0_50 = arith.constant 0 : index
    %54 = vector.load %arg6[%c3_48, %c0_49, %c0_50] : memref<8x640x32xbf16, #tpu.memory_space<vmem>>, vector<1x640x32xbf16>
    %55 = vector.shape_cast %54 : vector<1x640x32xbf16> to vector<640x32xbf16>
    %cst_51 = arith.constant dense<0.000000e+00> : vector<2x32xf32>
    %56 = tpu.matmul %53, %55, %cst_51 {dimension_numbers = #tpu.dot_dimension_numbers<[1], [0], [0], [1], [0, 0, 1, 1], [], []>} : vector<2x640xbf16>, vector<640x32xbf16>, vector<2x32xf32> -> vector<2x32xf32>
    %57 = arith.addf %50, %56 : vector<2x32xf32>
    %c0_52 = arith.constant 0 : index
    %c4 = arith.constant 4 : index
    %c0_53 = arith.constant 0 : index
    %58 = vector.load %arg11[%c0_52, %c4, %c0_53] : memref<2x8x640xf32, #tpu.memory_space<vmem>>, vector<2x1x640xf32>
    %59 = vector.shape_cast %58 : vector<2x1x640xf32> to vector<2x640xf32>
    %60 = arith.truncf %59 : vector<2x640xf32> to vector<2x640xbf16>
    %c4_54 = arith.constant 4 : index
    %c0_55 = arith.constant 0 : index
    %c0_56 = arith.constant 0 : index
    %61 = vector.load %arg6[%c4_54, %c0_55, %c0_56] : memref<8x640x32xbf16, #tpu.memory_space<vmem>>, vector<1x640x32xbf16>
    %62 = vector.shape_cast %61 : vector<1x640x32xbf16> to vector<640x32xbf16>
    %cst_57 = arith.constant dense<0.000000e+00> : vector<2x32xf32>
    %63 = tpu.matmul %60, %62, %cst_57 {dimension_numbers = #tpu.dot_dimension_numbers<[1], [0], [0], [1], [0, 0, 1, 1], [], []>} : vector<2x640xbf16>, vector<640x32xbf16>, vector<2x32xf32> -> vector<2x32xf32>
    %64 = arith.addf %57, %63 : vector<2x32xf32>
    %c0_58 = arith.constant 0 : index
    %c5 = arith.constant 5 : index
    %c0_59 = arith.constant 0 : index
    %65 = vector.load %arg11[%c0_58, %c5, %c0_59] : memref<2x8x640xf32, #tpu.memory_space<vmem>>, vector<2x1x640xf32>
    %66 = vector.shape_cast %65 : vector<2x1x640xf32> to vector<2x640xf32>
    %67 = arith.truncf %66 : vector<2x640xf32> to vector<2x640xbf16>
    %c5_60 = arith.constant 5 : index
    %c0_61 = arith.constant 0 : index
    %c0_62 = arith.constant 0 : index
    %68 = vector.load %arg6[%c5_60, %c0_61, %c0_62] : memref<8x640x32xbf16, #tpu.memory_space<vmem>>, vector<1x640x32xbf16>
    %69 = vector.shape_cast %68 : vector<1x640x32xbf16> to vector<640x32xbf16>
    %cst_63 = arith.constant dense<0.000000e+00> : vector<2x32xf32>
    %70 = tpu.matmul %67, %69, %cst_63 {dimension_numbers = #tpu.dot_dimension_numbers<[1], [0], [0], [1], [0, 0, 1, 1], [], []>} : vector<2x640xbf16>, vector<640x32xbf16>, vector<2x32xf32> -> vector<2x32xf32>
    %71 = arith.addf %64, %70 : vector<2x32xf32>
    %c0_64 = arith.constant 0 : index
    %c6 = arith.constant 6 : index
    %c0_65 = arith.constant 0 : index
    %72 = vector.load %arg11[%c0_64, %c6, %c0_65] : memref<2x8x640xf32, #tpu.memory_space<vmem>>, vector<2x1x640xf32>
    %73 = vector.shape_cast %72 : vector<2x1x640xf32> to vector<2x640xf32>
    %74 = arith.truncf %73 : vector<2x640xf32> to vector<2x640xbf16>
    %c6_66 = arith.constant 6 : index
    %c0_67 = arith.constant 0 : index
    %c0_68 = arith.constant 0 : index
    %75 = vector.load %arg6[%c6_66, %c0_67, %c0_68] : memref<8x640x32xbf16, #tpu.memory_space<vmem>>, vector<1x640x32xbf16>
    %76 = vector.shape_cast %75 : vector<1x640x32xbf16> to vector<640x32xbf16>
    %cst_69 = arith.constant dense<0.000000e+00> : vector<2x32xf32>
    %77 = tpu.matmul %74, %76, %cst_69 {dimension_numbers = #tpu.dot_dimension_numbers<[1], [0], [0], [1], [0, 0, 1, 1], [], []>} : vector<2x640xbf16>, vector<640x32xbf16>, vector<2x32xf32> -> vector<2x32xf32>
    %78 = arith.addf %71, %77 : vector<2x32xf32>
    %c0_70 = arith.constant 0 : index
    %c7 = arith.constant 7 : index
    %c0_71 = arith.constant 0 : index
    %79 = vector.load %arg11[%c0_70, %c7, %c0_71] : memref<2x8x640xf32, #tpu.memory_space<vmem>>, vector<2x1x640xf32>
    %80 = vector.shape_cast %79 : vector<2x1x640xf32> to vector<2x640xf32>
    %81 = arith.truncf %80 : vector<2x640xf32> to vector<2x640xbf16>
    %c7_72 = arith.constant 7 : index
    %c0_73 = arith.constant 0 : index
    %c0_74 = arith.constant 0 : index
    %82 = vector.load %arg6[%c7_72, %c0_73, %c0_74] : memref<8x640x32xbf16, #tpu.memory_space<vmem>>, vector<1x640x32xbf16>
    %83 = vector.shape_cast %82 : vector<1x640x32xbf16> to vector<640x32xbf16>
    %cst_75 = arith.constant dense<0.000000e+00> : vector<2x32xf32>
    %84 = tpu.matmul %81, %83, %cst_75 {dimension_numbers = #tpu.dot_dimension_numbers<[1], [0], [0], [1], [0, 0, 1, 1], [], []>} : vector<2x640xbf16>, vector<640x32xbf16>, vector<2x32xf32> -> vector<2x32xf32>
    %85 = arith.addf %78, %84 : vector<2x32xf32>
    %c0_76 = arith.constant 0 : index
    %c0_77 = arith.constant 0 : index
    %86 = vector.load %arg7[%c0_76, %c0_77] : memref<1x32xf32, #tpu.memory_space<vmem>>, vector<1x32xf32>
    %87 = vector.broadcast %86 : vector<1x32xf32> to vector<2x32xf32>
    %88 = arith.addf %85, %87 : vector<2x32xf32>
    %89 = vector.shape_cast %88 : vector<2x32xf32> to vector<2x1x32xf32>
    %c0_78 = arith.constant 0 : index
    %c0_79 = arith.constant 0 : index
    %c0_80 = arith.constant 0 : index
    %90 = vector.load %arg8[%c0_78, %c0_79, %c0_80] : memref<2x1x32xf32, #tpu.memory_space<vmem>>, vector<2x1x32xf32>
    tpu.vector_store %arg8[%c0_78, %c0_79, %c0_80], %89 {strides = array<i32>} : memref<2x1x32xf32, #tpu.memory_space<vmem>>, vector<2x1x32xf32>,
    return
  }
  func.func @transform_0(%arg0: i32) -> (i32, i32, i32) {
    %c0_i32 = arith.constant 0 : i32
    %c0_i32_0 = arith.constant 0 : i32
    %c0_i32_1 = arith.constant 0 : i32
    return %arg0, %c0_i32, %c0_i32_0 : i32, i32, i32
  }
  func.func @transform_1(%arg0: i32) -> (i32, i32, i32) {
    %c0_i32 = arith.constant 0 : i32
    %c0_i32_0 = arith.constant 0 : i32
    %c0_i32_1 = arith.constant 0 : i32
    %c0_i32_2 = arith.constant 0 : i32
    return %c0_i32, %c0_i32_0, %c0_i32_1 : i32, i32, i32
  }
  func.func @transform_2(%arg0: i32) -> (i32, i32) {
    %c0_i32 = arith.constant 0 : i32
    %c0_i32_0 = arith.constant 0 : i32
    %c0_i32_1 = arith.constant 0 : i32
    return %c0_i32, %c0_i32_0 : i32, i32
  }
  func.func @transform_3(%arg0: i32) -> (i32, i32) {
    %c0_i32 = arith.constant 0 : i32
    %c0_i32_0 = arith.constant 0 : i32
    %c0_i32_1 = arith.constant 0 : i32
    return %c0_i32, %c0_i32_0 : i32, i32
  }
  func.func @transform_4(%arg0: i32) -> (i32, i32) {
    %c0_i32 = arith.constant 0 : i32
    %c0_i32_0 = arith.constant 0 : i32
    %c0_i32_1 = arith.constant 0 : i32
    return %c0_i32, %c0_i32_0 : i32, i32
  }
  func.func @transform_5(%arg0: i32) -> (i32, i32, i32) {
    %c0_i32 = arith.constant 0 : i32
    %c0_i32_0 = arith.constant 0 : i32
    %c0_i32_1 = arith.constant 0 : i32
    %c0_i32_2 = arith.constant 0 : i32
    return %c0_i32, %c0_i32_0, %c0_i32_1 : i32, i32, i32
  }
  func.func @transform_6(%arg0: i32) -> (i32, i32) {
    %c0_i32 = arith.constant 0 : i32
    %c0_i32_0 = arith.constant 0 : i32
    %c0_i32_1 = arith.constant 0 : i32
    return %c0_i32, %c0_i32_0 : i32, i32
  }
  func.func @transform_7(%arg0: i32) -> (i32, i32, i32) {
    %c0_i32 = arith.constant 0 : i32
    %c0_i32_0 = arith.constant 0 : i32
    %c0_i32_1 = arith.constant 0 : i32
    return %arg0, %c0_i32, %c0_i32_0 : i32, i32, i32
  }
}

</mosaic_0001>

<llo_original>
// kernel: tpu_custom_call.1
$region0: #{tpu_custom_call.1}
  #allocation0 [shape = 'u32[]', space=smem, size = 0x4, offset = 0x4, fixed_abs, tag = 'smem constant byte address 0x4 - core index']
  #allocation1 [shape = 'u32[72,128]{1,0:T(1,128)}', space=vmem, size = 0x9000, scoped, tag = 'internal scratch']
  #allocation2 [shape = 'f32[2,640]{1,0:T(2,128)}', space=vmem, size = 0x1400, scoped, tag = 'scratch operand']
  #allocation3 [shape = 'f32[2,640]{1,0:T(2,128)}', space=vmem, size = 0x1400, scoped, tag = 'scratch operand']
  #allocation4 [shape = 'f32[2,8,640]{2,1,0:T(8,128)}', space=vmem, size = 0xa000, scoped, tag = 'scratch operand']
  %s0 = inlined_call_operand.vmem [shape: f32[4,1,640], index: 0, kind: input, shape index: {}]
  %s1 = inlined_call_operand.vmem [shape: f32[3,32,1], index: 1, kind: input, shape index: {}]
  %s2 = inlined_call_operand.vmem [shape: f32[32,1], index: 2, kind: input, shape index: {}]
  %s3 = inlined_call_operand.vmem [shape: bf16[8,96], index: 3, kind: input, shape index: {}]
  %s4 = inlined_call_operand.vmem [shape: f32[8,1], index: 4, kind: input, shape index: {}]
  %s5 = inlined_call_operand.vmem [shape: bf16[8,640,32], index: 5, kind: input, shape index: {}]
  %s6 = inlined_call_operand.vmem [shape: f32[1,32], index: 6, kind: input, shape index: {}]
  %s7 = inlined_call_operand.hbm [shape: f32[4,1,32], index: 7, kind: output, shape index: {}]
  %s8 = sld [smem:[#allocation0]]
  $region68: #{tpu_custom_call.1} parent=0
    _
  %s10 = ssub.s32 1, %s8
  %s11 = scalar_select 0, %s10, %s8
  $region1: #{tpu_custom_call.1} parent=0
    #allocation5 [shape = 'u8[2048]{0}', space=vmem, size = 0x800, scoped, tag = 'output window, operand 0']
    #allocation6 [shape = 's32[2]{0}', space=sflag, size = 0x8, scoped, tag = 'scoped memory for tpu_custom_call.1']
    %12 = vsyncpa [#allocation6], 0
    %s13 = scalar_lea.sflag [#allocation6], 1
    %14 = vsyncpa %s13, 0
    loop: start=0, step=1, limit=4
    $region2: #{tpu_custom_call.1} parent=1 // loop_pre_header
      _
    $region3: #{tpu_custom_call.1} parent=1 // loop_header
      %s16 = sphi 0, %s20
      %p17 = scmp.ge.s32.totalorder %s16, 4
      %s26 = sphi 0, %s28
      %s29 = sphi 0, %s26
      %s30 = sphi 0, %s29
      %s46 = sphi 0, %s30
      %s50 = sphi 0, %s50
      %s52 = sphi 0, %s50
      %s53 = sphi 0, %s52
      %s67 = sphi 0, %s53
      %s71 = sphi 0, %s71
      %s73 = sphi 0, %s71
      %s74 = sphi 0, %s73
      %s88 = sphi 0, %s74
      %s92 = sphi 0, %s92
      %s94 = sphi 0, %s92
      %s95 = sphi 0, %s94
      %s109 = sphi 0, %s95
      %s113 = sphi 0, %s113
      %s115 = sphi 0, %s113
      %s116 = sphi 0, %s115
      %s130 = sphi 0, %s116
      %s134 = sphi 0, %s134
      %s136 = sphi 0, %s134
      %s137 = sphi 0, %s136
      %s151 = sphi 0, %s137
      %s155 = sphi 0, %s155
      %s157 = sphi 0, %s155
      %s158 = sphi 0, %s157
      %s172 = sphi 0, %s158
      %s178 = sphi 0, %s180
      %s181 = sphi 0, %s178
      %s182 = sphi 0, %s181
      %s198 = sphi 0, %s182
    $region4: #{tpu_custom_call.1} parent=1 // loop_header_branch
      %19 = sbr.rel (%p17) target = $region8
    $region5: #{tpu_custom_call.1} parent=1 // loop_body
      %s21 = ssub.s32 %s16, 1
      %s22 = ssub.s32 %s16, 2
      %s23 = sadd.s32 %s16, 1
      %s24 = ssub.s32 %s16, %s23
      %p25 = scmp.eq.s32.totalorder %s24, 0
      %s27 = sadd.s32 %s26, 1
      %s28 = scalar_select %p25, %s26, %s27
      %p31 = pneg %p25
      %p32 = scmp.eq.s32.totalorder %s16, 1
      %p33 = por %p31, %p32
      %p34 = scmp.ne.s32.totalorder %s26, %s29
      %p35 = scmp.eq.s32.totalorder %s16, 0
      %p36 = por %p34, %p35
      %p37 = scmp.ne.s32.totalorder %s26, %s29
      %p38 = scmp.eq.s32.totalorder %s21, 1
      %p39 = por %p37, %p38
      %p40 = scmp.ne.s32.totalorder %s29, %s30
      %p41 = scmp.eq.s32.totalorder %s21, 0
      %p42 = por %p40, %p41
      %p43 = scmp.ne.s32.totalorder %s29, %s30
      %p44 = scmp.eq.s32.totalorder %s22, 1
      %p45 = por %p43, %p44
      %p47 = scmp.ne.s32.totalorder %s30, %s46
      %p48 = scmp.eq.s32.totalorder %s22, 0
      %p49 = por %p47, %p48
      %s51 = sadd.s32 %s50, 1
      %p54 = scmp.eq.s32.totalorder %s16, 1
      %p55 = scmp.ne.s32.totalorder %s50, %s52
      %p56 = scmp.eq.s32.totalorder %s16, 0
      %p57 = por %p55, %p56
      %p58 = scmp.ne.s32.totalorder %s50, %s52
      %p59 = scmp.eq.s32.totalorder %s21, 1
      %p60 = por %p58, %p59
      %p61 = scmp.ne.s32.totalorder %s52, %s53
      %p62 = scmp.eq.s32.totalorder %s21, 0
      %p63 = por %p61, %p62
      %p64 = scmp.ne.s32.totalorder %s52, %s53
      %p65 = scmp.eq.s32.totalorder %s22, 1
      %p66 = por %p64, %p65
      %p68 = scmp.ne.s32.totalorder %s53, %s67
      %p69 = scmp.eq.s32.totalorder %s22, 0
      %p70 = por %p68, %p69
      %s72 = sadd.s32 %s71, 1
      %p75 = scmp.eq.s32.totalorder %s16, 1
      %p76 = scmp.ne.s32.totalorder %s71, %s73
      %p77 = scmp.eq.s32.totalorder %s16, 0
      %p78 = por %p76, %p77
      %p79 = scmp.ne.s32.totalorder %s71, %s73
      %p80 = scmp.eq.s32.totalorder %s21, 1
      %p81 = por %p79, %p80
      %p82 = scmp.ne.s32.totalorder %s73, %s74
      %p83 = scmp.eq.s32.totalorder %s21, 0
      %p84 = por %p82, %p83
      %p85 = scmp.ne.s32.totalorder %s73, %s74
      %p86 = scmp.eq.s32.totalorder %s22, 1
      %p87 = por %p85, %p86
      %p89 = scmp.ne.s32.totalorder %s74, %s88
      %p90 = scmp.eq.s32.totalorder %s22, 0
      %p91 = por %p89, %p90
      %s93 = sadd.s32 %s92, 1
      %p96 = scmp.eq.s32.totalorder %s16, 1
      %p97 = scmp.ne.s32.totalorder %s92, %s94
      %p98 = scmp.eq.s32.totalorder %s16, 0
      %p99 = por %p97, %p98
      %p100 = scmp.ne.s32.totalorder %s92, %s94
      %p101 = scmp.eq.s32.totalorder %s21, 1
      %p102 = por %p100, %p101
      %p103 = scmp.ne.s32.totalorder %s94, %s95
      %p104 = scmp.eq.s32.totalorder %s21, 0
      %p105 = por %p103, %p104
      %p106 = scmp.ne.s32.totalorder %s94, %s95
      %p107 = scmp.eq.s32.totalorder %s22, 1
      %p108 = por %p106, %p107
      %p110 = scmp.ne.s32.totalorder %s95, %s109
      %p111 = scmp.eq.s32.totalorder %s22, 0
      %p112 = por %p110, %p111
      %s114 = sadd.s32 %s113, 1
      %p117 = scmp.eq.s32.totalorder %s16, 1
      %p118 = scmp.ne.s32.totalorder %s113, %s115
      %p119 = scmp.eq.s32.totalorder %s16, 0
      %p120 = por %p118, %p119
      %p121 = scmp.ne.s32.totalorder %s113, %s115
      %p122 = scmp.eq.s32.totalorder %s21, 1
      %p123 = por %p121, %p122
      %p124 = scmp.ne.s32.totalorder %s115, %s116
      %p125 = scmp.eq.s32.totalorder %s21, 0
      %p126 = por %p124, %p125
      %p127 = scmp.ne.s32.totalorder %s115, %s116
      %p128 = scmp.eq.s32.totalorder %s22, 1
      %p129 = por %p127, %p128
      %p131 = scmp.ne.s32.totalorder %s116, %s130
      %p132 = scmp.eq.s32.totalorder %s22, 0
      %p133 = por %p131, %p132
      %s135 = sadd.s32 %s134, 1
      %p138 = scmp.eq.s32.totalorder %s16, 1
      %p139 = scmp.ne.s32.totalorder %s134, %s136
      %p140 = scmp.eq.s32.totalorder %s16, 0
      %p141 = por %p139, %p140
      %p142 = scmp.ne.s32.totalorder %s134, %s136
      %p143 = scmp.eq.s32.totalorder %s21, 1
      %p144 = por %p142, %p143
      %p145 = scmp.ne.s32.totalorder %s136, %s137
      %p146 = scmp.eq.s32.totalorder %s21, 0
      %p147 = por %p145, %p146
      %p148 = scmp.ne.s32.totalorder %s136, %s137
      %p149 = scmp.eq.s32.totalorder %s22, 1
      %p150 = por %p148, %p149
      %p152 = scmp.ne.s32.totalorder %s137, %s151
      %p153 = scmp.eq.s32.totalorder %s22, 0
      %p154 = por %p152, %p153
      %s156 = sadd.s32 %s155, 1
      %p159 = scmp.eq.s32.totalorder %s16, 1
      %p160 = scmp.ne.s32.totalorder %s155, %s157
      %p161 = scmp.eq.s32.totalorder %s16, 0
      %p162 = por %p160, %p161
      %p163 = scmp.ne.s32.totalorder %s155, %s157
      %p164 = scmp.eq.s32.totalorder %s21, 1
      %p165 = por %p163, %p164
      %p166 = scmp.ne.s32.totalorder %s157, %s158
      %p167 = scmp.eq.s32.totalorder %s21, 0
      %p168 = por %p166, %p167
      %p169 = scmp.ne.s32.totalorder %s157, %s158
      %p170 = scmp.eq.s32.totalorder %s22, 1
      %p171 = por %p169, %p170
      %p173 = scmp.ne.s32.totalorder %s158, %s172
      %p174 = scmp.eq.s32.totalorder %s22, 0
      %p175 = por %p173, %p174
      %s176 = ssub.s32 %s16, %s23
      %p177 = scmp.eq.s32.totalorder %s176, 0
      %s179 = sadd.s32 %s178, 1
      %s180 = scalar_select %p177, %s178, %s179
      %p183 = pneg %p177
      %p184 = scmp.eq.s32.totalorder %s16, 1
      %p185 = por %p183, %p184
      %p186 = scmp.ne.s32.totalorder %s178, %s181
      %p187 = scmp.eq.s32.totalorder %s16, 0
      %p188 = por %p186, %p187
      %p189 = scmp.ne.s32.totalorder %s178, %s181
      %p190 = scmp.eq.s32.totalorder %s21, 1
      %p191 = por %p189, %p190
      %p192 = scmp.ne.s32.totalorder %s181, %s182
      %p193 = scmp.eq.s32.totalorder %s21, 0
      %p194 = por %p192, %p193
      %p195 = scmp.ne.s32.totalorder %s181, %s182
      %p196 = scmp.eq.s32.totalorder %s22, 1
      %p197 = por %p195, %p196
      %p199 = scmp.ne.s32.totalorder %s182, %s198
      %p200 = scmp.eq.s32.totalorder %s22, 0
      %p201 = por %p199, %p200
      %p202 = scmp.le.s32.totalorder 1, %s16
      %p203 = scmp.lt.s32.totalorder %s16, 3
      %p204 = pnand %p202, %p203
      %p205 = pneg %p204
      // Predicated region
      $region9: #{tpu_custom_call.1} parent=5 // pred_check
        _
      $region10: #{tpu_custom_call.1} parent=5 // pred_check_branch
        %207 = sbr.rel (%p204) target = $region12
      $region11: #{tpu_custom_call.1} parent=5 // pred_region
        %s208 = ssub.s32 %s16, 1
        // Predicated region
        $region13: #{tpu_custom_call.1} parent=11 // pred_check
          %p209 = pneg %p63
        $region14: #{tpu_custom_call.1} parent=11 // pred_check_branch
          %211 = sbr.rel (%p209) target = $region16
        $region15: #{tpu_custom_call.1} parent=11 // pred_region
          _
        $region16: #{tpu_custom_call.1} parent=11 // pred_fallthru
          _
        // Predicated region
        $region17: #{tpu_custom_call.1} parent=11 // pred_check
          %p212 = pneg %p84
        $region18: #{tpu_custom_call.1} parent=11 // pred_check_branch
          %214 = sbr.rel (%p212) target = $region20
        $region19: #{tpu_custom_call.1} parent=11 // pred_region
          _
        $region20: #{tpu_custom_call.1} parent=11 // pred_fallthru
          _
        // Predicated region
        $region21: #{tpu_custom_call.1} parent=11 // pred_check
          %p215 = pneg %p105
        $region22: #{tpu_custom_call.1} parent=11 // pred_check_branch
          %217 = sbr.rel (%p215) target = $region24
        $region23: #{tpu_custom_call.1} parent=11 // pred_region
          _
        $region24: #{tpu_custom_call.1} parent=11 // pred_fallthru
          _
        // Predicated region
        $region25: #{tpu_custom_call.1} parent=11 // pred_check
          %p218 = pneg %p126
        $region26: #{tpu_custom_call.1} parent=11 // pred_check_branch
          %220 = sbr.rel (%p218) target = $region28
        $region27: #{tpu_custom_call.1} parent=11 // pred_region
          _
        $region28: #{tpu_custom_call.1} parent=11 // pred_fallthru
          _
        // Predicated region
        $region29: #{tpu_custom_call.1} parent=11 // pred_check
          %p221 = pneg %p147
        $region30: #{tpu_custom_call.1} parent=11 // pred_check_branch
          %223 = sbr.rel (%p221) target = $region32
        $region31: #{tpu_custom_call.1} parent=11 // pred_region
          _
        $region32: #{tpu_custom_call.1} parent=11 // pred_fallthru
          _
        // Predicated region
        $region33: #{tpu_custom_call.1} parent=11 // pred_check
          %p224 = pneg %p168
        $region34: #{tpu_custom_call.1} parent=11 // pred_check_branch
          %226 = sbr.rel (%p224) target = $region36
        $region35: #{tpu_custom_call.1} parent=11 // pred_region
          _
        $region36: #{tpu_custom_call.1} parent=11 // pred_fallthru
          _
      $region12: #{tpu_custom_call.1} parent=5 // pred_fallthru
        _
      %p227 = scmp.lt.s32.totalorder %s16, 2
      // Predicated region
      $region37: #{tpu_custom_call.1} parent=5 // pred_check
        %p228 = pneg %p227
      $region38: #{tpu_custom_call.1} parent=5 // pred_check_branch
        %230 = sbr.rel (%p228) target = $region40
      $region39: #{tpu_custom_call.1} parent=5 // pred_region
        // Predicated region
        $region41: #{tpu_custom_call.1} parent=39 // pred_check
          %p231 = pneg %p36
        $region42: #{tpu_custom_call.1} parent=39 // pred_check_branch
          %233 = sbr.rel (%p231) target = $region44
        $region43: #{tpu_custom_call.1} parent=39 // pred_region
          %s234 = smul.u32 2, %s16
          %p235 = scmp.lt.s32.totalorder %s234, 3
          %s236 = scalar_select %p235, %s234, 3
          %s237 = smul.addr %s236, 5
          %s238 = scalar_lea.vmem %s0, %s237
          %s239 = smul.u32 2, %s16
        $region44: #{tpu_custom_call.1} parent=39 // pred_fallthru
          _
      $region40: #{tpu_custom_call.1} parent=5 // pred_fallthru
        _
      %p240 = scmp.le.s32.totalorder 1, %s16
      %p241 = scmp.lt.s32.totalorder %s16, 3
      %p242 = pnand %p240, %p241
      %p243 = pneg %p242
      // Predicated region
      $region45: #{tpu_custom_call.1} parent=5 // pred_check
        _
      $region46: #{tpu_custom_call.1} parent=5 // pred_check_branch
        %245 = sbr.rel (%p242) target = $region48
      $region47: #{tpu_custom_call.1} parent=5 // pred_region
        %s246 = ssub.s32 %s16, 1
        %s247 = smul.u32 2, %s21
        %p248 = scmp.lt.s32.totalorder %s247, 3
        %s249 = scalar_select %p248, %s247, 3
        %s250 = smul.addr %s249, 5
        %s251 = scalar_lea.vmem %s0, %s250
        %p252 = pneg %p42
        %p253 = pneg %p39
        %p254 = pneg %p63
        %p255 = pneg %p60
        %p256 = pneg %p84
        %p257 = pneg %p81
        %p258 = pneg %p105
        %p259 = pneg %p102
        %p260 = pneg %p126
        %p261 = pneg %p123
        %p262 = pneg %p147
        %p263 = pneg %p144
        %p264 = pneg %p168
        %p265 = pneg %p165
        %p266 = pneg %p194
        %p267 = pneg %p191
        %s268 = sand.u32 %s181, 1
        %s269 = scalar_lea.sflag [#allocation6], %s268
        %s270 = sand.u32 %s181, 1
        %s271 = smul.addr %s270, 2
        %s272 = scalar_lea.vmem [#allocation5], %s271
        %s273 = smul.u32 2, %s21
        %p274 = scmp.lt.s32.totalorder %s273, 3
        %s275 = scalar_select %p274, %s273, 3
        %s276 = smul.addr %s275, 5
        %s277 = scalar_lea.vmem %s0, %s276
        %s278 = smul.u32 2, %s21
        %s279 = smul.u32 2, %s21
        %v281 = vlaneseq
        %v282 = vand.u32 %v281, 127
        %v283 = vadd.s32 %v282, 128
        %v284 = vadd.s32 %v282, 256
        %v285 = vadd.s32 %v282, 384
        %v286 = vadd.s32 %v282, 512
        %vm287 = vcmp.eq.s32.totalorder %v282, 0
        %vm288 = vcmp.eq.s32.totalorder %v283, 0
        %vm289 = vcmp.eq.s32.totalorder %v284, 0
        %vm290 = vcmp.eq.s32.totalorder %v285, 0
        %vm291 = vcmp.eq.s32.totalorder %v286, 0
        %vm292 = vcmp.eq.s32.totalorder %v282, 639
        %vm293 = vcmp.eq.s32.totalorder %v283, 639
        %vm294 = vcmp.eq.s32.totalorder %v284, 639
        %vm295 = vcmp.eq.s32.totalorder %v285, 639
        %vm296 = vcmp.eq.s32.totalorder %v286, 639
        %v297 = vld [vmem:[%s277] sm:$0x1f]
        %v298 = vld [vmem:[%s277 + $0x5] sm:$0x1f]
        %301 = vst [vmem:[#allocation1] ss:$9 sm:$0xff] %v297
        %s302 = scalar_lea.vmem [#allocation1], 1
        %303 = vst [vmem:[%s302] ss:$9 sm:$0xff] %v298
        %v304 = vld [vmem:[#allocation1] sm:$0xff]
        %v305 = vld [vmem:[#allocation1 + $0x9] sm:$0xff]
        %v306 = vld [vmem:[#allocation1 + $0x12] sm:$0xff]
        %v307 = vld [vmem:[#allocation1 + $0x1b] sm:$0xff]
        %v308 = vld [vmem:[#allocation1 + $0x24] sm:$0xff]
        %314 = vrot.lane.b32.xlu0 %v304, 1
        %v315 = vpop.permute.xlu0 %314
        %316 = vrot.lane.b32.xlu0 %v305, 1
        %v317 = vpop.permute.xlu0 %316
        %318 = vrot.lane.b32.xlu0 %v306, 1
        %v319 = vpop.permute.xlu0 %318
        %320 = vrot.lane.b32.xlu0 %v307, 1
        %v321 = vpop.permute.xlu0 %320
        %322 = vrot.lane.b32.xlu0 %v308, 1
        %v323 = vpop.permute.xlu0 %322
        %vm324 = vcmp.lt.s32.totalorder %v282, 1
        %v325 = vsel %vm324, %v321, %v323
        %v326 = vsel %vm324, %v319, %v321
        %v327 = vsel %vm324, %v317, %v319
        %v328 = vsel %vm324, %v315, %v317
        %v329 = vsel %vm324, %v323, %v315
        %v330 = vsel %vm287, 1, 0
        %v331 = vsel %vm288, 1, 0
        %v332 = vsel %vm289, 1, 0
        %v333 = vsel %vm290, 1, 0
        %v334 = vsel %vm291, 1, 0
        %vm335 = vcmp.eq.s32.totalorder %v330, 1
        %vm336 = vcmp.eq.s32.totalorder %v331, 1
        %vm337 = vcmp.eq.s32.totalorder %v332, 1
        %vm338 = vcmp.eq.s32.totalorder %v333, 1
        %vm339 = vcmp.eq.s32.totalorder %v334, 1
        %v340 = vsel %vm335, 0.0, %v329
        %v341 = vsel %vm336, 0.0, %v328
        %v342 = vsel %vm337, 0.0, %v327
        %v343 = vsel %vm338, 0.0, %v326
        %v344 = vsel %vm339, 0.0, %v325
        %v349 = vrot.slane %v341, 6
        %v350 = vrot.slane %v342, 4
        %v351 = vrot.slane %v343, 2
        %vm352 = vcmask 1041408
        %v353 = vsel %vm352, %v340, %v349
        %vm354 = vcmask 1045508
        %v355 = vsel %vm354, %v350, %v351
        %vm356 = vcmask 1043456
        %v357 = vsel %vm356, %v353, %v355
        %359 = vst [vmem:[#allocation2] sm:$0xff] %v357
        %360 = vst [vmem:[#allocation2 + $0x8] sm:$0x3] %v344
        %361 = vst [vmem:[#allocation1] ss:$9 sm:$0xff] %v297
        %s362 = scalar_lea.vmem [#allocation1], 1
        %363 = vst [vmem:[%s362] ss:$9 sm:$0xff] %v298
        %v364 = vld [vmem:[#allocation1] sm:$0xff]
        %v365 = vld [vmem:[#allocation1 + $0x9] sm:$0xff]
        %v366 = vld [vmem:[#allocation1 + $0x12] sm:$0xff]
        %v367 = vld [vmem:[#allocation1 + $0x1b] sm:$0xff]
        %v368 = vld [vmem:[#allocation1 + $0x24] sm:$0xff]
        %374 = vrot.lane.b32.xlu0 %v364, 127
        %v375 = vpop.permute.xlu0 %374
        %376 = vrot.lane.b32.xlu0 %v365, 127
        %v377 = vpop.permute.xlu0 %376
        %378 = vrot.lane.b32.xlu0 %v366, 127
        %v379 = vpop.permute.xlu0 %378
        %380 = vrot.lane.b32.xlu0 %v367, 127
        %v381 = vpop.permute.xlu0 %380
        %382 = vrot.lane.b32.xlu0 %v368, 127
        %v383 = vpop.permute.xlu0 %382
        %vm384 = vcmp.lt.s32.totalorder %v282, 127
        %v385 = vsel %vm384, %v381, %v383
        %v386 = vsel %vm384, %v379, %v381
        %v387 = vsel %vm384, %v377, %v379
        %v388 = vsel %vm384, %v375, %v377
        %v389 = vsel %vm384, %v383, %v375
        %v390 = vsel %vm292, 1, 0
        %v391 = vsel %vm293, 1, 0
        %v392 = vsel %vm294, 1, 0
        %v393 = vsel %vm295, 1, 0
        %v394 = vsel %vm296, 1, 0
        %vm395 = vcmp.eq.s32.totalorder %v390, 1
        %vm396 = vcmp.eq.s32.totalorder %v391, 1
        %vm397 = vcmp.eq.s32.totalorder %v392, 1
        %vm398 = vcmp.eq.s32.totalorder %v393, 1
        %vm399 = vcmp.eq.s32.totalorder %v394, 1
        %v400 = vsel %vm395, 0.0, %v388
        %v401 = vsel %vm396, 0.0, %v387
        %v402 = vsel %vm397, 0.0, %v386
        %v403 = vsel %vm398, 0.0, %v385
        %v404 = vsel %vm399, 0.0, %v389
        %v409 = vrot.slane %v401, 6
        %v410 = vrot.slane %v402, 4
        %v411 = vrot.slane %v403, 2
        %v412 = vsel %vm352, %v400, %v409
        %v413 = vsel %vm354, %v410, %v411
        %v414 = vsel %vm356, %v412, %v413
        %416 = vst [vmem:[#allocation3] sm:$0xff] %v414
        %417 = vst [vmem:[#allocation3 + $0x8] sm:$0x3] %v404
        %v418 = vld [vmem:[%s1] sm:$0xff]
        %v419 = vld [vmem:[%s1 + $0x8] sm:$0xff]
        %v420 = vld [vmem:[%s1 + $0x10] sm:$0xff]
        %v421 = vld [vmem:[%s1 + $0x18] sm:$0xff]
        %s422 = scalar_lea.vmem %s1, 32
        %v423 = vld [vmem:[%s422] sm:$0xff]
        %v424 = vld [vmem:[%s422 + $0x8] sm:$0xff]
        %v425 = vld [vmem:[%s422 + $0x10] sm:$0xff]
        %v426 = vld [vmem:[%s422 + $0x18] sm:$0xff]
        %s427 = scalar_lea.vmem %s1, 64
        %v428 = vld [vmem:[%s427] sm:$0xff]
        %v429 = vld [vmem:[%s427 + $0x8] sm:$0xff]
        %v430 = vld [vmem:[%s427 + $0x10] sm:$0xff]
        %v431 = vld [vmem:[%s427 + $0x18] sm:$0xff]
        %v432 = vld [vmem:[%s2] sm:$0xff]
        %v433 = vld [vmem:[%s2 + $0x8] sm:$0xff]
        %v434 = vld [vmem:[%s2 + $0x10] sm:$0xff]
        %v435 = vld [vmem:[%s2 + $0x18] sm:$0xff]
        %v436 = vld [vmem:[%s3] sm:$0xf]
        %v437 = vld [vmem:[%s4] sm:$0xff]
        loop: start=0, step=1, limit=2
        $region49: #{tpu_custom_call.1} parent=47 // loop_pre_header
          _
        $region50: #{tpu_custom_call.1} parent=47 // loop_header
          %s439 = sphi 0, %s443
          %p440 = scmp.ge.s32.totalorder %s439, 2
        $region51: #{tpu_custom_call.1} parent=47 // loop_header_branch
          %442 = sbr.rel (%p440) target = $region55
        $region52: #{tpu_custom_call.1} parent=47 // loop_body
          %s444 = smul.u32 %s439, 5
          %s445 = scalar_lea.vmem %s277, %s444
          %v446 = vld [vmem:[%s445] sm:$0x1f]
          %s447 = sshra.s32 %s439, 1
          %s448 = sand.u32 %s439, 1
          %s449 = sshra.s32 %s439, 1
          %s450 = sand.u32 %s439, 1
          %s451 = smul.u32 %s447, 5
          %s452 = smul.u32 %s451, 2
          %s453 = sadd.s32 %s452, %s450
          %s454 = scalar_lea.vmem [#allocation2], %s453
          %v455 = vld [vmem:[%s454] ss:$2 sm:$0x1f]
          %s456 = scalar_lea.vmem [#allocation3], %s453
          %v457 = vld [vmem:[%s456] ss:$2 sm:$0x1f]
          %459 = vset.pattern.permute.xlu0 0
          %460 = vperm.xlu0 %459, %v418
          %v461 = vpop.permute.xlu0 %460
          %464 = vset.pattern.permute.xlu0 0
          %465 = vperm.xlu0 %464, %v419
          %v466 = vpop.permute.xlu0 %465
          %469 = vset.pattern.permute.xlu0 0
          %470 = vperm.xlu0 %469, %v420
          %v471 = vpop.permute.xlu0 %470
          %474 = vset.pattern.permute.xlu0 0
          %475 = vperm.xlu0 %474, %v421
          %v476 = vpop.permute.xlu0 %475
          %v479 = vperm.slane %v455, 0
          %v480 = vperm.slane %v455, 1
          %v481 = vperm.slane %v455, 2
          %v482 = vperm.slane %v455, 3
          %v483 = vperm.slane %v455, 4
          %v489 = vmul.f32 %v461, %v479
          %v490 = vmul.f32 %v461, %v480
          %v491 = vmul.f32 %v461, %v481
          %v492 = vmul.f32 %v461, %v482
          %v493 = vmul.f32 %v461, %v483
          %v494 = vmul.f32 %v466, %v479
          %v495 = vmul.f32 %v466, %v480
          %v496 = vmul.f32 %v466, %v481
          %v497 = vmul.f32 %v466, %v482
          %v498 = vmul.f32 %v466, %v483
          %v499 = vmul.f32 %v471, %v479
          %v500 = vmul.f32 %v471, %v480
          %v501 = vmul.f32 %v471, %v481
          %v502 = vmul.f32 %v471, %v482
          %v503 = vmul.f32 %v471, %v483
          %v504 = vmul.f32 %v476, %v479
          %v505 = vmul.f32 %v476, %v480
          %v506 = vmul.f32 %v476, %v481
          %v507 = vmul.f32 %v476, %v482
          %v508 = vmul.f32 %v476, %v483
          %510 = vset.pattern.permute.xlu0 0
          %511 = vperm.xlu0 %510, %v423
          %v512 = vpop.permute.xlu0 %511
          %515 = vset.pattern.permute.xlu0 0
          %516 = vperm.xlu0 %515, %v424
          %v517 = vpop.permute.xlu0 %516
          %520 = vset.pattern.permute.xlu0 0
          %521 = vperm.xlu0 %520, %v425
          %v522 = vpop.permute.xlu0 %521
          %525 = vset.pattern.permute.xlu0 0
          %526 = vperm.xlu0 %525, %v426
          %v527 = vpop.permute.xlu0 %526
          %v530 = vperm.slane %v446, 0
          %v531 = vperm.slane %v446, 1
          %v532 = vperm.slane %v446, 2
          %v533 = vperm.slane %v446, 3
          %v534 = vperm.slane %v446, 4
          %v540 = vmul.f32 %v512, %v530
          %v541 = vmul.f32 %v512, %v531
          %v542 = vmul.f32 %v512, %v532
          %v543 = vmul.f32 %v512, %v533
          %v544 = vmul.f32 %v512, %v534
          %v545 = vmul.f32 %v517, %v530
          %v546 = vmul.f32 %v517, %v531
          %v547 = vmul.f32 %v517, %v532
          %v548 = vmul.f32 %v517, %v533
          %v549 = vmul.f32 %v517, %v534
          %v550 = vmul.f32 %v522, %v530
          %v551 = vmul.f32 %v522, %v531
          %v552 = vmul.f32 %v522, %v532
          %v553 = vmul.f32 %v522, %v533
          %v554 = vmul.f32 %v522, %v534
          %v555 = vmul.f32 %v527, %v530
          %v556 = vmul.f32 %v527, %v531
          %v557 = vmul.f32 %v527, %v532
          %v558 = vmul.f32 %v527, %v533
          %v559 = vmul.f32 %v527, %v534
          %v560 = vadd.f32 %v489, %v540
          %v561 = vadd.f32 %v490, %v541
          %v562 = vadd.f32 %v491, %v542
          %v563 = vadd.f32 %v492, %v543
          %v564 = vadd.f32 %v493, %v544
          %v565 = vadd.f32 %v494, %v545
          %v566 = vadd.f32 %v495, %v546
          %v567 = vadd.f32 %v496, %v547
          %v568 = vadd.f32 %v497, %v548
          %v569 = vadd.f32 %v498, %v549
          %v570 = vadd.f32 %v499, %v550
          %v571 = vadd.f32 %v500, %v551
          %v572 = vadd.f32 %v501, %v552
          %v573 = vadd.f32 %v502, %v553
          %v574 = vadd.f32 %v503, %v554
          %v575 = vadd.f32 %v504, %v555
          %v576 = vadd.f32 %v505, %v556
          %v577 = vadd.f32 %v506, %v557
          %v578 = vadd.f32 %v507, %v558
          %v579 = vadd.f32 %v508, %v559
          %581 = vset.pattern.permute.xlu0 0
          %582 = vperm.xlu0 %581, %v428
          %v583 = vpop.permute.xlu0 %582
          %586 = vset.pattern.permute.xlu0 0
          %587 = vperm.xlu0 %586, %v429
          %v588 = vpop.permute.xlu0 %587
          %591 = vset.pattern.permute.xlu0 0
          %592 = vperm.xlu0 %591, %v430
          %v593 = vpop.permute.xlu0 %592
          %596 = vset.pattern.permute.xlu0 0
          %597 = vperm.xlu0 %596, %v431
          %v598 = vpop.permute.xlu0 %597
          %v601 = vperm.slane %v457, 0
          %v602 = vperm.slane %v457, 1
          %v603 = vperm.slane %v457, 2
          %v604 = vperm.slane %v457, 3
          %v605 = vperm.slane %v457, 4
          %v611 = vmul.f32 %v583, %v601
          %v612 = vmul.f32 %v583, %v602
          %v613 = vmul.f32 %v583, %v603
          %v614 = vmul.f32 %v583, %v604
          %v615 = vmul.f32 %v583, %v605
          %v616 = vmul.f32 %v588, %v601
          %v617 = vmul.f32 %v588, %v602
          %v618 = vmul.f32 %v588, %v603
          %v619 = vmul.f32 %v588, %v604
          %v620 = vmul.f32 %v588, %v605
          %v621 = vmul.f32 %v593, %v601
          %v622 = vmul.f32 %v593, %v602
          %v623 = vmul.f32 %v593, %v603
          %v624 = vmul.f32 %v593, %v604
          %v625 = vmul.f32 %v593, %v605
          %v626 = vmul.f32 %v598, %v601
          %v627 = vmul.f32 %v598, %v602
          %v628 = vmul.f32 %v598, %v603
          %v629 = vmul.f32 %v598, %v604
          %v630 = vmul.f32 %v598, %v605
          %v631 = vadd.f32 %v560, %v611
          %v632 = vadd.f32 %v561, %v612
          %v633 = vadd.f32 %v562, %v613
          %v634 = vadd.f32 %v563, %v614
          %v635 = vadd.f32 %v564, %v615
          %v636 = vadd.f32 %v565, %v616
          %v637 = vadd.f32 %v566, %v617
          %v638 = vadd.f32 %v567, %v618
          %v639 = vadd.f32 %v568, %v619
          %v640 = vadd.f32 %v569, %v620
          %v641 = vadd.f32 %v570, %v621
          %v642 = vadd.f32 %v571, %v622
          %v643 = vadd.f32 %v572, %v623
          %v644 = vadd.f32 %v573, %v624
          %v645 = vadd.f32 %v574, %v625
          %v646 = vadd.f32 %v575, %v626
          %v647 = vadd.f32 %v576, %v627
          %v648 = vadd.f32 %v577, %v628
          %v649 = vadd.f32 %v578, %v629
          %v650 = vadd.f32 %v579, %v630
          %652 = vset.pattern.permute.xlu0 0
          %653 = vperm.xlu0 %652, %v432
          %v654 = vpop.permute.xlu0 %653
          %657 = vset.pattern.permute.xlu0 0
          %658 = vperm.xlu0 %657, %v433
          %v659 = vpop.permute.xlu0 %658
          %662 = vset.pattern.permute.xlu0 0
          %663 = vperm.xlu0 %662, %v434
          %v664 = vpop.permute.xlu0 %663
          %667 = vset.pattern.permute.xlu0 0
          %668 = vperm.xlu0 %667, %v435
          %v669 = vpop.permute.xlu0 %668
          %v671 = vadd.f32 %v631, %v654
          %v672 = vadd.f32 %v632, %v654
          %v673 = vadd.f32 %v633, %v654
          %v674 = vadd.f32 %v634, %v654
          %v675 = vadd.f32 %v635, %v654
          %v676 = vadd.f32 %v636, %v659
          %v677 = vadd.f32 %v637, %v659
          %v678 = vadd.f32 %v638, %v659
          %v679 = vadd.f32 %v639, %v659
          %v680 = vadd.f32 %v640, %v659
          %v681 = vadd.f32 %v641, %v664
          %v682 = vadd.f32 %v642, %v664
          %v683 = vadd.f32 %v643, %v664
          %v684 = vadd.f32 %v644, %v664
          %v685 = vadd.f32 %v645, %v664
          %v686 = vadd.f32 %v646, %v669
          %v687 = vadd.f32 %v647, %v669
          %v688 = vadd.f32 %v648, %v669
          %v689 = vadd.f32 %v649, %v669
          %v690 = vadd.f32 %v650, %v669
          %v691 = vmax.f32 %v671, 0.0
          %v692 = vmax.f32 %v672, 0.0
          %v693 = vmax.f32 %v673, 0.0
          %v694 = vmax.f32 %v674, 0.0
          %v695 = vmax.f32 %v675, 0.0
          %v696 = vmax.f32 %v676, 0.0
          %v697 = vmax.f32 %v677, 0.0
          %v698 = vmax.f32 %v678, 0.0
          %v699 = vmax.f32 %v679, 0.0
          %v700 = vmax.f32 %v680, 0.0
          %v701 = vmax.f32 %v681, 0.0
          %v702 = vmax.f32 %v682, 0.0
          %v703 = vmax.f32 %v683, 0.0
          %v704 = vmax.f32 %v684, 0.0
          %v705 = vmax.f32 %v685, 0.0
          %v706 = vmax.f32 %v686, 0.0
          %v707 = vmax.f32 %v687, 0.0
          %v708 = vmax.f32 %v688, 0.0
          %v709 = vmax.f32 %v689, 0.0
          %v710 = vmax.f32 %v690, 0.0
          %711 = vrot.lane.b32.xlu0 %v691, 1
          %v712 = vpop.permute.xlu0 %711
          %713 = vrot.lane.b32.xlu0 %v696, 1
          %v714 = vpop.permute.xlu0 %713
          %715 = vrot.lane.b32.xlu0 %v701, 1
          %v716 = vpop.permute.xlu0 %715
          %717 = vrot.lane.b32.xlu0 %v706, 1
          %v718 = vpop.permute.xlu0 %717
          %719 = vrot.lane.b32.xlu0 %v692, 1
          %v720 = vpop.permute.xlu0 %719
          %721 = vrot.lane.b32.xlu0 %v697, 1
          %v722 = vpop.permute.xlu0 %721
          %723 = vrot.lane.b32.xlu0 %v702, 1
          %v724 = vpop.permute.xlu0 %723
          %725 = vrot.lane.b32.xlu0 %v707, 1
          %v726 = vpop.permute.xlu0 %725
          %727 = vrot.lane.b32.xlu0 %v693, 1
          %v728 = vpop.permute.xlu0 %727
          %729 = vrot.lane.b32.xlu0 %v698, 1
          %v730 = vpop.permute.xlu0 %729
          %731 = vrot.lane.b32.xlu0 %v703, 1
          %v732 = vpop.permute.xlu0 %731
          %733 = vrot.lane.b32.xlu0 %v708, 1
          %v734 = vpop.permute.xlu0 %733
          %735 = vrot.lane.b32.xlu0 %v694, 1
          %v736 = vpop.permute.xlu0 %735
          %737 = vrot.lane.b32.xlu0 %v699, 1
          %v738 = vpop.permute.xlu0 %737
          %739 = vrot.lane.b32.xlu0 %v704, 1
          %v740 = vpop.permute.xlu0 %739
          %741 = vrot.lane.b32.xlu0 %v709, 1
          %v742 = vpop.permute.xlu0 %741
          %743 = vrot.lane.b32.xlu0 %v695, 1
          %v744 = vpop.permute.xlu0 %743
          %745 = vrot.lane.b32.xlu0 %v700, 1
          %v746 = vpop.permute.xlu0 %745
          %747 = vrot.lane.b32.xlu0 %v705, 1
          %v748 = vpop.permute.xlu0 %747
          %749 = vrot.lane.b32.xlu0 %v710, 1
          %v750 = vpop.permute.xlu0 %749
          %v751 = vsel %vm324, %v736, %v744
          %v752 = vsel %vm324, %v738, %v746
          %v753 = vsel %vm324, %v740, %v748
          %v754 = vsel %vm324, %v742, %v750
          %v755 = vsel %vm324, %v728, %v736
          %v756 = vsel %vm324, %v730, %v738
          %v757 = vsel %vm324, %v732, %v740
          %v758 = vsel %vm324, %v734, %v742
          %v759 = vsel %vm324, %v720, %v728
          %v760 = vsel %vm324, %v722, %v730
          %v761 = vsel %vm324, %v724, %v732
          %v762 = vsel %vm324, %v726, %v734
          %v763 = vsel %vm324, %v712, %v720
          %v764 = vsel %vm324, %v714, %v722
          %v765 = vsel %vm324, %v716, %v724
          %v766 = vsel %vm324, %v718, %v726
          %v767 = vsel %vm324, %v744, %v712
          %v768 = vsel %vm324, %v746, %v714
          %v769 = vsel %vm324, %v748, %v716
          %v770 = vsel %vm324, %v750, %v718
          %v771 = vsel %vm335, 0.0, %v767
          %v772 = vsel %vm336, 0.0, %v763
          %v773 = vsel %vm337, 0.0, %v759
          %v774 = vsel %vm338, 0.0, %v755
          %v775 = vsel %vm339, 0.0, %v751
          %v776 = vsel %vm335, 0.0, %v768
          %v777 = vsel %vm336, 0.0, %v764
          %v778 = vsel %vm337, 0.0, %v760
          %v779 = vsel %vm338, 0.0, %v756
          %v780 = vsel %vm339, 0.0, %v752
          %v781 = vsel %vm335, 0.0, %v769
          %v782 = vsel %vm336, 0.0, %v765
          %v783 = vsel %vm337, 0.0, %v761
          %v784 = vsel %vm338, 0.0, %v757
          %v785 = vsel %vm339, 0.0, %v753
          %v786 = vsel %vm335, 0.0, %v770
          %v787 = vsel %vm336, 0.0, %v766
          %v788 = vsel %vm337, 0.0, %v762
          %v789 = vsel %vm338, 0.0, %v758
          %v790 = vsel %vm339, 0.0, %v754
          %791 = vrot.lane.b32.xlu0 %v691, 127
          %v792 = vpop.permute.xlu0 %791
          %793 = vrot.lane.b32.xlu0 %v696, 127
          %v794 = vpop.permute.xlu0 %793
          %795 = vrot.lane.b32.xlu0 %v701, 127
          %v796 = vpop.permute.xlu0 %795
          %797 = vrot.lane.b32.xlu0 %v706, 127
          %v798 = vpop.permute.xlu0 %797
          %799 = vrot.lane.b32.xlu0 %v692, 127
          %v800 = vpop.permute.xlu0 %799
          %801 = vrot.lane.b32.xlu0 %v697, 127
          %v802 = vpop.permute.xlu0 %801
          %803 = vrot.lane.b32.xlu0 %v702, 127
          %v804 = vpop.permute.xlu0 %803
          %805 = vrot.lane.b32.xlu0 %v707, 127
          %v806 = vpop.permute.xlu0 %805
          %807 = vrot.lane.b32.xlu0 %v693, 127
          %v808 = vpop.permute.xlu0 %807
          %809 = vrot.lane.b32.xlu0 %v698, 127
          %v810 = vpop.permute.xlu0 %809
          %811 = vrot.lane.b32.xlu0 %v703, 127
          %v812 = vpop.permute.xlu0 %811
          %813 = vrot.lane.b32.xlu0 %v708, 127
          %v814 = vpop.permute.xlu0 %813
          %815 = vrot.lane.b32.xlu0 %v694, 127
          %v816 = vpop.permute.xlu0 %815
          %817 = vrot.lane.b32.xlu0 %v699, 127
          %v818 = vpop.permute.xlu0 %817
          %819 = vrot.lane.b32.xlu0 %v704, 127
          %v820 = vpop.permute.xlu0 %819
          %821 = vrot.lane.b32.xlu0 %v709, 127
          %v822 = vpop.permute.xlu0 %821
          %823 = vrot.lane.b32.xlu0 %v695, 127
          %v824 = vpop.permute.xlu0 %823
          %825 = vrot.lane.b32.xlu0 %v700, 127
          %v826 = vpop.permute.xlu0 %825
          %827 = vrot.lane.b32.xlu0 %v705, 127
          %v828 = vpop.permute.xlu0 %827
          %829 = vrot.lane.b32.xlu0 %v710, 127
          %v830 = vpop.permute.xlu0 %829
          %v831 = vsel %vm384, %v816, %v824
          %v832 = vsel %vm384, %v818, %v826
          %v833 = vsel %vm384, %v820, %v828
          %v834 = vsel %vm384, %v822, %v830
          %v835 = vsel %vm384, %v808, %v816
          %v836 = vsel %vm384, %v810, %v818
          %v837 = vsel %vm384, %v812, %v820
          %v838 = vsel %vm384, %v814, %v822
          %v839 = vsel %vm384, %v800, %v808
          %v840 = vsel %vm384, %v802, %v810
          %v841 = vsel %vm384, %v804, %v812
          %v842 = vsel %vm384, %v806, %v814
          %v843 = vsel %vm384, %v792, %v800
          %v844 = vsel %vm384, %v794, %v802
          %v845 = vsel %vm384, %v796, %v804
          %v846 = vsel %vm384, %v798, %v806
          %v847 = vsel %vm384, %v824, %v792
          %v848 = vsel %vm384, %v826, %v794
          %v849 = vsel %vm384, %v828, %v796
          %v850 = vsel %vm384, %v830, %v798
          %v851 = vsel %vm395, 0.0, %v843
          %v852 = vsel %vm396, 0.0, %v839
          %v853 = vsel %vm397, 0.0, %v835
          %v854 = vsel %vm398, 0.0, %v831
          %v855 = vsel %vm399, 0.0, %v847
          %v856 = vsel %vm395, 0.0, %v844
          %v857 = vsel %vm396, 0.0, %v840
          %v858 = vsel %vm397, 0.0, %v836
          %v859 = vsel %vm398, 0.0, %v832
          %v860 = vsel %vm399, 0.0, %v848
          %v861 = vsel %vm395, 0.0, %v845
          %v862 = vsel %vm396, 0.0, %v841
          %v863 = vsel %vm397, 0.0, %v837
          %v864 = vsel %vm398, 0.0, %v833
          %v865 = vsel %vm399, 0.0, %v849
          %v866 = vsel %vm395, 0.0, %v846
          %v867 = vsel %vm396, 0.0, %v842
          %v868 = vsel %vm397, 0.0, %v838
          %v869 = vsel %vm398, 0.0, %v834
          %v870 = vsel %vm399, 0.0, %v850
          %v871 = vpack.c.bf16 %v772, %v771
          %v872 = vpack.c.bf16 %v774, %v773
          %v873 = vpack.c.bf16 %v775, %v775
          %v874 = vpack.c.bf16 %v777, %v776
          %v875 = vpack.c.bf16 %v779, %v778
          %v876 = vpack.c.bf16 %v780, %v780
          %v877 = vpack.c.bf16 %v782, %v781
          %v878 = vpack.c.bf16 %v784, %v783
          %v879 = vpack.c.bf16 %v785, %v785
          %v880 = vpack.c.bf16 %v787, %v786
          %v881 = vpack.c.bf16 %v789, %v788
          %v882 = vpack.c.bf16 %v790, %v790
          %v883 = vpack.c.bf16 %v692, %v691
          %v884 = vpack.c.bf16 %v694, %v693
          %v885 = vpack.c.bf16 %v695, %v695
          %v886 = vpack.c.bf16 %v697, %v696
          %v887 = vpack.c.bf16 %v699, %v698
          %v888 = vpack.c.bf16 %v700, %v700
          %v889 = vpack.c.bf16 %v702, %v701
          %v890 = vpack.c.bf16 %v704, %v703
          %v891 = vpack.c.bf16 %v705, %v705
          %v892 = vpack.c.bf16 %v707, %v706
          %v893 = vpack.c.bf16 %v709, %v708
          %v894 = vpack.c.bf16 %v710, %v710
          %v895 = vpack.c.bf16 %v852, %v851
          %v896 = vpack.c.bf16 %v854, %v853
          %v897 = vpack.c.bf16 %v855, %v855
          %v898 = vpack.c.bf16 %v857, %v856
          %v899 = vpack.c.bf16 %v859, %v858
          %v900 = vpack.c.bf16 %v860, %v860
          %v901 = vpack.c.bf16 %v862, %v861
          %v902 = vpack.c.bf16 %v864, %v863
          %v903 = vpack.c.bf16 %v865, %v865
          %v904 = vpack.c.bf16 %v867, %v866
          %v905 = vpack.c.bf16 %v869, %v868
          %v906 = vpack.c.bf16 %v870, %v870
          %v919 = vunpack.c.l.b16 %v871
          %v920 = vunpack.c.h.b16 %v871
          %v921 = vunpack.c.l.b16 %v872
          %v922 = vunpack.c.h.b16 %v872
          %v923 = vunpack.c.l.b16 %v873
          %v924 = vunpack.c.l.b16 %v874
          %v925 = vunpack.c.h.b16 %v874
          %v926 = vunpack.c.l.b16 %v875
          %v927 = vunpack.c.h.b16 %v875
          %v928 = vunpack.c.l.b16 %v876
          %v929 = vunpack.c.l.b16 %v877
          %v930 = vunpack.c.h.b16 %v877
          %v931 = vunpack.c.l.b16 %v878
          %v932 = vunpack.c.h.b16 %v878
          %v933 = vunpack.c.l.b16 %v879
          %v934 = vunpack.c.l.b16 %v880
          %v935 = vunpack.c.h.b16 %v880
          %v936 = vunpack.c.l.b16 %v881
          %v937 = vunpack.c.h.b16 %v881
          %v938 = vunpack.c.l.b16 %v882
          %v939 = vpack.c.b16 %v924, %v919
          %v940 = vpack.c.b16 %v925, %v920
          %v941 = vpack.c.b16 %v926, %v921
          %v942 = vpack.c.b16 %v927, %v922
          %v943 = vpack.c.b16 %v928, %v923
          %v944 = vpack.c.b16 %v934, %v929
          %v945 = vpack.c.b16 %v935, %v930
          %v946 = vpack.c.b16 %v936, %v931
          %v947 = vpack.c.b16 %v937, %v932
          %v948 = vpack.c.b16 %v938, %v933
          %v971 = vunpack.c.l.b16 %v883
          %v972 = vunpack.c.h.b16 %v883
          %v973 = vunpack.c.l.b16 %v884
          %v974 = vunpack.c.h.b16 %v884
          %v975 = vunpack.c.l.b16 %v885
          %v976 = vunpack.c.l.b16 %v886
          %v977 = vunpack.c.h.b16 %v886
          %v978 = vunpack.c.l.b16 %v887
          %v979 = vunpack.c.h.b16 %v887
          %v980 = vunpack.c.l.b16 %v888
          %v981 = vunpack.c.l.b16 %v889
          %v982 = vunpack.c.h.b16 %v889
          %v983 = vunpack.c.l.b16 %v890
          %v984 = vunpack.c.h.b16 %v890
          %v985 = vunpack.c.l.b16 %v891
          %v986 = vunpack.c.l.b16 %v892
          %v987 = vunpack.c.h.b16 %v892
          %v988 = vunpack.c.l.b16 %v893
          %v989 = vunpack.c.h.b16 %v893
          %v990 = vunpack.c.l.b16 %v894
          %v991 = vpack.c.b16 %v976, %v971
          %v992 = vpack.c.b16 %v977, %v972
          %v993 = vpack.c.b16 %v978, %v973
          %v994 = vpack.c.b16 %v979, %v974
          %v995 = vpack.c.b16 %v980, %v975
          %v996 = vpack.c.b16 %v986, %v981
          %v997 = vpack.c.b16 %v987, %v982
          %v998 = vpack.c.b16 %v988, %v983
          %v999 = vpack.c.b16 %v989, %v984
          %v1000 = vpack.c.b16 %v990, %v985
          %v1023 = vunpack.c.l.b16 %v895
          %v1024 = vunpack.c.h.b16 %v895
          %v1025 = vunpack.c.l.b16 %v896
          %v1026 = vunpack.c.h.b16 %v896
          %v1027 = vunpack.c.l.b16 %v897
          %v1028 = vunpack.c.l.b16 %v898
          %v1029 = vunpack.c.h.b16 %v898
          %v1030 = vunpack.c.l.b16 %v899
          %v1031 = vunpack.c.h.b16 %v899
          %v1032 = vunpack.c.l.b16 %v900
          %v1033 = vunpack.c.l.b16 %v901
          %v1034 = vunpack.c.h.b16 %v901
          %v1035 = vunpack.c.l.b16 %v902
          %v1036 = vunpack.c.h.b16 %v902
          %v1037 = vunpack.c.l.b16 %v903
          %v1038 = vunpack.c.l.b16 %v904
          %v1039 = vunpack.c.h.b16 %v904
          %v1040 = vunpack.c.l.b16 %v905
          %v1041 = vunpack.c.h.b16 %v905
          %v1042 = vunpack.c.l.b16 %v906
          %v1043 = vpack.c.b16 %v1028, %v1023
          %v1044 = vpack.c.b16 %v1029, %v1024
          %v1045 = vpack.c.b16 %v1030, %v1025
          %v1046 = vpack.c.b16 %v1031, %v1026
          %v1047 = vpack.c.b16 %v1032, %v1027
          %v1048 = vpack.c.b16 %v1038, %v1033
          %v1049 = vpack.c.b16 %v1039, %v1034
          %v1050 = vpack.c.b16 %v1040, %v1035
          %v1051 = vpack.c.b16 %v1041, %v1036
          %v1052 = vpack.c.b16 %v1042, %v1037
          %1064 = vset.pattern.permute.xlu0 0
          %1065 = vperm.xlu0 %1064, %v437
          %v1066 = vpop.permute.xlu0 %1065
          %vm1068 = vcmask 785408
          %v1070 = vsel %vm1068, %v436, 0
          %1072 = vmatpush.bf16.msra.mxu0 0
          %1073 = vmatpush.bf16.msra.mxu0 0
          %1074 = vmatpush.bf16.msra.mxu0 %v1048
          %1075 = vmatpush.bf16.msra.mxu0 %v1043
          %1076 = vmatpush.bf16.msra.mxu0 %v996
          %1077 = vmatpush.bf16.msra.mxu0 %v991
          %1078 = vmatpush.bf16.msra.mxu0 %v944
          %1079 = vmatpush.bf16.msra.mxu0 %v939
          %1080 = vmatmul.bf16.gmra.mxu0 %v1070
          %v1081 = vpop.f32.mrf.mxu0
          %v1082 = vadd.f32 %v1066, %v1081
          %v1083 = vpop.f32.mrf.mxu0
          %1084 = vdwg.mxu0
          %1085 = vmatpush.bf16.msra.mxu0 0
          %1086 = vmatpush.bf16.msra.mxu0 0
          %1087 = vmatpush.bf16.msra.mxu0 %v1049
          %1088 = vmatpush.bf16.msra.mxu0 %v1044
          %1089 = vmatpush.bf16.msra.mxu0 %v997
          %1090 = vmatpush.bf16.msra.mxu0 %v992
          %1091 = vmatpush.bf16.msra.mxu0 %v945
          %1092 = vmatpush.bf16.msra.mxu0 %v940
          %1093 = vmatmul.bf16.gmra.mxu0 %v1070
          %v1094 = vpop.f32.mrf.mxu0
          %v1095 = vadd.f32 %v1066, %v1094
          %v1096 = vpop.f32.mrf.mxu0
          %1097 = vdwg.mxu0
          %1098 = vmatpush.bf16.msra.mxu0 0
          %1099 = vmatpush.bf16.msra.mxu0 0
          %1100 = vmatpush.bf16.msra.mxu0 %v1050
          %1101 = vmatpush.bf16.msra.mxu0 %v1045
          %1102 = vmatpush.bf16.msra.mxu0 %v998
          %1103 = vmatpush.bf16.msra.mxu0 %v993
          %1104 = vmatpush.bf16.msra.mxu0 %v946
          %1105 = vmatpush.bf16.msra.mxu0 %v941
          %1106 = vmatmul.bf16.gmra.mxu0 %v1070
          %v1107 = vpop.f32.mrf.mxu0
          %v1108 = vadd.f32 %v1066, %v1107
          %v1109 = vpop.f32.mrf.mxu0
          %1110 = vdwg.mxu0
          %1111 = vmatpush.bf16.msra.mxu0 0
          %1112 = vmatpush.bf16.msra.mxu0 0
          %1113 = vmatpush.bf16.msra.mxu0 %v1051
          %1114 = vmatpush.bf16.msra.mxu0 %v1046
          %1115 = vmatpush.bf16.msra.mxu0 %v999
          %1116 = vmatpush.bf16.msra.mxu0 %v994
          %1117 = vmatpush.bf16.msra.mxu0 %v947
          %1118 = vmatpush.bf16.msra.mxu0 %v942
          %1119 = vmatmul.bf16.gmra.mxu0 %v1070
          %v1120 = vpop.f32.mrf.mxu0
          %v1121 = vadd.f32 %v1066, %v1120
          %v1122 = vpop.f32.mrf.mxu0
          %1123 = vdwg.mxu0
          %1124 = vmatpush.bf16.msra.mxu0 0
          %1125 = vmatpush.bf16.msra.mxu0 0
          %1126 = vmatpush.bf16.msra.mxu0 %v1052
          %1127 = vmatpush.bf16.msra.mxu0 %v1047
          %1128 = vmatpush.bf16.msra.mxu0 %v1000
          %1129 = vmatpush.bf16.msra.mxu0 %v995
          %1130 = vmatpush.bf16.msra.mxu0 %v948
          %1131 = vmatpush.bf16.msra.mxu0 %v943
          %1132 = vmatmul.bf16.gmra.mxu0 %v1070
          %v1133 = vpop.f32.mrf.mxu0
          %v1134 = vadd.f32 %v1066, %v1133
          %v1135 = vpop.f32.mrf.mxu0
          %1136 = vdwg.mxu0
          %v1137 = vmax.f32 %v1082, 0.0
          %v1138 = vmax.f32 %v1095, 0.0
          %v1139 = vmax.f32 %v1108, 0.0
          %v1140 = vmax.f32 %v1121, 0.0
          %v1141 = vmax.f32 %v1134, 0.0
          %1142 = vrot.lane.b32.xlu0 %v1137, 127
          %v1143 = vpop.permute.xlu0 %1142
          %1144 = vrot.lane.b32.xlu0 %v1138, 127
          %v1145 = vpop.permute.xlu0 %1144
          %1146 = vrot.lane.b32.xlu0 %v1139, 127
          %v1147 = vpop.permute.xlu0 %1146
          %1148 = vrot.lane.b32.xlu0 %v1140, 127
          %v1149 = vpop.permute.xlu0 %1148
          %1150 = vrot.lane.b32.xlu0 %v1141, 127
          %v1151 = vpop.permute.xlu0 %1150
          %v1152 = vsel %vm384, %v1149, %v1151
          %v1153 = vsel %vm384, %v1147, %v1149
          %v1154 = vsel %vm384, %v1145, %v1147
          %v1155 = vsel %vm384, %v1143, %v1145
          %v1156 = vsel %vm384, %v1151, %v1143
          %v1157 = vmax.f32 %v1137, %v1155
          %v1158 = vmax.f32 %v1138, %v1154
          %v1159 = vmax.f32 %v1139, %v1153
          %v1160 = vmax.f32 %v1140, %v1152
          %v1161 = vmax.f32 %v1141, %v1156
          %s1162 = smul.addr %s444, 8
          %s1163 = scalar_lea.vmem [#allocation4], %s1162
          %1164 = vst [vmem:[%s1163] sm:$0xff] %v1157
          %1165 = vst [vmem:[%s1163 + $0x8] sm:$0xff] %v1158
          %1166 = vst [vmem:[%s1163 + $0x10] sm:$0xff] %v1159
          %1167 = vst [vmem:[%s1163 + $0x18] sm:$0xff] %v1160
          %1168 = vst [vmem:[%s1163 + $0x20] sm:$0xff] %v1161
        $region53: #{tpu_custom_call.1} parent=47 // loop_footer
          %s443 = sadd.s32 1, %s439
        $region54: #{tpu_custom_call.1} parent=47 // loop_footer_branch
          %438 = sbr.rel target = $region50
        $region55: #{tpu_custom_call.1} parent=47 // loop_exit
          _
        %v1169 = vld [vmem:[#allocation4] ss:$8 sm:$0xf]
        %v1170 = vld [vmem:[#allocation4] ss:$8 sm:$0x10]
        %v1171 = vor.u32 %v1169, %v1170
        %s1172 = scalar_lea.vmem [#allocation4], 40
        %v1173 = vld [vmem:[%s1172] ss:$8 sm:$0xf]
        %v1174 = vld [vmem:[%s1172] ss:$8 sm:$0x10]
        %v1175 = vor.u32 %v1173, %v1174
        %v1178 = vperm.slane %v1171, 0
        %v1179 = vperm.slane %v1171, 1
        %v1180 = vperm.slane %v1171, 2
        %v1181 = vperm.slane %v1171, 3
        %v1182 = vperm.slane %v1171, 4
        %v1183 = vperm.slane %v1175, 0
        %v1184 = vperm.slane %v1175, 1
        %v1185 = vperm.slane %v1175, 2
        %v1186 = vperm.slane %v1175, 3
        %v1187 = vperm.slane %v1175, 4
        %v1198 = vpack.c.bf16 %v1178, %v1178
        %v1199 = vpack.c.bf16 %v1179, %v1179
        %v1200 = vpack.c.bf16 %v1180, %v1180
        %v1201 = vpack.c.bf16 %v1181, %v1181
        %v1202 = vpack.c.bf16 %v1182, %v1182
        %v1203 = vpack.c.bf16 %v1183, %v1183
        %v1204 = vpack.c.bf16 %v1184, %v1184
        %v1205 = vpack.c.bf16 %v1185, %v1185
        %v1206 = vpack.c.bf16 %v1186, %v1186
        %v1207 = vpack.c.bf16 %v1187, %v1187
        %v1208 = vld [vmem:[%s5] sm:$0xf]
        %v1209 = vld [vmem:[%s5 + $0x4] sm:$0xf]
        %v1210 = vld [vmem:[%s5 + $0x8] sm:$0xf]
        %v1211 = vld [vmem:[%s5 + $0xc] sm:$0xf]
        %v1212 = vld [vmem:[%s5 + $0x10] sm:$0xf]
        %v1213 = vld [vmem:[%s5 + $0x14] sm:$0xf]
        %v1214 = vld [vmem:[%s5 + $0x18] sm:$0xf]
        %v1215 = vld [vmem:[%s5 + $0x1c] sm:$0xf]
        %v1216 = vld [vmem:[%s5 + $0x20] sm:$0xf]
        %v1217 = vld [vmem:[%s5 + $0x24] sm:$0xf]
        %v1218 = vld [vmem:[%s5 + $0x28] sm:$0xf]
        %v1219 = vld [vmem:[%s5 + $0x2c] sm:$0xf]
        %v1220 = vld [vmem:[%s5 + $0x30] sm:$0xf]
        %v1221 = vld [vmem:[%s5 + $0x34] sm:$0xf]
        %v1222 = vld [vmem:[%s5 + $0x38] sm:$0xf]
        %v1223 = vld [vmem:[%s5 + $0x3c] sm:$0xf]
        %v1224 = vld [vmem:[%s5 + $0x40] sm:$0xf]
        %v1225 = vld [vmem:[%s5 + $0x44] sm:$0xf]
        %v1226 = vld [vmem:[%s5 + $0x48] sm:$0xf]
        %v1227 = vld [vmem:[%s5 + $0x4c] sm:$0xf]
        %v1228 = vld [vmem:[%s5 + $0x50] sm:$0xf]
        %v1229 = vld [vmem:[%s5 + $0x54] sm:$0xf]
        %v1230 = vld [vmem:[%s5 + $0x58] sm:$0xf]
        %v1231 = vld [vmem:[%s5 + $0x5c] sm:$0xf]
        %v1232 = vld [vmem:[%s5 + $0x60] sm:$0xf]
        %v1233 = vld [vmem:[%s5 + $0x64] sm:$0xf]
        %v1234 = vld [vmem:[%s5 + $0x68] sm:$0xf]
        %v1235 = vld [vmem:[%s5 + $0x6c] sm:$0xf]
        %v1236 = vld [vmem:[%s5 + $0x70] sm:$0xf]
        %v1237 = vld [vmem:[%s5 + $0x74] sm:$0xf]
        %v1238 = vld [vmem:[%s5 + $0x78] sm:$0xf]
        %v1239 = vld [vmem:[%s5 + $0x7c] sm:$0xf]
        %v1240 = vld [vmem:[%s5 + $0x80] sm:$0xf]
        %v1241 = vld [vmem:[%s5 + $0x84] sm:$0xf]
        %v1242 = vld [vmem:[%s5 + $0x88] sm:$0xf]
        %v1243 = vld [vmem:[%s5 + $0x8c] sm:$0xf]
        %v1244 = vld [vmem:[%s5 + $0x90] sm:$0xf]
        %v1245 = vld [vmem:[%s5 + $0x94] sm:$0xf]
        %v1246 = vld [vmem:[%s5 + $0x98] sm:$0xf]
        %v1247 = vld [vmem:[%s5 + $0x9c] sm:$0xf]
        %v1248 = vld [vmem:[%s5 + $0xa0] sm:$0xf]
        %v1249 = vld [vmem:[%s5 + $0xa4] sm:$0xf]
        %v1250 = vld [vmem:[%s5 + $0xa8] sm:$0xf]
        %v1251 = vld [vmem:[%s5 + $0xac] sm:$0xf]
        %v1252 = vld [vmem:[%s5 + $0xb0] sm:$0xf]
        %v1253 = vld [vmem:[%s5 + $0xb4] sm:$0xf]
        %v1254 = vld [vmem:[%s5 + $0xb8] sm:$0xf]
        %v1255 = vld [vmem:[%s5 + $0xbc] sm:$0xf]
        %v1256 = vld [vmem:[%s5 + $0xc0] sm:$0xf]
        %v1257 = vld [vmem:[%s5 + $0xc4] sm:$0xf]
        %v1258 = vld [vmem:[%s5 + $0xc8] sm:$0xf]
        %v1259 = vld [vmem:[%s5 + $0xcc] sm:$0xf]
        %v1260 = vld [vmem:[%s5 + $0xd0] sm:$0xf]
        %v1261 = vld [vmem:[%s5 + $0xd4] sm:$0xf]
        %v1262 = vld [vmem:[%s5 + $0xd8] sm:$0xf]
        %v1263 = vld [vmem:[%s5 + $0xdc] sm:$0xf]
        %v1264 = vld [vmem:[%s5 + $0xe0] sm:$0xf]
        %v1265 = vld [vmem:[%s5 + $0xe4] sm:$0xf]
        %v1266 = vld [vmem:[%s5 + $0xe8] sm:$0xf]
        %v1267 = vld [vmem:[%s5 + $0xec] sm:$0xf]
        %v1268 = vld [vmem:[%s5 + $0xf0] sm:$0xf]
        %v1269 = vld [vmem:[%s5 + $0xf4] sm:$0xf]
        %v1270 = vld [vmem:[%s5 + $0xf8] sm:$0xf]
        %v1271 = vld [vmem:[%s5 + $0xfc] sm:$0xf]
        %v1272 = vld [vmem:[%s5 + $0x100] sm:$0xf]
        %v1273 = vld [vmem:[%s5 + $0x104] sm:$0xf]
        %v1274 = vld [vmem:[%s5 + $0x108] sm:$0xf]
        %v1275 = vld [vmem:[%s5 + $0x10c] sm:$0xf]
        %v1276 = vld [vmem:[%s5 + $0x110] sm:$0xf]
        %v1277 = vld [vmem:[%s5 + $0x114] sm:$0xf]
        %v1278 = vld [vmem:[%s5 + $0x118] sm:$0xf]
        %v1279 = vld [vmem:[%s5 + $0x11c] sm:$0xf]
        %v1280 = vld [vmem:[%s5 + $0x120] sm:$0xf]
        %v1281 = vld [vmem:[%s5 + $0x124] sm:$0xf]
        %v1282 = vld [vmem:[%s5 + $0x128] sm:$0xf]
        %v1283 = vld [vmem:[%s5 + $0x12c] sm:$0xf]
        %v1284 = vld [vmem:[%s5 + $0x130] sm:$0xf]
        %v1285 = vld [vmem:[%s5 + $0x134] sm:$0xf]
        %v1286 = vld [vmem:[%s5 + $0x138] sm:$0xf]
        %v1287 = vld [vmem:[%s5 + $0x13c] sm:$0xf]
        %s1288 = scalar_lea.vmem [#allocation4], 1
        %v1289 = vld [vmem:[%s1288] ss:$8 sm:$0xf]
        %v1290 = vld [vmem:[%s1288] ss:$8 sm:$0x10]
        %v1291 = vor.u32 %v1289, %v1290
        %s1292 = scalar_lea.vmem [#allocation4], 41
        %v1293 = vld [vmem:[%s1292] ss:$8 sm:$0xf]
        %v1294 = vld [vmem:[%s1292] ss:$8 sm:$0x10]
        %v1295 = vor.u32 %v1293, %v1294
        %v1298 = vperm.slane %v1291, 0
        %v1299 = vperm.slane %v1291, 1
        %v1300 = vperm.slane %v1291, 2
        %v1301 = vperm.slane %v1291, 3
        %v1302 = vperm.slane %v1291, 4
        %v1303 = vperm.slane %v1295, 0
        %v1304 = vperm.slane %v1295, 1
        %v1305 = vperm.slane %v1295, 2
        %v1306 = vperm.slane %v1295, 3
        %v1307 = vperm.slane %v1295, 4
        %v1318 = vpack.c.bf16 %v1298, %v1298
        %v1319 = vpack.c.bf16 %v1299, %v1299
        %v1320 = vpack.c.bf16 %v1300, %v1300
        %v1321 = vpack.c.bf16 %v1301, %v1301
        %v1322 = vpack.c.bf16 %v1302, %v1302
        %v1323 = vpack.c.bf16 %v1303, %v1303
        %v1324 = vpack.c.bf16 %v1304, %v1304
        %v1325 = vpack.c.bf16 %v1305, %v1305
        %v1326 = vpack.c.bf16 %v1306, %v1306
        %v1327 = vpack.c.bf16 %v1307, %v1307
        %s1328 = scalar_lea.vmem %s5, 320
        %v1329 = vld [vmem:[%s1328] sm:$0xf]
        %v1330 = vld [vmem:[%s1328 + $0x4] sm:$0xf]
        %v1331 = vld [vmem:[%s1328 + $0x8] sm:$0xf]
        %v1332 = vld [vmem:[%s1328 + $0xc] sm:$0xf]
        %v1333 = vld [vmem:[%s1328 + $0x10] sm:$0xf]
        %v1334 = vld [vmem:[%s1328 + $0x14] sm:$0xf]
        %v1335 = vld [vmem:[%s1328 + $0x18] sm:$0xf]
        %v1336 = vld [vmem:[%s1328 + $0x1c] sm:$0xf]
        %v1337 = vld [vmem:[%s1328 + $0x20] sm:$0xf]
        %v1338 = vld [vmem:[%s1328 + $0x24] sm:$0xf]
        %v1339 = vld [vmem:[%s1328 + $0x28] sm:$0xf]
        %v1340 = vld [vmem:[%s1328 + $0x2c] sm:$0xf]
        %v1341 = vld [vmem:[%s1328 + $0x30] sm:$0xf]
        %v1342 = vld [vmem:[%s1328 + $0x34] sm:$0xf]
        %v1343 = vld [vmem:[%s1328 + $0x38] sm:$0xf]
        %v1344 = vld [vmem:[%s1328 + $0x3c] sm:$0xf]
        %v1345 = vld [vmem:[%s1328 + $0x40] sm:$0xf]
        %v1346 = vld [vmem:[%s1328 + $0x44] sm:$0xf]
        %v1347 = vld [vmem:[%s1328 + $0x48] sm:$0xf]
        %v1348 = vld [vmem:[%s1328 + $0x4c] sm:$0xf]
        %v1349 = vld [vmem:[%s1328 + $0x50] sm:$0xf]
        %v1350 = vld [vmem:[%s1328 + $0x54] sm:$0xf]
        %v1351 = vld [vmem:[%s1328 + $0x58] sm:$0xf]
        %v1352 = vld [vmem:[%s1328 + $0x5c] sm:$0xf]
        %v1353 = vld [vmem:[%s1328 + $0x60] sm:$0xf]
        %v1354 = vld [vmem:[%s1328 + $0x64] sm:$0xf]
        %v1355 = vld [vmem:[%s1328 + $0x68] sm:$0xf]
        %v1356 = vld [vmem:[%s1328 + $0x6c] sm:$0xf]
        %v1357 = vld [vmem:[%s1328 + $0x70] sm:$0xf]
        %v1358 = vld [vmem:[%s1328 + $0x74] sm:$0xf]
        %v1359 = vld [vmem:[%s1328 + $0x78] sm:$0xf]
        %v1360 = vld [vmem:[%s1328 + $0x7c] sm:$0xf]
        %v1361 = vld [vmem:[%s1328 + $0x80] sm:$0xf]
        %v1362 = vld [vmem:[%s1328 + $0x84] sm:$0xf]
        %v1363 = vld [vmem:[%s1328 + $0x88] sm:$0xf]
        %v1364 = vld [vmem:[%s1328 + $0x8c] sm:$0xf]
        %v1365 = vld [vmem:[%s1328 + $0x90] sm:$0xf]
        %v1366 = vld [vmem:[%s1328 + $0x94] sm:$0xf]
        %v1367 = vld [vmem:[%s1328 + $0x98] sm:$0xf]
        %v1368 = vld [vmem:[%s1328 + $0x9c] sm:$0xf]
        %v1369 = vld [vmem:[%s1328 + $0xa0] sm:$0xf]
        %v1370 = vld [vmem:[%s1328 + $0xa4] sm:$0xf]
        %v1371 = vld [vmem:[%s1328 + $0xa8] sm:$0xf]
        %v1372 = vld [vmem:[%s1328 + $0xac] sm:$0xf]
        %v1373 = vld [vmem:[%s1328 + $0xb0] sm:$0xf]
        %v1374 = vld [vmem:[%s1328 + $0xb4] sm:$0xf]
        %v1375 = vld [vmem:[%s1328 + $0xb8] sm:$0xf]
        %v1376 = vld [vmem:[%s1328 + $0xbc] sm:$0xf]
        %v1377 = vld [vmem:[%s1328 + $0xc0] sm:$0xf]
        %v1378 = vld [vmem:[%s1328 + $0xc4] sm:$0xf]
        %v1379 = vld [vmem:[%s1328 + $0xc8] sm:$0xf]
        %v1380 = vld [vmem:[%s1328 + $0xcc] sm:$0xf]
        %v1381 = vld [vmem:[%s1328 + $0xd0] sm:$0xf]
        %v1382 = vld [vmem:[%s1328 + $0xd4] sm:$0xf]
        %v1383 = vld [vmem:[%s1328 + $0xd8] sm:$0xf]
        %v1384 = vld [vmem:[%s1328 + $0xdc] sm:$0xf]
        %v1385 = vld [vmem:[%s1328 + $0xe0] sm:$0xf]
        %v1386 = vld [vmem:[%s1328 + $0xe4] sm:$0xf]
        %v1387 = vld [vmem:[%s1328 + $0xe8] sm:$0xf]
        %v1388 = vld [vmem:[%s1328 + $0xec] sm:$0xf]
        %v1389 = vld [vmem:[%s1328 + $0xf0] sm:$0xf]
        %v1390 = vld [vmem:[%s1328 + $0xf4] sm:$0xf]
        %v1391 = vld [vmem:[%s1328 + $0xf8] sm:$0xf]
        %v1392 = vld [vmem:[%s1328 + $0xfc] sm:$0xf]
        %v1393 = vld [vmem:[%s1328 + $0x100] sm:$0xf]
        %v1394 = vld [vmem:[%s1328 + $0x104] sm:$0xf]
        %v1395 = vld [vmem:[%s1328 + $0x108] sm:$0xf]
        %v1396 = vld [vmem:[%s1328 + $0x10c] sm:$0xf]
        %v1397 = vld [vmem:[%s1328 + $0x110] sm:$0xf]
        %v1398 = vld [vmem:[%s1328 + $0x114] sm:$0xf]
        %v1399 = vld [vmem:[%s1328 + $0x118] sm:$0xf]
        %v1400 = vld [vmem:[%s1328 + $0x11c] sm:$0xf]
        %v1401 = vld [vmem:[%s1328 + $0x120] sm:$0xf]
        %v1402 = vld [vmem:[%s1328 + $0x124] sm:$0xf]
        %v1403 = vld [vmem:[%s1328 + $0x128] sm:$0xf]
        %v1404 = vld [vmem:[%s1328 + $0x12c] sm:$0xf]
        %v1405 = vld [vmem:[%s1328 + $0x130] sm:$0xf]
        %v1406 = vld [vmem:[%s1328 + $0x134] sm:$0xf]
        %v1407 = vld [vmem:[%s1328 + $0x138] sm:$0xf]
        %v1408 = vld [vmem:[%s1328 + $0x13c] sm:$0xf]
        %v1419 = vunpack.c.l.b16 %v1318
        %v1420 = vunpack.c.l.b16 %v1319
        %v1421 = vunpack.c.l.b16 %v1320
        %v1422 = vunpack.c.l.b16 %v1321
        %v1423 = vunpack.c.l.b16 %v1322
        %v1424 = vunpack.c.l.b16 %v1323
        %v1425 = vunpack.c.l.b16 %v1324
        %v1426 = vunpack.c.l.b16 %v1325
        %v1427 = vunpack.c.l.b16 %v1326
        %v1428 = vunpack.c.l.b16 %v1327
        %v1429 = vrot.slane %v1424, 7
        %vm1430 = vcmask 1041409
        %v1431 = vsel %vm1430, %v1429, %v1419
        %v1432 = vrot.slane %v1425, 7
        %v1433 = vsel %vm1430, %v1432, %v1420
        %v1434 = vrot.slane %v1426, 7
        %v1435 = vsel %vm1430, %v1434, %v1421
        %v1436 = vrot.slane %v1427, 7
        %v1437 = vsel %vm1430, %v1436, %v1422
        %v1438 = vrot.slane %v1428, 7
        %v1439 = vsel %vm1430, %v1438, %v1423
        %v1440 = vpack.c.b16 %v1431, %v1431
        %v1441 = vpack.c.b16 %v1433, %v1433
        %v1442 = vpack.c.b16 %v1435, %v1435
        %v1443 = vpack.c.b16 %v1437, %v1437
        %v1444 = vpack.c.b16 %v1439, %v1439
        %v1530 = vunpack.c.l.b16 %v1329
        %v1531 = vunpack.c.l.b16 %v1330
        %v1532 = vunpack.c.l.b16 %v1331
        %v1533 = vunpack.c.l.b16 %v1332
        %v1534 = vunpack.c.l.b16 %v1333
        %v1535 = vunpack.c.l.b16 %v1334
        %v1536 = vunpack.c.l.b16 %v1335
        %v1537 = vunpack.c.l.b16 %v1336
        %v1538 = vunpack.c.l.b16 %v1337
        %v1539 = vunpack.c.l.b16 %v1338
        %v1540 = vunpack.c.l.b16 %v1339
        %v1541 = vunpack.c.l.b16 %v1340
        %v1542 = vunpack.c.l.b16 %v1341
        %v1543 = vunpack.c.l.b16 %v1342
        %v1544 = vunpack.c.l.b16 %v1343
        %v1545 = vunpack.c.l.b16 %v1344
        %v1546 = vunpack.c.l.b16 %v1345
        %v1547 = vunpack.c.l.b16 %v1346
        %v1548 = vunpack.c.l.b16 %v1347
        %v1549 = vunpack.c.l.b16 %v1348
        %v1550 = vunpack.c.l.b16 %v1349
        %v1551 = vunpack.c.l.b16 %v1350
        %v1552 = vunpack.c.l.b16 %v1351
        %v1553 = vunpack.c.l.b16 %v1352
        %v1554 = vunpack.c.l.b16 %v1353
        %v1555 = vunpack.c.l.b16 %v1354
        %v1556 = vunpack.c.l.b16 %v1355
        %v1557 = vunpack.c.l.b16 %v1356
        %v1558 = vunpack.c.l.b16 %v1357
        %v1559 = vunpack.c.l.b16 %v1358
        %v1560 = vunpack.c.l.b16 %v1359
        %v1561 = vunpack.c.l.b16 %v1360
        %v1562 = vunpack.c.l.b16 %v1361
        %v1563 = vunpack.c.l.b16 %v1362
        %v1564 = vunpack.c.l.b16 %v1363
        %v1565 = vunpack.c.l.b16 %v1364
        %v1566 = vunpack.c.l.b16 %v1365
        %v1567 = vunpack.c.l.b16 %v1366
        %v1568 = vunpack.c.l.b16 %v1367
        %v1569 = vunpack.c.l.b16 %v1368
        %v1570 = vunpack.c.l.b16 %v1369
        %v1571 = vunpack.c.l.b16 %v1370
        %v1572 = vunpack.c.l.b16 %v1371
        %v1573 = vunpack.c.l.b16 %v1372
        %v1574 = vunpack.c.l.b16 %v1373
        %v1575 = vunpack.c.l.b16 %v1374
        %v1576 = vunpack.c.l.b16 %v1375
        %v1577 = vunpack.c.l.b16 %v1376
        %v1578 = vunpack.c.l.b16 %v1377
        %v1579 = vunpack.c.l.b16 %v1378
        %v1580 = vunpack.c.l.b16 %v1379
        %v1581 = vunpack.c.l.b16 %v1380
        %v1582 = vunpack.c.l.b16 %v1381
        %v1583 = vunpack.c.l.b16 %v1382
        %v1584 = vunpack.c.l.b16 %v1383
        %v1585 = vunpack.c.l.b16 %v1384
        %v1586 = vunpack.c.l.b16 %v1385
        %v1587 = vunpack.c.l.b16 %v1386
        %v1588 = vunpack.c.l.b16 %v1387
        %v1589 = vunpack.c.l.b16 %v1388
        %v1590 = vunpack.c.l.b16 %v1389
        %v1591 = vunpack.c.l.b16 %v1390
        %v1592 = vunpack.c.l.b16 %v1391
        %v1593 = vunpack.c.l.b16 %v1392
        %v1594 = vunpack.c.l.b16 %v1393
        %v1595 = vunpack.c.l.b16 %v1394
        %v1596 = vunpack.c.l.b16 %v1395
        %v1597 = vunpack.c.l.b16 %v1396
        %v1598 = vunpack.c.l.b16 %v1397
        %v1599 = vunpack.c.l.b16 %v1398
        %v1600 = vunpack.c.l.b16 %v1399
        %v1601 = vunpack.c.l.b16 %v1400
        %v1602 = vunpack.c.l.b16 %v1401
        %v1603 = vunpack.c.l.b16 %v1402
        %v1604 = vunpack.c.l.b16 %v1403
        %v1605 = vunpack.c.l.b16 %v1404
        %v1606 = vunpack.c.l.b16 %v1405
        %v1607 = vunpack.c.l.b16 %v1406
        %v1608 = vunpack.c.l.b16 %v1407
        %v1609 = vunpack.c.l.b16 %v1408
        %v1610 = vpack.c.b16 %v1531, %v1530
        %v1611 = vpack.c.b16 %v1533, %v1532
        %v1612 = vpack.c.b16 %v1535, %v1534
        %v1613 = vpack.c.b16 %v1537, %v1536
        %v1614 = vpack.c.b16 %v1539, %v1538
        %v1615 = vpack.c.b16 %v1541, %v1540
        %v1616 = vpack.c.b16 %v1543, %v1542
        %v1617 = vpack.c.b16 %v1545, %v1544
        %v1618 = vpack.c.b16 %v1547, %v1546
        %v1619 = vpack.c.b16 %v1549, %v1548
        %v1620 = vpack.c.b16 %v1551, %v1550
        %v1621 = vpack.c.b16 %v1553, %v1552
        %v1622 = vpack.c.b16 %v1555, %v1554
        %v1623 = vpack.c.b16 %v1557, %v1556
        %v1624 = vpack.c.b16 %v1559, %v1558
        %v1625 = vpack.c.b16 %v1561, %v1560
        %v1626 = vpack.c.b16 %v1563, %v1562
        %v1627 = vpack.c.b16 %v1565, %v1564
        %v1628 = vpack.c.b16 %v1567, %v1566
        %v1629 = vpack.c.b16 %v1569, %v1568
        %v1630 = vpack.c.b16 %v1571, %v1570
        %v1631 = vpack.c.b16 %v1573, %v1572
        %v1632 = vpack.c.b16 %v1575, %v1574
        %v1633 = vpack.c.b16 %v1577, %v1576
        %v1634 = vpack.c.b16 %v1579, %v1578
        %v1635 = vpack.c.b16 %v1581, %v1580
        %v1636 = vpack.c.b16 %v1583, %v1582
        %v1637 = vpack.c.b16 %v1585, %v1584
        %v1638 = vpack.c.b16 %v1587, %v1586
        %v1639 = vpack.c.b16 %v1589, %v1588
        %v1640 = vpack.c.b16 %v1591, %v1590
        %v1641 = vpack.c.b16 %v1593, %v1592
        %v1642 = vpack.c.b16 %v1595, %v1594
        %v1643 = vpack.c.b16 %v1597, %v1596
        %v1644 = vpack.c.b16 %v1599, %v1598
        %v1645 = vpack.c.b16 %v1601, %v1600
        %v1646 = vpack.c.b16 %v1603, %v1602
        %v1647 = vpack.c.b16 %v1605, %v1604
        %v1648 = vpack.c.b16 %v1607, %v1606
        %v1649 = vpack.c.b16 %v1609, %v1608
        %1690 = vmatpush.bf16.msra.mxu0 %v1617
        %1691 = vmatpush.bf16.msra.mxu0 %v1616
        %1692 = vmatpush.bf16.msra.mxu0 %v1615
        %1693 = vmatpush.bf16.msra.mxu0 %v1614
        %1694 = vmatpush.bf16.msra.mxu0 %v1613
        %1695 = vmatpush.bf16.msra.mxu0 %v1612
        %1696 = vmatpush.bf16.msra.mxu0 %v1611
        %1697 = vmatpush.bf16.msra.mxu0 %v1610
        %1698 = vmatmul.bf16.gmra.mxu0 %v1440
        %v1699 = vpop.f32.mrf.mxu0
        %v1700 = vadd.f32 0.0, %v1699
        %v1701 = vpop.f32.mrf.mxu0
        %1702 = vdwg.mxu0
        %1703 = vmatpush.bf16.msra.mxu0 %v1625
        %1704 = vmatpush.bf16.msra.mxu0 %v1624
        %1705 = vmatpush.bf16.msra.mxu0 %v1623
        %1706 = vmatpush.bf16.msra.mxu0 %v1622
        %1707 = vmatpush.bf16.msra.mxu0 %v1621
        %1708 = vmatpush.bf16.msra.mxu0 %v1620
        %1709 = vmatpush.bf16.msra.mxu0 %v1619
        %1710 = vmatpush.bf16.msra.mxu0 %v1618
        %1711 = vmatmul.bf16.gmra.mxu0 %v1441
        %v1712 = vpop.f32.mrf.mxu0
        %v1713 = vadd.f32 %v1700, %v1712
        %v1714 = vpop.f32.mrf.mxu0
        %1715 = vdwg.mxu0
        %1716 = vmatpush.bf16.msra.mxu0 %v1633
        %1717 = vmatpush.bf16.msra.mxu0 %v1632
        %1718 = vmatpush.bf16.msra.mxu0 %v1631
        %1719 = vmatpush.bf16.msra.mxu0 %v1630
        %1720 = vmatpush.bf16.msra.mxu0 %v1629
        %1721 = vmatpush.bf16.msra.mxu0 %v1628
        %1722 = vmatpush.bf16.msra.mxu0 %v1627
        %1723 = vmatpush.bf16.msra.mxu0 %v1626
        %1724 = vmatmul.bf16.gmra.mxu0 %v1442
        %v1725 = vpop.f32.mrf.mxu0
        %v1726 = vadd.f32 %v1713, %v1725
        %v1727 = vpop.f32.mrf.mxu0
        %1728 = vdwg.mxu0
        %1729 = vmatpush.bf16.msra.mxu0 %v1641
        %1730 = vmatpush.bf16.msra.mxu0 %v1640
        %1731 = vmatpush.bf16.msra.mxu0 %v1639
        %1732 = vmatpush.bf16.msra.mxu0 %v1638
        %1733 = vmatpush.bf16.msra.mxu0 %v1637
        %1734 = vmatpush.bf16.msra.mxu0 %v1636
        %1735 = vmatpush.bf16.msra.mxu0 %v1635
        %1736 = vmatpush.bf16.msra.mxu0 %v1634
        %1737 = vmatmul.bf16.gmra.mxu0 %v1443
        %v1738 = vpop.f32.mrf.mxu0
        %v1739 = vadd.f32 %v1726, %v1738
        %v1740 = vpop.f32.mrf.mxu0
        %1741 = vdwg.mxu0
        %1742 = vmatpush.bf16.msra.mxu0 %v1649
        %1743 = vmatpush.bf16.msra.mxu0 %v1648
        %1744 = vmatpush.bf16.msra.mxu0 %v1647
        %1745 = vmatpush.bf16.msra.mxu0 %v1646
        %1746 = vmatpush.bf16.msra.mxu0 %v1645
        %1747 = vmatpush.bf16.msra.mxu0 %v1644
        %1748 = vmatpush.bf16.msra.mxu0 %v1643
        %1749 = vmatpush.bf16.msra.mxu0 %v1642
        %1750 = vmatmul.bf16.gmra.mxu0 %v1444
        %v1751 = vpop.f32.mrf.mxu0
        %v1752 = vadd.f32 %v1739, %v1751
        %v1753 = vpop.f32.mrf.mxu0
        %1754 = vdwg.mxu0
        %v1765 = vunpack.c.l.b16 %v1198
        %v1766 = vunpack.c.l.b16 %v1199
        %v1767 = vunpack.c.l.b16 %v1200
        %v1768 = vunpack.c.l.b16 %v1201
        %v1769 = vunpack.c.l.b16 %v1202
        %v1770 = vunpack.c.l.b16 %v1203
        %v1771 = vunpack.c.l.b16 %v1204
        %v1772 = vunpack.c.l.b16 %v1205
        %v1773 = vunpack.c.l.b16 %v1206
        %v1774 = vunpack.c.l.b16 %v1207
        %v1775 = vrot.slane %v1770, 7
        %v1776 = vsel %vm1430, %v1775, %v1765
        %v1777 = vrot.slane %v1771, 7
        %v1778 = vsel %vm1430, %v1777, %v1766
        %v1779 = vrot.slane %v1772, 7
        %v1780 = vsel %vm1430, %v1779, %v1767
        %v1781 = vrot.slane %v1773, 7
        %v1782 = vsel %vm1430, %v1781, %v1768
        %v1783 = vrot.slane %v1774, 7
        %v1784 = vsel %vm1430, %v1783, %v1769
        %v1785 = vpack.c.b16 %v1776, %v1776
        %v1786 = vpack.c.b16 %v1778, %v1778
        %v1787 = vpack.c.b16 %v1780, %v1780
        %v1788 = vpack.c.b16 %v1782, %v1782
        %v1789 = vpack.c.b16 %v1784, %v1784
        %v1875 = vunpack.c.l.b16 %v1208
        %v1876 = vunpack.c.l.b16 %v1209
        %v1877 = vunpack.c.l.b16 %v1210
        %v1878 = vunpack.c.l.b16 %v1211
        %v1879 = vunpack.c.l.b16 %v1212
        %v1880 = vunpack.c.l.b16 %v1213
        %v1881 = vunpack.c.l.b16 %v1214
        %v1882 = vunpack.c.l.b16 %v1215
        %v1883 = vunpack.c.l.b16 %v1216
        %v1884 = vunpack.c.l.b16 %v1217
        %v1885 = vunpack.c.l.b16 %v1218
        %v1886 = vunpack.c.l.b16 %v1219
        %v1887 = vunpack.c.l.b16 %v1220
        %v1888 = vunpack.c.l.b16 %v1221
        %v1889 = vunpack.c.l.b16 %v1222
        %v1890 = vunpack.c.l.b16 %v1223
        %v1891 = vunpack.c.l.b16 %v1224
        %v1892 = vunpack.c.l.b16 %v1225
        %v1893 = vunpack.c.l.b16 %v1226
        %v1894 = vunpack.c.l.b16 %v1227
        %v1895 = vunpack.c.l.b16 %v1228
        %v1896 = vunpack.c.l.b16 %v1229
        %v1897 = vunpack.c.l.b16 %v1230
        %v1898 = vunpack.c.l.b16 %v1231
        %v1899 = vunpack.c.l.b16 %v1232
        %v1900 = vunpack.c.l.b16 %v1233
        %v1901 = vunpack.c.l.b16 %v1234
        %v1902 = vunpack.c.l.b16 %v1235
        %v1903 = vunpack.c.l.b16 %v1236
        %v1904 = vunpack.c.l.b16 %v1237
        %v1905 = vunpack.c.l.b16 %v1238
        %v1906 = vunpack.c.l.b16 %v1239
        %v1907 = vunpack.c.l.b16 %v1240
        %v1908 = vunpack.c.l.b16 %v1241
        %v1909 = vunpack.c.l.b16 %v1242
        %v1910 = vunpack.c.l.b16 %v1243
        %v1911 = vunpack.c.l.b16 %v1244
        %v1912 = vunpack.c.l.b16 %v1245
        %v1913 = vunpack.c.l.b16 %v1246
        %v1914 = vunpack.c.l.b16 %v1247
        %v1915 = vunpack.c.l.b16 %v1248
        %v1916 = vunpack.c.l.b16 %v1249
        %v1917 = vunpack.c.l.b16 %v1250
        %v1918 = vunpack.c.l.b16 %v1251
        %v1919 = vunpack.c.l.b16 %v1252
        %v1920 = vunpack.c.l.b16 %v1253
        %v1921 = vunpack.c.l.b16 %v1254
        %v1922 = vunpack.c.l.b16 %v1255
        %v1923 = vunpack.c.l.b16 %v1256
        %v1924 = vunpack.c.l.b16 %v1257
        %v1925 = vunpack.c.l.b16 %v1258
        %v1926 = vunpack.c.l.b16 %v1259
        %v1927 = vunpack.c.l.b16 %v1260
        %v1928 = vunpack.c.l.b16 %v1261
        %v1929 = vunpack.c.l.b16 %v1262
        %v1930 = vunpack.c.l.b16 %v1263
        %v1931 = vunpack.c.l.b16 %v1264
        %v1932 = vunpack.c.l.b16 %v1265
        %v1933 = vunpack.c.l.b16 %v1266
        %v1934 = vunpack.c.l.b16 %v1267
        %v1935 = vunpack.c.l.b16 %v1268
        %v1936 = vunpack.c.l.b16 %v1269
        %v1937 = vunpack.c.l.b16 %v1270
        %v1938 = vunpack.c.l.b16 %v1271
        %v1939 = vunpack.c.l.b16 %v1272
        %v1940 = vunpack.c.l.b16 %v1273
        %v1941 = vunpack.c.l.b16 %v1274
        %v1942 = vunpack.c.l.b16 %v1275
        %v1943 = vunpack.c.l.b16 %v1276
        %v1944 = vunpack.c.l.b16 %v1277
        %v1945 = vunpack.c.l.b16 %v1278
        %v1946 = vunpack.c.l.b16 %v1279
        %v1947 = vunpack.c.l.b16 %v1280
        %v1948 = vunpack.c.l.b16 %v1281
        %v1949 = vunpack.c.l.b16 %v1282
        %v1950 = vunpack.c.l.b16 %v1283
        %v1951 = vunpack.c.l.b16 %v1284
        %v1952 = vunpack.c.l.b16 %v1285
        %v1953 = vunpack.c.l.b16 %v1286
        %v1954 = vunpack.c.l.b16 %v1287
        %v1955 = vpack.c.b16 %v1876, %v1875
        %v1956 = vpack.c.b16 %v1878, %v1877
        %v1957 = vpack.c.b16 %v1880, %v1879
        %v1958 = vpack.c.b16 %v1882, %v1881
        %v1959 = vpack.c.b16 %v1884, %v1883
        %v1960 = vpack.c.b16 %v1886, %v1885
        %v1961 = vpack.c.b16 %v1888, %v1887
        %v1962 = vpack.c.b16 %v1890, %v1889
        %v1963 = vpack.c.b16 %v1892, %v1891
        %v1964 = vpack.c.b16 %v1894, %v1893
        %v1965 = vpack.c.b16 %v1896, %v1895
        %v1966 = vpack.c.b16 %v1898, %v1897
        %v1967 = vpack.c.b16 %v1900, %v1899
        %v1968 = vpack.c.b16 %v1902, %v1901
        %v1969 = vpack.c.b16 %v1904, %v1903
        %v1970 = vpack.c.b16 %v1906, %v1905
        %v1971 = vpack.c.b16 %v1908, %v1907
        %v1972 = vpack.c.b16 %v1910, %v1909
        %v1973 = vpack.c.b16 %v1912, %v1911
        %v1974 = vpack.c.b16 %v1914, %v1913
        %v1975 = vpack.c.b16 %v1916, %v1915
        %v1976 = vpack.c.b16 %v1918, %v1917
        %v1977 = vpack.c.b16 %v1920, %v1919
        %v1978 = vpack.c.b16 %v1922, %v1921
        %v1979 = vpack.c.b16 %v1924, %v1923
        %v1980 = vpack.c.b16 %v1926, %v1925
        %v1981 = vpack.c.b16 %v1928, %v1927
        %v1982 = vpack.c.b16 %v1930, %v1929
        %v1983 = vpack.c.b16 %v1932, %v1931
        %v1984 = vpack.c.b16 %v1934, %v1933
        %v1985 = vpack.c.b16 %v1936, %v1935
        %v1986 = vpack.c.b16 %v1938, %v1937
        %v1987 = vpack.c.b16 %v1940, %v1939
        %v1988 = vpack.c.b16 %v1942, %v1941
        %v1989 = vpack.c.b16 %v1944, %v1943
        %v1990 = vpack.c.b16 %v1946, %v1945
        %v1991 = vpack.c.b16 %v1948, %v1947
        %v1992 = vpack.c.b16 %v1950, %v1949
        %v1993 = vpack.c.b16 %v1952, %v1951
        %v1994 = vpack.c.b16 %v1954, %v1953
        %2035 = vmatpush.bf16.msra.mxu0 %v1962
        %2036 = vmatpush.bf16.msra.mxu0 %v1961
        %2037 = vmatpush.bf16.msra.mxu0 %v1960
        %2038 = vmatpush.bf16.msra.mxu0 %v1959
        %2039 = vmatpush.bf16.msra.mxu0 %v1958
        %2040 = vmatpush.bf16.msra.mxu0 %v1957
        %2041 = vmatpush.bf16.msra.mxu0 %v1956
        %2042 = vmatpush.bf16.msra.mxu0 %v1955
        %2043 = vmatmul.bf16.gmra.mxu0 %v1785
        %v2044 = vpop.f32.mrf.mxu0
        %v2045 = vadd.f32 %v1752, %v2044
        %v2046 = vpop.f32.mrf.mxu0
        %2047 = vdwg.mxu0
        %2048 = vmatpush.bf16.msra.mxu0 %v1970
        %2049 = vmatpush.bf16.msra.mxu0 %v1969
        %2050 = vmatpush.bf16.msra.mxu0 %v1968
        %2051 = vmatpush.bf16.msra.mxu0 %v1967
        %2052 = vmatpush.bf16.msra.mxu0 %v1966
        %2053 = vmatpush.bf16.msra.mxu0 %v1965
        %2054 = vmatpush.bf16.msra.mxu0 %v1964
        %2055 = vmatpush.bf16.msra.mxu0 %v1963
        %2056 = vmatmul.bf16.gmra.mxu0 %v1786
        %v2057 = vpop.f32.mrf.mxu0
        %v2058 = vadd.f32 %v2045, %v2057
        %v2059 = vpop.f32.mrf.mxu0
        %2060 = vdwg.mxu0
        %2061 = vmatpush.bf16.msra.mxu0 %v1978
        %2062 = vmatpush.bf16.msra.mxu0 %v1977
        %2063 = vmatpush.bf16.msra.mxu0 %v1976
        %2064 = vmatpush.bf16.msra.mxu0 %v1975
        %2065 = vmatpush.bf16.msra.mxu0 %v1974
        %2066 = vmatpush.bf16.msra.mxu0 %v1973
        %2067 = vmatpush.bf16.msra.mxu0 %v1972
        %2068 = vmatpush.bf16.msra.mxu0 %v1971
        %2069 = vmatmul.bf16.gmra.mxu0 %v1787
        %v2070 = vpop.f32.mrf.mxu0
        %v2071 = vadd.f32 %v2058, %v2070
        %v2072 = vpop.f32.mrf.mxu0
        %2073 = vdwg.mxu0
        %2074 = vmatpush.bf16.msra.mxu0 %v1986
        %2075 = vmatpush.bf16.msra.mxu0 %v1985
        %2076 = vmatpush.bf16.msra.mxu0 %v1984
        %2077 = vmatpush.bf16.msra.mxu0 %v1983
        %2078 = vmatpush.bf16.msra.mxu0 %v1982
        %2079 = vmatpush.bf16.msra.mxu0 %v1981
        %2080 = vmatpush.bf16.msra.mxu0 %v1980
        %2081 = vmatpush.bf16.msra.mxu0 %v1979
        %2082 = vmatmul.bf16.gmra.mxu0 %v1788
        %v2083 = vpop.f32.mrf.mxu0
        %v2084 = vadd.f32 %v2071, %v2083
        %v2085 = vpop.f32.mrf.mxu0
        %2086 = vdwg.mxu0
        %2087 = vmatpush.bf16.msra.mxu0 %v1994
        %2088 = vmatpush.bf16.msra.mxu0 %v1993
        %2089 = vmatpush.bf16.msra.mxu0 %v1992
        %2090 = vmatpush.bf16.msra.mxu0 %v1991
        %2091 = vmatpush.bf16.msra.mxu0 %v1990
        %2092 = vmatpush.bf16.msra.mxu0 %v1989
        %2093 = vmatpush.bf16.msra.mxu0 %v1988
        %2094 = vmatpush.bf16.msra.mxu0 %v1987
        %2095 = vmatmul.bf16.gmra.mxu0 %v1789
        %v2096 = vpop.f32.mrf.mxu0
        %v2097 = vadd.f32 %v2084, %v2096
        %v2098 = vpop.f32.mrf.mxu0
        %2099 = vdwg.mxu0
        %s2100 = scalar_lea.vmem [#allocation4], 2
        %v2101 = vld [vmem:[%s2100] ss:$8 sm:$0xf]
        %v2102 = vld [vmem:[%s2100] ss:$8 sm:$0x10]
        %v2103 = vor.u32 %v2101, %v2102
        %s2104 = scalar_lea.vmem [#allocation4], 42
        %v2105 = vld [vmem:[%s2104] ss:$8 sm:$0xf]
        %v2106 = vld [vmem:[%s2104] ss:$8 sm:$0x10]
        %v2107 = vor.u32 %v2105, %v2106
        %v2110 = vperm.slane %v2103, 0
        %v2111 = vperm.slane %v2103, 1
        %v2112 = vperm.slane %v2103, 2
        %v2113 = vperm.slane %v2103, 3
        %v2114 = vperm.slane %v2103, 4
        %v2115 = vperm.slane %v2107, 0
        %v2116 = vperm.slane %v2107, 1
        %v2117 = vperm.slane %v2107, 2
        %v2118 = vperm.slane %v2107, 3
        %v2119 = vperm.slane %v2107, 4
        %v2130 = vpack.c.bf16 %v2110, %v2110
        %v2131 = vpack.c.bf16 %v2111, %v2111
        %v2132 = vpack.c.bf16 %v2112, %v2112
        %v2133 = vpack.c.bf16 %v2113, %v2113
        %v2134 = vpack.c.bf16 %v2114, %v2114
        %v2135 = vpack.c.bf16 %v2115, %v2115
        %v2136 = vpack.c.bf16 %v2116, %v2116
        %v2137 = vpack.c.bf16 %v2117, %v2117
        %v2138 = vpack.c.bf16 %v2118, %v2118
        %v2139 = vpack.c.bf16 %v2119, %v2119
        %s2140 = scalar_lea.vmem %s5, 640
        %v2141 = vld [vmem:[%s2140] sm:$0xf]
        %v2142 = vld [vmem:[%s2140 + $0x4] sm:$0xf]
        %v2143 = vld [vmem:[%s2140 + $0x8] sm:$0xf]
        %v2144 = vld [vmem:[%s2140 + $0xc] sm:$0xf]
        %v2145 = vld [vmem:[%s2140 + $0x10] sm:$0xf]
        %v2146 = vld [vmem:[%s2140 + $0x14] sm:$0xf]
        %v2147 = vld [vmem:[%s2140 + $0x18] sm:$0xf]
        %v2148 = vld [vmem:[%s2140 + $0x1c] sm:$0xf]
        %v2149 = vld [vmem:[%s2140 + $0x20] sm:$0xf]
        %v2150 = vld [vmem:[%s2140 + $0x24] sm:$0xf]
        %v2151 = vld [vmem:[%s2140 + $0x28] sm:$0xf]
        %v2152 = vld [vmem:[%s2140 + $0x2c] sm:$0xf]
        %v2153 = vld [vmem:[%s2140 + $0x30] sm:$0xf]
        %v2154 = vld [vmem:[%s2140 + $0x34] sm:$0xf]
        %v2155 = vld [vmem:[%s2140 + $0x38] sm:$0xf]
        %v2156 = vld [vmem:[%s2140 + $0x3c] sm:$0xf]
        %v2157 = vld [vmem:[%s2140 + $0x40] sm:$0xf]
        %v2158 = vld [vmem:[%s2140 + $0x44] sm:$0xf]
        %v2159 = vld [vmem:[%s2140 + $0x48] sm:$0xf]
        %v2160 = vld [vmem:[%s2140 + $0x4c] sm:$0xf]
        %v2161 = vld [vmem:[%s2140 + $0x50] sm:$0xf]
        %v2162 = vld [vmem:[%s2140 + $0x54] sm:$0xf]
        %v2163 = vld [vmem:[%s2140 + $0x58] sm:$0xf]
        %v2164 = vld [vmem:[%s2140 + $0x5c] sm:$0xf]
        %v2165 = vld [vmem:[%s2140 + $0x60] sm:$0xf]
        %v2166 = vld [vmem:[%s2140 + $0x64] sm:$0xf]
        %v2167 = vld [vmem:[%s2140 + $0x68] sm:$0xf]
        %v2168 = vld [vmem:[%s2140 + $0x6c] sm:$0xf]
        %v2169 = vld [vmem:[%s2140 + $0x70] sm:$0xf]
        %v2170 = vld [vmem:[%s2140 + $0x74] sm:$0xf]
        %v2171 = vld [vmem:[%s2140 + $0x78] sm:$0xf]
        %v2172 = vld [vmem:[%s2140 + $0x7c] sm:$0xf]
        %v2173 = vld [vmem:[%s2140 + $0x80] sm:$0xf]
        %v2174 = vld [vmem:[%s2140 + $0x84] sm:$0xf]
        %v2175 = vld [vmem:[%s2140 + $0x88] sm:$0xf]
        %v2176 = vld [vmem:[%s2140 + $0x8c] sm:$0xf]
        %v2177 = vld [vmem:[%s2140 + $0x90] sm:$0xf]
        %v2178 = vld [vmem:[%s2140 + $0x94] sm:$0xf]
        %v2179 = vld [vmem:[%s2140 + $0x98] sm:$0xf]
        %v2180 = vld [vmem:[%s2140 + $0x9c] sm:$0xf]
        %v2181 = vld [vmem:[%s2140 + $0xa0] sm:$0xf]
        %v2182 = vld [vmem:[%s2140 + $0xa4] sm:$0xf]
        %v2183 = vld [vmem:[%s2140 + $0xa8] sm:$0xf]
        %v2184 = vld [vmem:[%s2140 + $0xac] sm:$0xf]
        %v2185 = vld [vmem:[%s2140 + $0xb0] sm:$0xf]
        %v2186 = vld [vmem:[%s2140 + $0xb4] sm:$0xf]
        %v2187 = vld [vmem:[%s2140 + $0xb8] sm:$0xf]
        %v2188 = vld [vmem:[%s2140 + $0xbc] sm:$0xf]
        %v2189 = vld [vmem:[%s2140 + $0xc0] sm:$0xf]
        %v2190 = vld [vmem:[%s2140 + $0xc4] sm:$0xf]
        %v2191 = vld [vmem:[%s2140 + $0xc8] sm:$0xf]
        %v2192 = vld [vmem:[%s2140 + $0xcc] sm:$0xf]
        %v2193 = vld [vmem:[%s2140 + $0xd0] sm:$0xf]
        %v2194 = vld [vmem:[%s2140 + $0xd4] sm:$0xf]
        %v2195 = vld [vmem:[%s2140 + $0xd8] sm:$0xf]
        %v2196 = vld [vmem:[%s2140 + $0xdc] sm:$0xf]
        %v2197 = vld [vmem:[%s2140 + $0xe0] sm:$0xf]
        %v2198 = vld [vmem:[%s2140 + $0xe4] sm:$0xf]
        %v2199 = vld [vmem:[%s2140 + $0xe8] sm:$0xf]
        %v2200 = vld [vmem:[%s2140 + $0xec] sm:$0xf]
        %v2201 = vld [vmem:[%s2140 + $0xf0] sm:$0xf]
        %v2202 = vld [vmem:[%s2140 + $0xf4] sm:$0xf]
        %v2203 = vld [vmem:[%s2140 + $0xf8] sm:$0xf]
        %v2204 = vld [vmem:[%s2140 + $0xfc] sm:$0xf]
        %v2205 = vld [vmem:[%s2140 + $0x100] sm:$0xf]
        %v2206 = vld [vmem:[%s2140 + $0x104] sm:$0xf]
        %v2207 = vld [vmem:[%s2140 + $0x108] sm:$0xf]
        %v2208 = vld [vmem:[%s2140 + $0x10c] sm:$0xf]
        %v2209 = vld [vmem:[%s2140 + $0x110] sm:$0xf]
        %v2210 = vld [vmem:[%s2140 + $0x114] sm:$0xf]
        %v2211 = vld [vmem:[%s2140 + $0x118] sm:$0xf]
        %v2212 = vld [vmem:[%s2140 + $0x11c] sm:$0xf]
        %v2213 = vld [vmem:[%s2140 + $0x120] sm:$0xf]
        %v2214 = vld [vmem:[%s2140 + $0x124] sm:$0xf]
        %v2215 = vld [vmem:[%s2140 + $0x128] sm:$0xf]
        %v2216 = vld [vmem:[%s2140 + $0x12c] sm:$0xf]
        %v2217 = vld [vmem:[%s2140 + $0x130] sm:$0xf]
        %v2218 = vld [vmem:[%s2140 + $0x134] sm:$0xf]
        %v2219 = vld [vmem:[%s2140 + $0x138] sm:$0xf]
        %v2220 = vld [vmem:[%s2140 + $0x13c] sm:$0xf]
        %v2231 = vunpack.c.l.b16 %v2130
        %v2232 = vunpack.c.l.b16 %v2131
        %v2233 = vunpack.c.l.b16 %v2132
        %v2234 = vunpack.c.l.b16 %v2133
        %v2235 = vunpack.c.l.b16 %v2134
        %v2236 = vunpack.c.l.b16 %v2135
        %v2237 = vunpack.c.l.b16 %v2136
        %v2238 = vunpack.c.l.b16 %v2137
        %v2239 = vunpack.c.l.b16 %v2138
        %v2240 = vunpack.c.l.b16 %v2139
        %v2241 = vrot.slane %v2236, 7
        %v2242 = vsel %vm1430, %v2241, %v2231
        %v2243 = vrot.slane %v2237, 7
        %v2244 = vsel %vm1430, %v2243, %v2232
        %v2245 = vrot.slane %v2238, 7
        %v2246 = vsel %vm1430, %v2245, %v2233
        %v2247 = vrot.slane %v2239, 7
        %v2248 = vsel %vm1430, %v2247, %v2234
        %v2249 = vrot.slane %v2240, 7
        %v2250 = vsel %vm1430, %v2249, %v2235
        %v2251 = vpack.c.b16 %v2242, %v2242
        %v2252 = vpack.c.b16 %v2244, %v2244
        %v2253 = vpack.c.b16 %v2246, %v2246
        %v2254 = vpack.c.b16 %v2248, %v2248
        %v2255 = vpack.c.b16 %v2250, %v2250
        %v2341 = vunpack.c.l.b16 %v2141
        %v2342 = vunpack.c.l.b16 %v2142
        %v2343 = vunpack.c.l.b16 %v2143
        %v2344 = vunpack.c.l.b16 %v2144
        %v2345 = vunpack.c.l.b16 %v2145
        %v2346 = vunpack.c.l.b16 %v2146
        %v2347 = vunpack.c.l.b16 %v2147
        %v2348 = vunpack.c.l.b16 %v2148
        %v2349 = vunpack.c.l.b16 %v2149
        %v2350 = vunpack.c.l.b16 %v2150
        %v2351 = vunpack.c.l.b16 %v2151
        %v2352 = vunpack.c.l.b16 %v2152
        %v2353 = vunpack.c.l.b16 %v2153
        %v2354 = vunpack.c.l.b16 %v2154
        %v2355 = vunpack.c.l.b16 %v2155
        %v2356 = vunpack.c.l.b16 %v2156
        %v2357 = vunpack.c.l.b16 %v2157
        %v2358 = vunpack.c.l.b16 %v2158
        %v2359 = vunpack.c.l.b16 %v2159
        %v2360 = vunpack.c.l.b16 %v2160
        %v2361 = vunpack.c.l.b16 %v2161
        %v2362 = vunpack.c.l.b16 %v2162
        %v2363 = vunpack.c.l.b16 %v2163
        %v2364 = vunpack.c.l.b16 %v2164
        %v2365 = vunpack.c.l.b16 %v2165
        %v2366 = vunpack.c.l.b16 %v2166
        %v2367 = vunpack.c.l.b16 %v2167
        %v2368 = vunpack.c.l.b16 %v2168
        %v2369 = vunpack.c.l.b16 %v2169
        %v2370 = vunpack.c.l.b16 %v2170
        %v2371 = vunpack.c.l.b16 %v2171
        %v2372 = vunpack.c.l.b16 %v2172
        %v2373 = vunpack.c.l.b16 %v2173
        %v2374 = vunpack.c.l.b16 %v2174
        %v2375 = vunpack.c.l.b16 %v2175
        %v2376 = vunpack.c.l.b16 %v2176
        %v2377 = vunpack.c.l.b16 %v2177
        %v2378 = vunpack.c.l.b16 %v2178
        %v2379 = vunpack.c.l.b16 %v2179
        %v2380 = vunpack.c.l.b16 %v2180
        %v2381 = vunpack.c.l.b16 %v2181
        %v2382 = vunpack.c.l.b16 %v2182
        %v2383 = vunpack.c.l.b16 %v2183
        %v2384 = vunpack.c.l.b16 %v2184
        %v2385 = vunpack.c.l.b16 %v2185
        %v2386 = vunpack.c.l.b16 %v2186
        %v2387 = vunpack.c.l.b16 %v2187
        %v2388 = vunpack.c.l.b16 %v2188
        %v2389 = vunpack.c.l.b16 %v2189
        %v2390 = vunpack.c.l.b16 %v2190
        %v2391 = vunpack.c.l.b16 %v2191
        %v2392 = vunpack.c.l.b16 %v2192
        %v2393 = vunpack.c.l.b16 %v2193
        %v2394 = vunpack.c.l.b16 %v2194
        %v2395 = vunpack.c.l.b16 %v2195
        %v2396 = vunpack.c.l.b16 %v2196
        %v2397 = vunpack.c.l.b16 %v2197
        %v2398 = vunpack.c.l.b16 %v2198
        %v2399 = vunpack.c.l.b16 %v2199
        %v2400 = vunpack.c.l.b16 %v2200
        %v2401 = vunpack.c.l.b16 %v2201
        %v2402 = vunpack.c.l.b16 %v2202
        %v2403 = vunpack.c.l.b16 %v2203
        %v2404 = vunpack.c.l.b16 %v2204
        %v2405 = vunpack.c.l.b16 %v2205
        %v2406 = vunpack.c.l.b16 %v2206
        %v2407 = vunpack.c.l.b16 %v2207
        %v2408 = vunpack.c.l.b16 %v2208
        %v2409 = vunpack.c.l.b16 %v2209
        %v2410 = vunpack.c.l.b16 %v2210
        %v2411 = vunpack.c.l.b16 %v2211
        %v2412 = vunpack.c.l.b16 %v2212
        %v2413 = vunpack.c.l.b16 %v2213
        %v2414 = vunpack.c.l.b16 %v2214
        %v2415 = vunpack.c.l.b16 %v2215
        %v2416 = vunpack.c.l.b16 %v2216
        %v2417 = vunpack.c.l.b16 %v2217
        %v2418 = vunpack.c.l.b16 %v2218
        %v2419 = vunpack.c.l.b16 %v2219
        %v2420 = vunpack.c.l.b16 %v2220
        %v2421 = vpack.c.b16 %v2342, %v2341
        %v2422 = vpack.c.b16 %v2344, %v2343
        %v2423 = vpack.c.b16 %v2346, %v2345
        %v2424 = vpack.c.b16 %v2348, %v2347
        %v2425 = vpack.c.b16 %v2350, %v2349
        %v2426 = vpack.c.b16 %v2352, %v2351
        %v2427 = vpack.c.b16 %v2354, %v2353
        %v2428 = vpack.c.b16 %v2356, %v2355
        %v2429 = vpack.c.b16 %v2358, %v2357
        %v2430 = vpack.c.b16 %v2360, %v2359
        %v2431 = vpack.c.b16 %v2362, %v2361
        %v2432 = vpack.c.b16 %v2364, %v2363
        %v2433 = vpack.c.b16 %v2366, %v2365
        %v2434 = vpack.c.b16 %v2368, %v2367
        %v2435 = vpack.c.b16 %v2370, %v2369
        %v2436 = vpack.c.b16 %v2372, %v2371
        %v2437 = vpack.c.b16 %v2374, %v2373
        %v2438 = vpack.c.b16 %v2376, %v2375
        %v2439 = vpack.c.b16 %v2378, %v2377
        %v2440 = vpack.c.b16 %v2380, %v2379
        %v2441 = vpack.c.b16 %v2382, %v2381
        %v2442 = vpack.c.b16 %v2384, %v2383
        %v2443 = vpack.c.b16 %v2386, %v2385
        %v2444 = vpack.c.b16 %v2388, %v2387
        %v2445 = vpack.c.b16 %v2390, %v2389
        %v2446 = vpack.c.b16 %v2392, %v2391
        %v2447 = vpack.c.b16 %v2394, %v2393
        %v2448 = vpack.c.b16 %v2396, %v2395
        %v2449 = vpack.c.b16 %v2398, %v2397
        %v2450 = vpack.c.b16 %v2400, %v2399
        %v2451 = vpack.c.b16 %v2402, %v2401
        %v2452 = vpack.c.b16 %v2404, %v2403
        %v2453 = vpack.c.b16 %v2406, %v2405
        %v2454 = vpack.c.b16 %v2408, %v2407
        %v2455 = vpack.c.b16 %v2410, %v2409
        %v2456 = vpack.c.b16 %v2412, %v2411
        %v2457 = vpack.c.b16 %v2414, %v2413
        %v2458 = vpack.c.b16 %v2416, %v2415
        %v2459 = vpack.c.b16 %v2418, %v2417
        %v2460 = vpack.c.b16 %v2420, %v2419
        %2501 = vmatpush.bf16.msra.mxu0 %v2428
        %2502 = vmatpush.bf16.msra.mxu0 %v2427
        %2503 = vmatpush.bf16.msra.mxu0 %v2426
        %2504 = vmatpush.bf16.msra.mxu0 %v2425
        %2505 = vmatpush.bf16.msra.mxu0 %v2424
        %2506 = vmatpush.bf16.msra.mxu0 %v2423
        %2507 = vmatpush.bf16.msra.mxu0 %v2422
        %2508 = vmatpush.bf16.msra.mxu0 %v2421
        %2509 = vmatmul.bf16.gmra.mxu0 %v2251
        %v2510 = vpop.f32.mrf.mxu0
        %v2511 = vadd.f32 0.0, %v2510
        %v2512 = vpop.f32.mrf.mxu0
        %2513 = vdwg.mxu0
        %2514 = vmatpush.bf16.msra.mxu0 %v2436
        %2515 = vmatpush.bf16.msra.mxu0 %v2435
        %2516 = vmatpush.bf16.msra.mxu0 %v2434
        %2517 = vmatpush.bf16.msra.mxu0 %v2433
        %2518 = vmatpush.bf16.msra.mxu0 %v2432
        %2519 = vmatpush.bf16.msra.mxu0 %v2431
        %2520 = vmatpush.bf16.msra.mxu0 %v2430
        %2521 = vmatpush.bf16.msra.mxu0 %v2429
        %2522 = vmatmul.bf16.gmra.mxu0 %v2252
        %v2523 = vpop.f32.mrf.mxu0
        %v2524 = vadd.f32 %v2511, %v2523
        %v2525 = vpop.f32.mrf.mxu0
        %2526 = vdwg.mxu0
        %2527 = vmatpush.bf16.msra.mxu0 %v2444
        %2528 = vmatpush.bf16.msra.mxu0 %v2443
        %2529 = vmatpush.bf16.msra.mxu0 %v2442
        %2530 = vmatpush.bf16.msra.mxu0 %v2441
        %2531 = vmatpush.bf16.msra.mxu0 %v2440
        %2532 = vmatpush.bf16.msra.mxu0 %v2439
        %2533 = vmatpush.bf16.msra.mxu0 %v2438
        %2534 = vmatpush.bf16.msra.mxu0 %v2437
        %2535 = vmatmul.bf16.gmra.mxu0 %v2253
        %v2536 = vpop.f32.mrf.mxu0
        %v2537 = vadd.f32 %v2524, %v2536
        %v2538 = vpop.f32.mrf.mxu0
        %2539 = vdwg.mxu0
        %2540 = vmatpush.bf16.msra.mxu0 %v2452
        %2541 = vmatpush.bf16.msra.mxu0 %v2451
        %2542 = vmatpush.bf16.msra.mxu0 %v2450
        %2543 = vmatpush.bf16.msra.mxu0 %v2449
        %2544 = vmatpush.bf16.msra.mxu0 %v2448
        %2545 = vmatpush.bf16.msra.mxu0 %v2447
        %2546 = vmatpush.bf16.msra.mxu0 %v2446
        %2547 = vmatpush.bf16.msra.mxu0 %v2445
        %2548 = vmatmul.bf16.gmra.mxu0 %v2254
        %v2549 = vpop.f32.mrf.mxu0
        %v2550 = vadd.f32 %v2537, %v2549
        %v2551 = vpop.f32.mrf.mxu0
        %2552 = vdwg.mxu0
        %2553 = vmatpush.bf16.msra.mxu0 %v2460
        %2554 = vmatpush.bf16.msra.mxu0 %v2459
        %2555 = vmatpush.bf16.msra.mxu0 %v2458
        %2556 = vmatpush.bf16.msra.mxu0 %v2457
        %2557 = vmatpush.bf16.msra.mxu0 %v2456
        %2558 = vmatpush.bf16.msra.mxu0 %v2455
        %2559 = vmatpush.bf16.msra.mxu0 %v2454
        %2560 = vmatpush.bf16.msra.mxu0 %v2453
        %2561 = vmatmul.bf16.gmra.mxu0 %v2255
        %v2562 = vpop.f32.mrf.mxu0
        %v2563 = vadd.f32 %v2550, %v2562
        %v2564 = vpop.f32.mrf.mxu0
        %2565 = vdwg.mxu0
        %v2566 = vadd.f32 %v2097, %v2563
        %s2567 = scalar_lea.vmem [#allocation4], 3
        %v2568 = vld [vmem:[%s2567] ss:$8 sm:$0xf]
        %v2569 = vld [vmem:[%s2567] ss:$8 sm:$0x10]
        %v2570 = vor.u32 %v2568, %v2569
        %s2571 = scalar_lea.vmem [#allocation4], 43
        %v2572 = vld [vmem:[%s2571] ss:$8 sm:$0xf]
        %v2573 = vld [vmem:[%s2571] ss:$8 sm:$0x10]
        %v2574 = vor.u32 %v2572, %v2573
        %v2577 = vperm.slane %v2570, 0
        %v2578 = vperm.slane %v2570, 1
        %v2579 = vperm.slane %v2570, 2
        %v2580 = vperm.slane %v2570, 3
        %v2581 = vperm.slane %v2570, 4
        %v2582 = vperm.slane %v2574, 0
        %v2583 = vperm.slane %v2574, 1
        %v2584 = vperm.slane %v2574, 2
        %v2585 = vperm.slane %v2574, 3
        %v2586 = vperm.slane %v2574, 4
        %v2597 = vpack.c.bf16 %v2577, %v2577
        %v2598 = vpack.c.bf16 %v2578, %v2578
        %v2599 = vpack.c.bf16 %v2579, %v2579
        %v2600 = vpack.c.bf16 %v2580, %v2580
        %v2601 = vpack.c.bf16 %v2581, %v2581
        %v2602 = vpack.c.bf16 %v2582, %v2582
        %v2603 = vpack.c.bf16 %v2583, %v2583
        %v2604 = vpack.c.bf16 %v2584, %v2584
        %v2605 = vpack.c.bf16 %v2585, %v2585
        %v2606 = vpack.c.bf16 %v2586, %v2586
        %s2607 = scalar_lea.vmem %s5, 960
        %v2608 = vld [vmem:[%s2607] sm:$0xf]
        %v2609 = vld [vmem:[%s2607 + $0x4] sm:$0xf]
        %v2610 = vld [vmem:[%s2607 + $0x8] sm:$0xf]
        %v2611 = vld [vmem:[%s2607 + $0xc] sm:$0xf]
        %v2612 = vld [vmem:[%s2607 + $0x10] sm:$0xf]
        %v2613 = vld [vmem:[%s2607 + $0x14] sm:$0xf]
        %v2614 = vld [vmem:[%s2607 + $0x18] sm:$0xf]
        %v2615 = vld [vmem:[%s2607 + $0x1c] sm:$0xf]
        %v2616 = vld [vmem:[%s2607 + $0x20] sm:$0xf]
        %v2617 = vld [vmem:[%s2607 + $0x24] sm:$0xf]
        %v2618 = vld [vmem:[%s2607 + $0x28] sm:$0xf]
        %v2619 = vld [vmem:[%s2607 + $0x2c] sm:$0xf]
        %v2620 = vld [vmem:[%s2607 + $0x30] sm:$0xf]
        %v2621 = vld [vmem:[%s2607 + $0x34] sm:$0xf]
        %v2622 = vld [vmem:[%s2607 + $0x38] sm:$0xf]
        %v2623 = vld [vmem:[%s2607 + $0x3c] sm:$0xf]
        %v2624 = vld [vmem:[%s2607 + $0x40] sm:$0xf]
        %v2625 = vld [vmem:[%s2607 + $0x44] sm:$0xf]
        %v2626 = vld [vmem:[%s2607 + $0x48] sm:$0xf]
        %v2627 = vld [vmem:[%s2607 + $0x4c] sm:$0xf]
        %v2628 = vld [vmem:[%s2607 + $0x50] sm:$0xf]
        %v2629 = vld [vmem:[%s2607 + $0x54] sm:$0xf]
        %v2630 = vld [vmem:[%s2607 + $0x58] sm:$0xf]
        %v2631 = vld [vmem:[%s2607 + $0x5c] sm:$0xf]
        %v2632 = vld [vmem:[%s2607 + $0x60] sm:$0xf]
        %v2633 = vld [vmem:[%s2607 + $0x64] sm:$0xf]
        %v2634 = vld [vmem:[%s2607 + $0x68] sm:$0xf]
        %v2635 = vld [vmem:[%s2607 + $0x6c] sm:$0xf]
        %v2636 = vld [vmem:[%s2607 + $0x70] sm:$0xf]
        %v2637 = vld [vmem:[%s2607 + $0x74] sm:$0xf]
        %v2638 = vld [vmem:[%s2607 + $0x78] sm:$0xf]
        %v2639 = vld [vmem:[%s2607 + $0x7c] sm:$0xf]
        %v2640 = vld [vmem:[%s2607 + $0x80] sm:$0xf]
        %v2641 = vld [vmem:[%s2607 + $0x84] sm:$0xf]
        %v2642 = vld [vmem:[%s2607 + $0x88] sm:$0xf]
        %v2643 = vld [vmem:[%s2607 + $0x8c] sm:$0xf]
        %v2644 = vld [vmem:[%s2607 + $0x90] sm:$0xf]
        %v2645 = vld [vmem:[%s2607 + $0x94] sm:$0xf]
        %v2646 = vld [vmem:[%s2607 + $0x98] sm:$0xf]
        %v2647 = vld [vmem:[%s2607 + $0x9c] sm:$0xf]
        %v2648 = vld [vmem:[%s2607 + $0xa0] sm:$0xf]
        %v2649 = vld [vmem:[%s2607 + $0xa4] sm:$0xf]
        %v2650 = vld [vmem:[%s2607 + $0xa8] sm:$0xf]
        %v2651 = vld [vmem:[%s2607 + $0xac] sm:$0xf]
        %v2652 = vld [vmem:[%s2607 + $0xb0] sm:$0xf]
        %v2653 = vld [vmem:[%s2607 + $0xb4] sm:$0xf]
        %v2654 = vld [vmem:[%s2607 + $0xb8] sm:$0xf]
        %v2655 = vld [vmem:[%s2607 + $0xbc] sm:$0xf]
        %v2656 = vld [vmem:[%s2607 + $0xc0] sm:$0xf]
        %v2657 = vld [vmem:[%s2607 + $0xc4] sm:$0xf]
        %v2658 = vld [vmem:[%s2607 + $0xc8] sm:$0xf]
        %v2659 = vld [vmem:[%s2607 + $0xcc] sm:$0xf]
        %v2660 = vld [vmem:[%s2607 + $0xd0] sm:$0xf]
        %v2661 = vld [vmem:[%s2607 + $0xd4] sm:$0xf]
        %v2662 = vld [vmem:[%s2607 + $0xd8] sm:$0xf]
        %v2663 = vld [vmem:[%s2607 + $0xdc] sm:$0xf]
        %v2664 = vld [vmem:[%s2607 + $0xe0] sm:$0xf]
        %v2665 = vld [vmem:[%s2607 + $0xe4] sm:$0xf]
        %v2666 = vld [vmem:[%s2607 + $0xe8] sm:$0xf]
        %v2667 = vld [vmem:[%s2607 + $0xec] sm:$0xf]
        %v2668 = vld [vmem:[%s2607 + $0xf0] sm:$0xf]
        %v2669 = vld [vmem:[%s2607 + $0xf4] sm:$0xf]
        %v2670 = vld [vmem:[%s2607 + $0xf8] sm:$0xf]
        %v2671 = vld [vmem:[%s2607 + $0xfc] sm:$0xf]
        %v2672 = vld [vmem:[%s2607 + $0x100] sm:$0xf]
        %v2673 = vld [vmem:[%s2607 + $0x104] sm:$0xf]
        %v2674 = vld [vmem:[%s2607 + $0x108] sm:$0xf]
        %v2675 = vld [vmem:[%s2607 + $0x10c] sm:$0xf]
        %v2676 = vld [vmem:[%s2607 + $0x110] sm:$0xf]
        %v2677 = vld [vmem:[%s2607 + $0x114] sm:$0xf]
        %v2678 = vld [vmem:[%s2607 + $0x118] sm:$0xf]
        %v2679 = vld [vmem:[%s2607 + $0x11c] sm:$0xf]
        %v2680 = vld [vmem:[%s2607 + $0x120] sm:$0xf]
        %v2681 = vld [vmem:[%s2607 + $0x124] sm:$0xf]
        %v2682 = vld [vmem:[%s2607 + $0x128] sm:$0xf]
        %v2683 = vld [vmem:[%s2607 + $0x12c] sm:$0xf]
        %v2684 = vld [vmem:[%s2607 + $0x130] sm:$0xf]
        %v2685 = vld [vmem:[%s2607 + $0x134] sm:$0xf]
        %v2686 = vld [vmem:[%s2607 + $0x138] sm:$0xf]
        %v2687 = vld [vmem:[%s2607 + $0x13c] sm:$0xf]
        %v2698 = vunpack.c.l.b16 %v2597
        %v2699 = vunpack.c.l.b16 %v2598
        %v2700 = vunpack.c.l.b16 %v2599
        %v2701 = vunpack.c.l.b16 %v2600
        %v2702 = vunpack.c.l.b16 %v2601
        %v2703 = vunpack.c.l.b16 %v2602
        %v2704 = vunpack.c.l.b16 %v2603
        %v2705 = vunpack.c.l.b16 %v2604
        %v2706 = vunpack.c.l.b16 %v2605
        %v2707 = vunpack.c.l.b16 %v2606
        %v2708 = vrot.slane %v2703, 7
        %v2709 = vsel %vm1430, %v2708, %v2698
        %v2710 = vrot.slane %v2704, 7
        %v2711 = vsel %vm1430, %v2710, %v2699
        %v2712 = vrot.slane %v2705, 7
        %v2713 = vsel %vm1430, %v2712, %v2700
        %v2714 = vrot.slane %v2706, 7
        %v2715 = vsel %vm1430, %v2714, %v2701
        %v2716 = vrot.slane %v2707, 7
        %v2717 = vsel %vm1430, %v2716, %v2702
        %v2718 = vpack.c.b16 %v2709, %v2709
        %v2719 = vpack.c.b16 %v2711, %v2711
        %v2720 = vpack.c.b16 %v2713, %v2713
        %v2721 = vpack.c.b16 %v2715, %v2715
        %v2722 = vpack.c.b16 %v2717, %v2717
        %v2808 = vunpack.c.l.b16 %v2608
        %v2809 = vunpack.c.l.b16 %v2609
        %v2810 = vunpack.c.l.b16 %v2610
        %v2811 = vunpack.c.l.b16 %v2611
        %v2812 = vunpack.c.l.b16 %v2612
        %v2813 = vunpack.c.l.b16 %v2613
        %v2814 = vunpack.c.l.b16 %v2614
        %v2815 = vunpack.c.l.b16 %v2615
        %v2816 = vunpack.c.l.b16 %v2616
        %v2817 = vunpack.c.l.b16 %v2617
        %v2818 = vunpack.c.l.b16 %v2618
        %v2819 = vunpack.c.l.b16 %v2619
        %v2820 = vunpack.c.l.b16 %v2620
        %v2821 = vunpack.c.l.b16 %v2621
        %v2822 = vunpack.c.l.b16 %v2622
        %v2823 = vunpack.c.l.b16 %v2623
        %v2824 = vunpack.c.l.b16 %v2624
        %v2825 = vunpack.c.l.b16 %v2625
        %v2826 = vunpack.c.l.b16 %v2626
        %v2827 = vunpack.c.l.b16 %v2627
        %v2828 = vunpack.c.l.b16 %v2628
        %v2829 = vunpack.c.l.b16 %v2629
        %v2830 = vunpack.c.l.b16 %v2630
        %v2831 = vunpack.c.l.b16 %v2631
        %v2832 = vunpack.c.l.b16 %v2632
        %v2833 = vunpack.c.l.b16 %v2633
        %v2834 = vunpack.c.l.b16 %v2634
        %v2835 = vunpack.c.l.b16 %v2635
        %v2836 = vunpack.c.l.b16 %v2636
        %v2837 = vunpack.c.l.b16 %v2637
        %v2838 = vunpack.c.l.b16 %v2638
        %v2839 = vunpack.c.l.b16 %v2639
        %v2840 = vunpack.c.l.b16 %v2640
        %v2841 = vunpack.c.l.b16 %v2641
        %v2842 = vunpack.c.l.b16 %v2642
        %v2843 = vunpack.c.l.b16 %v2643
        %v2844 = vunpack.c.l.b16 %v2644
        %v2845 = vunpack.c.l.b16 %v2645
        %v2846 = vunpack.c.l.b16 %v2646
        %v2847 = vunpack.c.l.b16 %v2647
        %v2848 = vunpack.c.l.b16 %v2648
        %v2849 = vunpack.c.l.b16 %v2649
        %v2850 = vunpack.c.l.b16 %v2650
        %v2851 = vunpack.c.l.b16 %v2651
        %v2852 = vunpack.c.l.b16 %v2652
        %v2853 = vunpack.c.l.b16 %v2653
        %v2854 = vunpack.c.l.b16 %v2654
        %v2855 = vunpack.c.l.b16 %v2655
        %v2856 = vunpack.c.l.b16 %v2656
        %v2857 = vunpack.c.l.b16 %v2657
        %v2858 = vunpack.c.l.b16 %v2658
        %v2859 = vunpack.c.l.b16 %v2659
        %v2860 = vunpack.c.l.b16 %v2660
        %v2861 = vunpack.c.l.b16 %v2661
        %v2862 = vunpack.c.l.b16 %v2662
        %v2863 = vunpack.c.l.b16 %v2663
        %v2864 = vunpack.c.l.b16 %v2664
        %v2865 = vunpack.c.l.b16 %v2665
        %v2866 = vunpack.c.l.b16 %v2666
        %v2867 = vunpack.c.l.b16 %v2667
        %v2868 = vunpack.c.l.b16 %v2668
        %v2869 = vunpack.c.l.b16 %v2669
        %v2870 = vunpack.c.l.b16 %v2670
        %v2871 = vunpack.c.l.b16 %v2671
        %v2872 = vunpack.c.l.b16 %v2672
        %v2873 = vunpack.c.l.b16 %v2673
        %v2874 = vunpack.c.l.b16 %v2674
        %v2875 = vunpack.c.l.b16 %v2675
        %v2876 = vunpack.c.l.b16 %v2676
        %v2877 = vunpack.c.l.b16 %v2677
        %v2878 = vunpack.c.l.b16 %v2678
        %v2879 = vunpack.c.l.b16 %v2679
        %v2880 = vunpack.c.l.b16 %v2680
        %v2881 = vunpack.c.l.b16 %v2681
        %v2882 = vunpack.c.l.b16 %v2682
        %v2883 = vunpack.c.l.b16 %v2683
        %v2884 = vunpack.c.l.b16 %v2684
        %v2885 = vunpack.c.l.b16 %v2685
        %v2886 = vunpack.c.l.b16 %v2686
        %v2887 = vunpack.c.l.b16 %v2687
        %v2888 = vpack.c.b16 %v2809, %v2808
        %v2889 = vpack.c.b16 %v2811, %v2810
        %v2890 = vpack.c.b16 %v2813, %v2812
        %v2891 = vpack.c.b16 %v2815, %v2814
        %v2892 = vpack.c.b16 %v2817, %v2816
        %v2893 = vpack.c.b16 %v2819, %v2818
        %v2894 = vpack.c.b16 %v2821, %v2820
        %v2895 = vpack.c.b16 %v2823, %v2822
        %v2896 = vpack.c.b16 %v2825, %v2824
        %v2897 = vpack.c.b16 %v2827, %v2826
        %v2898 = vpack.c.b16 %v2829, %v2828
        %v2899 = vpack.c.b16 %v2831, %v2830
        %v2900 = vpack.c.b16 %v2833, %v2832
        %v2901 = vpack.c.b16 %v2835, %v2834
        %v2902 = vpack.c.b16 %v2837, %v2836
        %v2903 = vpack.c.b16 %v2839, %v2838
        %v2904 = vpack.c.b16 %v2841, %v2840
        %v2905 = vpack.c.b16 %v2843, %v2842
        %v2906 = vpack.c.b16 %v2845, %v2844
        %v2907 = vpack.c.b16 %v2847, %v2846
        %v2908 = vpack.c.b16 %v2849, %v2848
        %v2909 = vpack.c.b16 %v2851, %v2850
        %v2910 = vpack.c.b16 %v2853, %v2852
        %v2911 = vpack.c.b16 %v2855, %v2854
        %v2912 = vpack.c.b16 %v2857, %v2856
        %v2913 = vpack.c.b16 %v2859, %v2858
        %v2914 = vpack.c.b16 %v2861, %v2860
        %v2915 = vpack.c.b16 %v2863, %v2862
        %v2916 = vpack.c.b16 %v2865, %v2864
        %v2917 = vpack.c.b16 %v2867, %v2866
        %v2918 = vpack.c.b16 %v2869, %v2868
        %v2919 = vpack.c.b16 %v2871, %v2870
        %v2920 = vpack.c.b16 %v2873, %v2872
        %v2921 = vpack.c.b16 %v2875, %v2874
        %v2922 = vpack.c.b16 %v2877, %v2876
        %v2923 = vpack.c.b16 %v2879, %v2878
        %v2924 = vpack.c.b16 %v2881, %v2880
        %v2925 = vpack.c.b16 %v2883, %v2882
        %v2926 = vpack.c.b16 %v2885, %v2884
        %v2927 = vpack.c.b16 %v2887, %v2886
        %2968 = vmatpush.bf16.msra.mxu0 %v2895
        %2969 = vmatpush.bf16.msra.mxu0 %v2894
        %2970 = vmatpush.bf16.msra.mxu0 %v2893
        %2971 = vmatpush.bf16.msra.mxu0 %v2892
        %2972 = vmatpush.bf16.msra.mxu0 %v2891
        %2973 = vmatpush.bf16.msra.mxu0 %v2890
        %2974 = vmatpush.bf16.msra.mxu0 %v2889
        %2975 = vmatpush.bf16.msra.mxu0 %v2888
        %2976 = vmatmul.bf16.gmra.mxu0 %v2718
        %v2977 = vpop.f32.mrf.mxu0
        %v2978 = vadd.f32 0.0, %v2977
        %v2979 = vpop.f32.mrf.mxu0
        %2980 = vdwg.mxu0
        %2981 = vmatpush.bf16.msra.mxu0 %v2903
        %2982 = vmatpush.bf16.msra.mxu0 %v2902
        %2983 = vmatpush.bf16.msra.mxu0 %v2901
        %2984 = vmatpush.bf16.msra.mxu0 %v2900
        %2985 = vmatpush.bf16.msra.mxu0 %v2899
        %2986 = vmatpush.bf16.msra.mxu0 %v2898
        %2987 = vmatpush.bf16.msra.mxu0 %v2897
        %2988 = vmatpush.bf16.msra.mxu0 %v2896
        %2989 = vmatmul.bf16.gmra.mxu0 %v2719
        %v2990 = vpop.f32.mrf.mxu0
        %v2991 = vadd.f32 %v2978, %v2990
        %v2992 = vpop.f32.mrf.mxu0
        %2993 = vdwg.mxu0
        %2994 = vmatpush.bf16.msra.mxu0 %v2911
        %2995 = vmatpush.bf16.msra.mxu0 %v2910
        %2996 = vmatpush.bf16.msra.mxu0 %v2909
        %2997 = vmatpush.bf16.msra.mxu0 %v2908
        %2998 = vmatpush.bf16.msra.mxu0 %v2907
        %2999 = vmatpush.bf16.msra.mxu0 %v2906
        %3000 = vmatpush.bf16.msra.mxu0 %v2905
        %3001 = vmatpush.bf16.msra.mxu0 %v2904
        %3002 = vmatmul.bf16.gmra.mxu0 %v2720
        %v3003 = vpop.f32.mrf.mxu0
        %v3004 = vadd.f32 %v2991, %v3003
        %v3005 = vpop.f32.mrf.mxu0
        %3006 = vdwg.mxu0
        %3007 = vmatpush.bf16.msra.mxu0 %v2919
        %3008 = vmatpush.bf16.msra.mxu0 %v2918
        %3009 = vmatpush.bf16.msra.mxu0 %v2917
        %3010 = vmatpush.bf16.msra.mxu0 %v2916
        %3011 = vmatpush.bf16.msra.mxu0 %v2915
        %3012 = vmatpush.bf16.msra.mxu0 %v2914
        %3013 = vmatpush.bf16.msra.mxu0 %v2913
        %3014 = vmatpush.bf16.msra.mxu0 %v2912
        %3015 = vmatmul.bf16.gmra.mxu0 %v2721
        %v3016 = vpop.f32.mrf.mxu0
        %v3017 = vadd.f32 %v3004, %v3016
        %v3018 = vpop.f32.mrf.mxu0
        %3019 = vdwg.mxu0
        %3020 = vmatpush.bf16.msra.mxu0 %v2927
        %3021 = vmatpush.bf16.msra.mxu0 %v2926
        %3022 = vmatpush.bf16.msra.mxu0 %v2925
        %3023 = vmatpush.bf16.msra.mxu0 %v2924
        %3024 = vmatpush.bf16.msra.mxu0 %v2923
        %3025 = vmatpush.bf16.msra.mxu0 %v2922
        %3026 = vmatpush.bf16.msra.mxu0 %v2921
        %3027 = vmatpush.bf16.msra.mxu0 %v2920
        %3028 = vmatmul.bf16.gmra.mxu0 %v2722
        %v3029 = vpop.f32.mrf.mxu0
        %v3030 = vadd.f32 %v3017, %v3029
        %v3031 = vpop.f32.mrf.mxu0
        %3032 = vdwg.mxu0
        %v3033 = vadd.f32 %v2566, %v3030
        %s3034 = scalar_lea.vmem [#allocation4], 4
        %v3035 = vld [vmem:[%s3034] ss:$8 sm:$0xf]
        %v3036 = vld [vmem:[%s3034] ss:$8 sm:$0x10]
        %v3037 = vor.u32 %v3035, %v3036
        %s3038 = scalar_lea.vmem [#allocation4], 44
        %v3039 = vld [vmem:[%s3038] ss:$8 sm:$0xf]
        %v3040 = vld [vmem:[%s3038] ss:$8 sm:$0x10]
        %v3041 = vor.u32 %v3039, %v3040
        %v3044 = vperm.slane %v3037, 0
        %v3045 = vperm.slane %v3037, 1
        %v3046 = vperm.slane %v3037, 2
        %v3047 = vperm.slane %v3037, 3
        %v3048 = vperm.slane %v3037, 4
        %v3049 = vperm.slane %v3041, 0
        %v3050 = vperm.slane %v3041, 1
        %v3051 = vperm.slane %v3041, 2
        %v3052 = vperm.slane %v3041, 3
        %v3053 = vperm.slane %v3041, 4
        %v3064 = vpack.c.bf16 %v3044, %v3044
        %v3065 = vpack.c.bf16 %v3045, %v3045
        %v3066 = vpack.c.bf16 %v3046, %v3046
        %v3067 = vpack.c.bf16 %v3047, %v3047
        %v3068 = vpack.c.bf16 %v3048, %v3048
        %v3069 = vpack.c.bf16 %v3049, %v3049
        %v3070 = vpack.c.bf16 %v3050, %v3050
        %v3071 = vpack.c.bf16 %v3051, %v3051
        %v3072 = vpack.c.bf16 %v3052, %v3052
        %v3073 = vpack.c.bf16 %v3053, %v3053
        %s3074 = scalar_lea.vmem %s5, 1280
        %v3075 = vld [vmem:[%s3074] sm:$0xf]
        %v3076 = vld [vmem:[%s3074 + $0x4] sm:$0xf]
        %v3077 = vld [vmem:[%s3074 + $0x8] sm:$0xf]
        %v3078 = vld [vmem:[%s3074 + $0xc] sm:$0xf]
        %v3079 = vld [vmem:[%s3074 + $0x10] sm:$0xf]
        %v3080 = vld [vmem:[%s3074 + $0x14] sm:$0xf]
        %v3081 = vld [vmem:[%s3074 + $0x18] sm:$0xf]
        %v3082 = vld [vmem:[%s3074 + $0x1c] sm:$0xf]
        %v3083 = vld [vmem:[%s3074 + $0x20] sm:$0xf]
        %v3084 = vld [vmem:[%s3074 + $0x24] sm:$0xf]
        %v3085 = vld [vmem:[%s3074 + $0x28] sm:$0xf]
        %v3086 = vld [vmem:[%s3074 + $0x2c] sm:$0xf]
        %v3087 = vld [vmem:[%s3074 + $0x30] sm:$0xf]
        %v3088 = vld [vmem:[%s3074 + $0x34] sm:$0xf]
        %v3089 = vld [vmem:[%s3074 + $0x38] sm:$0xf]
        %v3090 = vld [vmem:[%s3074 + $0x3c] sm:$0xf]
        %v3091 = vld [vmem:[%s3074 + $0x40] sm:$0xf]
        %v3092 = vld [vmem:[%s3074 + $0x44] sm:$0xf]
        %v3093 = vld [vmem:[%s3074 + $0x48] sm:$0xf]
        %v3094 = vld [vmem:[%s3074 + $0x4c] sm:$0xf]
        %v3095 = vld [vmem:[%s3074 + $0x50] sm:$0xf]
        %v3096 = vld [vmem:[%s3074 + $0x54] sm:$0xf]
        %v3097 = vld [vmem:[%s3074 + $0x58] sm:$0xf]
        %v3098 = vld [vmem:[%s3074 + $0x5c] sm:$0xf]
        %v3099 = vld [vmem:[%s3074 + $0x60] sm:$0xf]
        %v3100 = vld [vmem:[%s3074 + $0x64] sm:$0xf]
        %v3101 = vld [vmem:[%s3074 + $0x68] sm:$0xf]
        %v3102 = vld [vmem:[%s3074 + $0x6c] sm:$0xf]
        %v3103 = vld [vmem:[%s3074 + $0x70] sm:$0xf]
        %v3104 = vld [vmem:[%s3074 + $0x74] sm:$0xf]
        %v3105 = vld [vmem:[%s3074 + $0x78] sm:$0xf]
        %v3106 = vld [vmem:[%s3074 + $0x7c] sm:$0xf]
        %v3107 = vld [vmem:[%s3074 + $0x80] sm:$0xf]
        %v3108 = vld [vmem:[%s3074 + $0x84] sm:$0xf]
        %v3109 = vld [vmem:[%s3074 + $0x88] sm:$0xf]
        %v3110 = vld [vmem:[%s3074 + $0x8c] sm:$0xf]
        %v3111 = vld [vmem:[%s3074 + $0x90] sm:$0xf]
        %v3112 = vld [vmem:[%s3074 + $0x94] sm:$0xf]
        %v3113 = vld [vmem:[%s3074 + $0x98] sm:$0xf]
        %v3114 = vld [vmem:[%s3074 + $0x9c] sm:$0xf]
        %v3115 = vld [vmem:[%s3074 + $0xa0] sm:$0xf]
        %v3116 = vld [vmem:[%s3074 + $0xa4] sm:$0xf]
        %v3117 = vld [vmem:[%s3074 + $0xa8] sm:$0xf]
        %v3118 = vld [vmem:[%s3074 + $0xac] sm:$0xf]
        %v3119 = vld [vmem:[%s3074 + $0xb0] sm:$0xf]
        %v3120 = vld [vmem:[%s3074 + $0xb4] sm:$0xf]
        %v3121 = vld [vmem:[%s3074 + $0xb8] sm:$0xf]
        %v3122 = vld [vmem:[%s3074 + $0xbc] sm:$0xf]
        %v3123 = vld [vmem:[%s3074 + $0xc0] sm:$0xf]
        %v3124 = vld [vmem:[%s3074 + $0xc4] sm:$0xf]
        %v3125 = vld [vmem:[%s3074 + $0xc8] sm:$0xf]
        %v3126 = vld [vmem:[%s3074 + $0xcc] sm:$0xf]
        %v3127 = vld [vmem:[%s3074 + $0xd0] sm:$0xf]
        %v3128 = vld [vmem:[%s3074 + $0xd4] sm:$0xf]
        %v3129 = vld [vmem:[%s3074 + $0xd8] sm:$0xf]
        %v3130 = vld [vmem:[%s3074 + $0xdc] sm:$0xf]
        %v3131 = vld [vmem:[%s3074 + $0xe0] sm:$0xf]
        %v3132 = vld [vmem:[%s3074 + $0xe4] sm:$0xf]
        %v3133 = vld [vmem:[%s3074 + $0xe8] sm:$0xf]
        %v3134 = vld [vmem:[%s3074 + $0xec] sm:$0xf]
        %v3135 = vld [vmem:[%s3074 + $0xf0] sm:$0xf]
        %v3136 = vld [vmem:[%s3074 + $0xf4] sm:$0xf]
        %v3137 = vld [vmem:[%s3074 + $0xf8] sm:$0xf]
        %v3138 = vld [vmem:[%s3074 + $0xfc] sm:$0xf]
        %v3139 = vld [vmem:[%s3074 + $0x100] sm:$0xf]
        %v3140 = vld [vmem:[%s3074 + $0x104] sm:$0xf]
        %v3141 = vld [vmem:[%s3074 + $0x108] sm:$0xf]
        %v3142 = vld [vmem:[%s3074 + $0x10c] sm:$0xf]
        %v3143 = vld [vmem:[%s3074 + $0x110] sm:$0xf]
        %v3144 = vld [vmem:[%s3074 + $0x114] sm:$0xf]
        %v3145 = vld [vmem:[%s3074 + $0x118] sm:$0xf]
        %v3146 = vld [vmem:[%s3074 + $0x11c] sm:$0xf]
        %v3147 = vld [vmem:[%s3074 + $0x120] sm:$0xf]
        %v3148 = vld [vmem:[%s3074 + $0x124] sm:$0xf]
        %v3149 = vld [vmem:[%s3074 + $0x128] sm:$0xf]
        %v3150 = vld [vmem:[%s3074 + $0x12c] sm:$0xf]
        %v3151 = vld [vmem:[%s3074 + $0x130] sm:$0xf]
        %v3152 = vld [vmem:[%s3074 + $0x134] sm:$0xf]
        %v3153 = vld [vmem:[%s3074 + $0x138] sm:$0xf]
        %v3154 = vld [vmem:[%s3074 + $0x13c] sm:$0xf]
        %v3165 = vunpack.c.l.b16 %v3064
        %v3166 = vunpack.c.l.b16 %v3065
        %v3167 = vunpack.c.l.b16 %v3066
        %v3168 = vunpack.c.l.b16 %v3067
        %v3169 = vunpack.c.l.b16 %v3068
        %v3170 = vunpack.c.l.b16 %v3069
        %v3171 = vunpack.c.l.b16 %v3070
        %v3172 = vunpack.c.l.b16 %v3071
        %v3173 = vunpack.c.l.b16 %v3072
        %v3174 = vunpack.c.l.b16 %v3073
        %v3175 = vrot.slane %v3170, 7
        %v3176 = vsel %vm1430, %v3175, %v3165
        %v3177 = vrot.slane %v3171, 7
        %v3178 = vsel %vm1430, %v3177, %v3166
        %v3179 = vrot.slane %v3172, 7
        %v3180 = vsel %vm1430, %v3179, %v3167
        %v3181 = vrot.slane %v3173, 7
        %v3182 = vsel %vm1430, %v3181, %v3168
        %v3183 = vrot.slane %v3174, 7
        %v3184 = vsel %vm1430, %v3183, %v3169
        %v3185 = vpack.c.b16 %v3176, %v3176
        %v3186 = vpack.c.b16 %v3178, %v3178
        %v3187 = vpack.c.b16 %v3180, %v3180
        %v3188 = vpack.c.b16 %v3182, %v3182
        %v3189 = vpack.c.b16 %v3184, %v3184
        %v3275 = vunpack.c.l.b16 %v3075
        %v3276 = vunpack.c.l.b16 %v3076
        %v3277 = vunpack.c.l.b16 %v3077
        %v3278 = vunpack.c.l.b16 %v3078
        %v3279 = vunpack.c.l.b16 %v3079
        %v3280 = vunpack.c.l.b16 %v3080
        %v3281 = vunpack.c.l.b16 %v3081
        %v3282 = vunpack.c.l.b16 %v3082
        %v3283 = vunpack.c.l.b16 %v3083
        %v3284 = vunpack.c.l.b16 %v3084
        %v3285 = vunpack.c.l.b16 %v3085
        %v3286 = vunpack.c.l.b16 %v3086
        %v3287 = vunpack.c.l.b16 %v3087
        %v3288 = vunpack.c.l.b16 %v3088
        %v3289 = vunpack.c.l.b16 %v3089
        %v3290 = vunpack.c.l.b16 %v3090
        %v3291 = vunpack.c.l.b16 %v3091
        %v3292 = vunpack.c.l.b16 %v3092
        %v3293 = vunpack.c.l.b16 %v3093
        %v3294 = vunpack.c.l.b16 %v3094
        %v3295 = vunpack.c.l.b16 %v3095
        %v3296 = vunpack.c.l.b16 %v3096
        %v3297 = vunpack.c.l.b16 %v3097
        %v3298 = vunpack.c.l.b16 %v3098
        %v3299 = vunpack.c.l.b16 %v3099
        %v3300 = vunpack.c.l.b16 %v3100
        %v3301 = vunpack.c.l.b16 %v3101
        %v3302 = vunpack.c.l.b16 %v3102
        %v3303 = vunpack.c.l.b16 %v3103
        %v3304 = vunpack.c.l.b16 %v3104
        %v3305 = vunpack.c.l.b16 %v3105
        %v3306 = vunpack.c.l.b16 %v3106
        %v3307 = vunpack.c.l.b16 %v3107
        %v3308 = vunpack.c.l.b16 %v3108
        %v3309 = vunpack.c.l.b16 %v3109
        %v3310 = vunpack.c.l.b16 %v3110
        %v3311 = vunpack.c.l.b16 %v3111
        %v3312 = vunpack.c.l.b16 %v3112
        %v3313 = vunpack.c.l.b16 %v3113
        %v3314 = vunpack.c.l.b16 %v3114
        %v3315 = vunpack.c.l.b16 %v3115
        %v3316 = vunpack.c.l.b16 %v3116
        %v3317 = vunpack.c.l.b16 %v3117
        %v3318 = vunpack.c.l.b16 %v3118
        %v3319 = vunpack.c.l.b16 %v3119
        %v3320 = vunpack.c.l.b16 %v3120
        %v3321 = vunpack.c.l.b16 %v3121
        %v3322 = vunpack.c.l.b16 %v3122
        %v3323 = vunpack.c.l.b16 %v3123
        %v3324 = vunpack.c.l.b16 %v3124
        %v3325 = vunpack.c.l.b16 %v3125
        %v3326 = vunpack.c.l.b16 %v3126
        %v3327 = vunpack.c.l.b16 %v3127
        %v3328 = vunpack.c.l.b16 %v3128
        %v3329 = vunpack.c.l.b16 %v3129
        %v3330 = vunpack.c.l.b16 %v3130
        %v3331 = vunpack.c.l.b16 %v3131
        %v3332 = vunpack.c.l.b16 %v3132
        %v3333 = vunpack.c.l.b16 %v3133
        %v3334 = vunpack.c.l.b16 %v3134
        %v3335 = vunpack.c.l.b16 %v3135
        %v3336 = vunpack.c.l.b16 %v3136
        %v3337 = vunpack.c.l.b16 %v3137
        %v3338 = vunpack.c.l.b16 %v3138
        %v3339 = vunpack.c.l.b16 %v3139
        %v3340 = vunpack.c.l.b16 %v3140
        %v3341 = vunpack.c.l.b16 %v3141
        %v3342 = vunpack.c.l.b16 %v3142
        %v3343 = vunpack.c.l.b16 %v3143
        %v3344 = vunpack.c.l.b16 %v3144
        %v3345 = vunpack.c.l.b16 %v3145
        %v3346 = vunpack.c.l.b16 %v3146
        %v3347 = vunpack.c.l.b16 %v3147
        %v3348 = vunpack.c.l.b16 %v3148
        %v3349 = vunpack.c.l.b16 %v3149
        %v3350 = vunpack.c.l.b16 %v3150
        %v3351 = vunpack.c.l.b16 %v3151
        %v3352 = vunpack.c.l.b16 %v3152
        %v3353 = vunpack.c.l.b16 %v3153
        %v3354 = vunpack.c.l.b16 %v3154
        %v3355 = vpack.c.b16 %v3276, %v3275
        %v3356 = vpack.c.b16 %v3278, %v3277
        %v3357 = vpack.c.b16 %v3280, %v3279
        %v3358 = vpack.c.b16 %v3282, %v3281
        %v3359 = vpack.c.b16 %v3284, %v3283
        %v3360 = vpack.c.b16 %v3286, %v3285
        %v3361 = vpack.c.b16 %v3288, %v3287
        %v3362 = vpack.c.b16 %v3290, %v3289
        %v3363 = vpack.c.b16 %v3292, %v3291
        %v3364 = vpack.c.b16 %v3294, %v3293
        %v3365 = vpack.c.b16 %v3296, %v3295
        %v3366 = vpack.c.b16 %v3298, %v3297
        %v3367 = vpack.c.b16 %v3300, %v3299
        %v3368 = vpack.c.b16 %v3302, %v3301
        %v3369 = vpack.c.b16 %v3304, %v3303
        %v3370 = vpack.c.b16 %v3306, %v3305
        %v3371 = vpack.c.b16 %v3308, %v3307
        %v3372 = vpack.c.b16 %v3310, %v3309
        %v3373 = vpack.c.b16 %v3312, %v3311
        %v3374 = vpack.c.b16 %v3314, %v3313
        %v3375 = vpack.c.b16 %v3316, %v3315
        %v3376 = vpack.c.b16 %v3318, %v3317
        %v3377 = vpack.c.b16 %v3320, %v3319
        %v3378 = vpack.c.b16 %v3322, %v3321
        %v3379 = vpack.c.b16 %v3324, %v3323
        %v3380 = vpack.c.b16 %v3326, %v3325
        %v3381 = vpack.c.b16 %v3328, %v3327
        %v3382 = vpack.c.b16 %v3330, %v3329
        %v3383 = vpack.c.b16 %v3332, %v3331
        %v3384 = vpack.c.b16 %v3334, %v3333
        %v3385 = vpack.c.b16 %v3336, %v3335
        %v3386 = vpack.c.b16 %v3338, %v3337
        %v3387 = vpack.c.b16 %v3340, %v3339
        %v3388 = vpack.c.b16 %v3342, %v3341
        %v3389 = vpack.c.b16 %v3344, %v3343
        %v3390 = vpack.c.b16 %v3346, %v3345
        %v3391 = vpack.c.b16 %v3348, %v3347
        %v3392 = vpack.c.b16 %v3350, %v3349
        %v3393 = vpack.c.b16 %v3352, %v3351
        %v3394 = vpack.c.b16 %v3354, %v3353
        %3435 = vmatpush.bf16.msra.mxu0 %v3362
        %3436 = vmatpush.bf16.msra.mxu0 %v3361
        %3437 = vmatpush.bf16.msra.mxu0 %v3360
        %3438 = vmatpush.bf16.msra.mxu0 %v3359
        %3439 = vmatpush.bf16.msra.mxu0 %v3358
        %3440 = vmatpush.bf16.msra.mxu0 %v3357
        %3441 = vmatpush.bf16.msra.mxu0 %v3356
        %3442 = vmatpush.bf16.msra.mxu0 %v3355
        %3443 = vmatmul.bf16.gmra.mxu0 %v3185
        %v3444 = vpop.f32.mrf.mxu0
        %v3445 = vadd.f32 0.0, %v3444
        %v3446 = vpop.f32.mrf.mxu0
        %3447 = vdwg.mxu0
        %3448 = vmatpush.bf16.msra.mxu0 %v3370
        %3449 = vmatpush.bf16.msra.mxu0 %v3369
        %3450 = vmatpush.bf16.msra.mxu0 %v3368
        %3451 = vmatpush.bf16.msra.mxu0 %v3367
        %3452 = vmatpush.bf16.msra.mxu0 %v3366
        %3453 = vmatpush.bf16.msra.mxu0 %v3365
        %3454 = vmatpush.bf16.msra.mxu0 %v3364
        %3455 = vmatpush.bf16.msra.mxu0 %v3363
        %3456 = vmatmul.bf16.gmra.mxu0 %v3186
        %v3457 = vpop.f32.mrf.mxu0
        %v3458 = vadd.f32 %v3445, %v3457
        %v3459 = vpop.f32.mrf.mxu0
        %3460 = vdwg.mxu0
        %3461 = vmatpush.bf16.msra.mxu0 %v3378
        %3462 = vmatpush.bf16.msra.mxu0 %v3377
        %3463 = vmatpush.bf16.msra.mxu0 %v3376
        %3464 = vmatpush.bf16.msra.mxu0 %v3375
        %3465 = vmatpush.bf16.msra.mxu0 %v3374
        %3466 = vmatpush.bf16.msra.mxu0 %v3373
        %3467 = vmatpush.bf16.msra.mxu0 %v3372
        %3468 = vmatpush.bf16.msra.mxu0 %v3371
        %3469 = vmatmul.bf16.gmra.mxu0 %v3187
        %v3470 = vpop.f32.mrf.mxu0
        %v3471 = vadd.f32 %v3458, %v3470
        %v3472 = vpop.f32.mrf.mxu0
        %3473 = vdwg.mxu0
        %3474 = vmatpush.bf16.msra.mxu0 %v3386
        %3475 = vmatpush.bf16.msra.mxu0 %v3385
        %3476 = vmatpush.bf16.msra.mxu0 %v3384
        %3477 = vmatpush.bf16.msra.mxu0 %v3383
        %3478 = vmatpush.bf16.msra.mxu0 %v3382
        %3479 = vmatpush.bf16.msra.mxu0 %v3381
        %3480 = vmatpush.bf16.msra.mxu0 %v3380
        %3481 = vmatpush.bf16.msra.mxu0 %v3379
        %3482 = vmatmul.bf16.gmra.mxu0 %v3188
        %v3483 = vpop.f32.mrf.mxu0
        %v3484 = vadd.f32 %v3471, %v3483
        %v3485 = vpop.f32.mrf.mxu0
        %3486 = vdwg.mxu0
        %3487 = vmatpush.bf16.msra.mxu0 %v3394
        %3488 = vmatpush.bf16.msra.mxu0 %v3393
        %3489 = vmatpush.bf16.msra.mxu0 %v3392
        %3490 = vmatpush.bf16.msra.mxu0 %v3391
        %3491 = vmatpush.bf16.msra.mxu0 %v3390
        %3492 = vmatpush.bf16.msra.mxu0 %v3389
        %3493 = vmatpush.bf16.msra.mxu0 %v3388
        %3494 = vmatpush.bf16.msra.mxu0 %v3387
        %3495 = vmatmul.bf16.gmra.mxu0 %v3189
        %v3496 = vpop.f32.mrf.mxu0
        %v3497 = vadd.f32 %v3484, %v3496
        %v3498 = vpop.f32.mrf.mxu0
        %3499 = vdwg.mxu0
        %v3500 = vadd.f32 %v3033, %v3497
        %s3501 = scalar_lea.vmem [#allocation4], 5
        %v3502 = vld [vmem:[%s3501] ss:$8 sm:$0xf]
        %v3503 = vld [vmem:[%s3501] ss:$8 sm:$0x10]
        %v3504 = vor.u32 %v3502, %v3503
        %s3505 = scalar_lea.vmem [#allocation4], 45
        %v3506 = vld [vmem:[%s3505] ss:$8 sm:$0xf]
        %v3507 = vld [vmem:[%s3505] ss:$8 sm:$0x10]
        %v3508 = vor.u32 %v3506, %v3507
        %v3511 = vperm.slane %v3504, 0
        %v3512 = vperm.slane %v3504, 1
        %v3513 = vperm.slane %v3504, 2
        %v3514 = vperm.slane %v3504, 3
        %v3515 = vperm.slane %v3504, 4
        %v3516 = vperm.slane %v3508, 0
        %v3517 = vperm.slane %v3508, 1
        %v3518 = vperm.slane %v3508, 2
        %v3519 = vperm.slane %v3508, 3
        %v3520 = vperm.slane %v3508, 4
        %v3531 = vpack.c.bf16 %v3511, %v3511
        %v3532 = vpack.c.bf16 %v3512, %v3512
        %v3533 = vpack.c.bf16 %v3513, %v3513
        %v3534 = vpack.c.bf16 %v3514, %v3514
        %v3535 = vpack.c.bf16 %v3515, %v3515
        %v3536 = vpack.c.bf16 %v3516, %v3516
        %v3537 = vpack.c.bf16 %v3517, %v3517
        %v3538 = vpack.c.bf16 %v3518, %v3518
        %v3539 = vpack.c.bf16 %v3519, %v3519
        %v3540 = vpack.c.bf16 %v3520, %v3520
        %s3541 = scalar_lea.vmem %s5, 1600
        %v3542 = vld [vmem:[%s3541] sm:$0xf]
        %v3543 = vld [vmem:[%s3541 + $0x4] sm:$0xf]
        %v3544 = vld [vmem:[%s3541 + $0x8] sm:$0xf]
        %v3545 = vld [vmem:[%s3541 + $0xc] sm:$0xf]
        %v3546 = vld [vmem:[%s3541 + $0x10] sm:$0xf]
        %v3547 = vld [vmem:[%s3541 + $0x14] sm:$0xf]
        %v3548 = vld [vmem:[%s3541 + $0x18] sm:$0xf]
        %v3549 = vld [vmem:[%s3541 + $0x1c] sm:$0xf]
        %v3550 = vld [vmem:[%s3541 + $0x20] sm:$0xf]
        %v3551 = vld [vmem:[%s3541 + $0x24] sm:$0xf]
        %v3552 = vld [vmem:[%s3541 + $0x28] sm:$0xf]
        %v3553 = vld [vmem:[%s3541 + $0x2c] sm:$0xf]
        %v3554 = vld [vmem:[%s3541 + $0x30] sm:$0xf]
        %v3555 = vld [vmem:[%s3541 + $0x34] sm:$0xf]
        %v3556 = vld [vmem:[%s3541 + $0x38] sm:$0xf]
        %v3557 = vld [vmem:[%s3541 + $0x3c] sm:$0xf]
        %v3558 = vld [vmem:[%s3541 + $0x40] sm:$0xf]
        %v3559 = vld [vmem:[%s3541 + $0x44] sm:$0xf]
        %v3560 = vld [vmem:[%s3541 + $0x48] sm:$0xf]
        %v3561 = vld [vmem:[%s3541 + $0x4c] sm:$0xf]
        %v3562 = vld [vmem:[%s3541 + $0x50] sm:$0xf]
        %v3563 = vld [vmem:[%s3541 + $0x54] sm:$0xf]
        %v3564 = vld [vmem:[%s3541 + $0x58] sm:$0xf]
        %v3565 = vld [vmem:[%s3541 + $0x5c] sm:$0xf]
        %v3566 = vld [vmem:[%s3541 + $0x60] sm:$0xf]
        %v3567 = vld [vmem:[%s3541 + $0x64] sm:$0xf]
        %v3568 = vld [vmem:[%s3541 + $0x68] sm:$0xf]
        %v3569 = vld [vmem:[%s3541 + $0x6c] sm:$0xf]
        %v3570 = vld [vmem:[%s3541 + $0x70] sm:$0xf]
        %v3571 = vld [vmem:[%s3541 + $0x74] sm:$0xf]
        %v3572 = vld [vmem:[%s3541 + $0x78] sm:$0xf]
        %v3573 = vld [vmem:[%s3541 + $0x7c] sm:$0xf]
        %v3574 = vld [vmem:[%s3541 + $0x80] sm:$0xf]
        %v3575 = vld [vmem:[%s3541 + $0x84] sm:$0xf]
        %v3576 = vld [vmem:[%s3541 + $0x88] sm:$0xf]
        %v3577 = vld [vmem:[%s3541 + $0x8c] sm:$0xf]
        %v3578 = vld [vmem:[%s3541 + $0x90] sm:$0xf]
        %v3579 = vld [vmem:[%s3541 + $0x94] sm:$0xf]
        %v3580 = vld [vmem:[%s3541 + $0x98] sm:$0xf]
        %v3581 = vld [vmem:[%s3541 + $0x9c] sm:$0xf]
        %v3582 = vld [vmem:[%s3541 + $0xa0] sm:$0xf]
        %v3583 = vld [vmem:[%s3541 + $0xa4] sm:$0xf]
        %v3584 = vld [vmem:[%s3541 + $0xa8] sm:$0xf]
        %v3585 = vld [vmem:[%s3541 + $0xac] sm:$0xf]
        %v3586 = vld [vmem:[%s3541 + $0xb0] sm:$0xf]
        %v3587 = vld [vmem:[%s3541 + $0xb4] sm:$0xf]
        %v3588 = vld [vmem:[%s3541 + $0xb8] sm:$0xf]
        %v3589 = vld [vmem:[%s3541 + $0xbc] sm:$0xf]
        %v3590 = vld [vmem:[%s3541 + $0xc0] sm:$0xf]
        %v3591 = vld [vmem:[%s3541 + $0xc4] sm:$0xf]
        %v3592 = vld [vmem:[%s3541 + $0xc8] sm:$0xf]
        %v3593 = vld [vmem:[%s3541 + $0xcc] sm:$0xf]
        %v3594 = vld [vmem:[%s3541 + $0xd0] sm:$0xf]
        %v3595 = vld [vmem:[%s3541 + $0xd4] sm:$0xf]
        %v3596 = vld [vmem:[%s3541 + $0xd8] sm:$0xf]
        %v3597 = vld [vmem:[%s3541 + $0xdc] sm:$0xf]
        %v3598 = vld [vmem:[%s3541 + $0xe0] sm:$0xf]
        %v3599 = vld [vmem:[%s3541 + $0xe4] sm:$0xf]
        %v3600 = vld [vmem:[%s3541 + $0xe8] sm:$0xf]
        %v3601 = vld [vmem:[%s3541 + $0xec] sm:$0xf]
        %v3602 = vld [vmem:[%s3541 + $0xf0] sm:$0xf]
        %v3603 = vld [vmem:[%s3541 + $0xf4] sm:$0xf]
        %v3604 = vld [vmem:[%s3541 + $0xf8] sm:$0xf]
        %v3605 = vld [vmem:[%s3541 + $0xfc] sm:$0xf]
        %v3606 = vld [vmem:[%s3541 + $0x100] sm:$0xf]
        %v3607 = vld [vmem:[%s3541 + $0x104] sm:$0xf]
        %v3608 = vld [vmem:[%s3541 + $0x108] sm:$0xf]
        %v3609 = vld [vmem:[%s3541 + $0x10c] sm:$0xf]
        %v3610 = vld [vmem:[%s3541 + $0x110] sm:$0xf]
        %v3611 = vld [vmem:[%s3541 + $0x114] sm:$0xf]
        %v3612 = vld [vmem:[%s3541 + $0x118] sm:$0xf]
        %v3613 = vld [vmem:[%s3541 + $0x11c] sm:$0xf]
        %v3614 = vld [vmem:[%s3541 + $0x120] sm:$0xf]
        %v3615 = vld [vmem:[%s3541 + $0x124] sm:$0xf]
        %v3616 = vld [vmem:[%s3541 + $0x128] sm:$0xf]
        %v3617 = vld [vmem:[%s3541 + $0x12c] sm:$0xf]
        %v3618 = vld [vmem:[%s3541 + $0x130] sm:$0xf]
        %v3619 = vld [vmem:[%s3541 + $0x134] sm:$0xf]
        %v3620 = vld [vmem:[%s3541 + $0x138] sm:$0xf]
        %v3621 = vld [vmem:[%s3541 + $0x13c] sm:$0xf]
        %v3632 = vunpack.c.l.b16 %v3531
        %v3633 = vunpack.c.l.b16 %v3532
        %v3634 = vunpack.c.l.b16 %v3533
        %v3635 = vunpack.c.l.b16 %v3534
        %v3636 = vunpack.c.l.b16 %v3535
        %v3637 = vunpack.c.l.b16 %v3536
        %v3638 = vunpack.c.l.b16 %v3537
        %v3639 = vunpack.c.l.b16 %v3538
        %v3640 = vunpack.c.l.b16 %v3539
        %v3641 = vunpack.c.l.b16 %v3540
        %v3642 = vrot.slane %v3637, 7
        %v3643 = vsel %vm1430, %v3642, %v3632
        %v3644 = vrot.slane %v3638, 7
        %v3645 = vsel %vm1430, %v3644, %v3633
        %v3646 = vrot.slane %v3639, 7
        %v3647 = vsel %vm1430, %v3646, %v3634
        %v3648 = vrot.slane %v3640, 7
        %v3649 = vsel %vm1430, %v3648, %v3635
        %v3650 = vrot.slane %v3641, 7
        %v3651 = vsel %vm1430, %v3650, %v3636
        %v3652 = vpack.c.b16 %v3643, %v3643
        %v3653 = vpack.c.b16 %v3645, %v3645
        %v3654 = vpack.c.b16 %v3647, %v3647
        %v3655 = vpack.c.b16 %v3649, %v3649
        %v3656 = vpack.c.b16 %v3651, %v3651
        %v3742 = vunpack.c.l.b16 %v3542
        %v3743 = vunpack.c.l.b16 %v3543
        %v3744 = vunpack.c.l.b16 %v3544
        %v3745 = vunpack.c.l.b16 %v3545
        %v3746 = vunpack.c.l.b16 %v3546
        %v3747 = vunpack.c.l.b16 %v3547
        %v3748 = vunpack.c.l.b16 %v3548
        %v3749 = vunpack.c.l.b16 %v3549
        %v3750 = vunpack.c.l.b16 %v3550
        %v3751 = vunpack.c.l.b16 %v3551
        %v3752 = vunpack.c.l.b16 %v3552
        %v3753 = vunpack.c.l.b16 %v3553
        %v3754 = vunpack.c.l.b16 %v3554
        %v3755 = vunpack.c.l.b16 %v3555
        %v3756 = vunpack.c.l.b16 %v3556
        %v3757 = vunpack.c.l.b16 %v3557
        %v3758 = vunpack.c.l.b16 %v3558
        %v3759 = vunpack.c.l.b16 %v3559
        %v3760 = vunpack.c.l.b16 %v3560
        %v3761 = vunpack.c.l.b16 %v3561
        %v3762 = vunpack.c.l.b16 %v3562
        %v3763 = vunpack.c.l.b16 %v3563
        %v3764 = vunpack.c.l.b16 %v3564
        %v3765 = vunpack.c.l.b16 %v3565
        %v3766 = vunpack.c.l.b16 %v3566
        %v3767 = vunpack.c.l.b16 %v3567
        %v3768 = vunpack.c.l.b16 %v3568
        %v3769 = vunpack.c.l.b16 %v3569
        %v3770 = vunpack.c.l.b16 %v3570
        %v3771 = vunpack.c.l.b16 %v3571
        %v3772 = vunpack.c.l.b16 %v3572
        %v3773 = vunpack.c.l.b16 %v3573
        %v3774 = vunpack.c.l.b16 %v3574
        %v3775 = vunpack.c.l.b16 %v3575
        %v3776 = vunpack.c.l.b16 %v3576
        %v3777 = vunpack.c.l.b16 %v3577
        %v3778 = vunpack.c.l.b16 %v3578
        %v3779 = vunpack.c.l.b16 %v3579
        %v3780 = vunpack.c.l.b16 %v3580
        %v3781 = vunpack.c.l.b16 %v3581
        %v3782 = vunpack.c.l.b16 %v3582
        %v3783 = vunpack.c.l.b16 %v3583
        %v3784 = vunpack.c.l.b16 %v3584
        %v3785 = vunpack.c.l.b16 %v3585
        %v3786 = vunpack.c.l.b16 %v3586
        %v3787 = vunpack.c.l.b16 %v3587
        %v3788 = vunpack.c.l.b16 %v3588
        %v3789 = vunpack.c.l.b16 %v3589
        %v3790 = vunpack.c.l.b16 %v3590
        %v3791 = vunpack.c.l.b16 %v3591
        %v3792 = vunpack.c.l.b16 %v3592
        %v3793 = vunpack.c.l.b16 %v3593
        %v3794 = vunpack.c.l.b16 %v3594
        %v3795 = vunpack.c.l.b16 %v3595
        %v3796 = vunpack.c.l.b16 %v3596
        %v3797 = vunpack.c.l.b16 %v3597
        %v3798 = vunpack.c.l.b16 %v3598
        %v3799 = vunpack.c.l.b16 %v3599
        %v3800 = vunpack.c.l.b16 %v3600
        %v3801 = vunpack.c.l.b16 %v3601
        %v3802 = vunpack.c.l.b16 %v3602
        %v3803 = vunpack.c.l.b16 %v3603
        %v3804 = vunpack.c.l.b16 %v3604
        %v3805 = vunpack.c.l.b16 %v3605
        %v3806 = vunpack.c.l.b16 %v3606
        %v3807 = vunpack.c.l.b16 %v3607
        %v3808 = vunpack.c.l.b16 %v3608
        %v3809 = vunpack.c.l.b16 %v3609
        %v3810 = vunpack.c.l.b16 %v3610
        %v3811 = vunpack.c.l.b16 %v3611
        %v3812 = vunpack.c.l.b16 %v3612
        %v3813 = vunpack.c.l.b16 %v3613
        %v3814 = vunpack.c.l.b16 %v3614
        %v3815 = vunpack.c.l.b16 %v3615
        %v3816 = vunpack.c.l.b16 %v3616
        %v3817 = vunpack.c.l.b16 %v3617
        %v3818 = vunpack.c.l.b16 %v3618
        %v3819 = vunpack.c.l.b16 %v3619
        %v3820 = vunpack.c.l.b16 %v3620
        %v3821 = vunpack.c.l.b16 %v3621
        %v3822 = vpack.c.b16 %v3743, %v3742
        %v3823 = vpack.c.b16 %v3745, %v3744
        %v3824 = vpack.c.b16 %v3747, %v3746
        %v3825 = vpack.c.b16 %v3749, %v3748
        %v3826 = vpack.c.b16 %v3751, %v3750
        %v3827 = vpack.c.b16 %v3753, %v3752
        %v3828 = vpack.c.b16 %v3755, %v3754
        %v3829 = vpack.c.b16 %v3757, %v3756
        %v3830 = vpack.c.b16 %v3759, %v3758
        %v3831 = vpack.c.b16 %v3761, %v3760
        %v3832 = vpack.c.b16 %v3763, %v3762
        %v3833 = vpack.c.b16 %v3765, %v3764
        %v3834 = vpack.c.b16 %v3767, %v3766
        %v3835 = vpack.c.b16 %v3769, %v3768
        %v3836 = vpack.c.b16 %v3771, %v3770
        %v3837 = vpack.c.b16 %v3773, %v3772
        %v3838 = vpack.c.b16 %v3775, %v3774
        %v3839 = vpack.c.b16 %v3777, %v3776
        %v3840 = vpack.c.b16 %v3779, %v3778
        %v3841 = vpack.c.b16 %v3781, %v3780
        %v3842 = vpack.c.b16 %v3783, %v3782
        %v3843 = vpack.c.b16 %v3785, %v3784
        %v3844 = vpack.c.b16 %v3787, %v3786
        %v3845 = vpack.c.b16 %v3789, %v3788
        %v3846 = vpack.c.b16 %v3791, %v3790
        %v3847 = vpack.c.b16 %v3793, %v3792
        %v3848 = vpack.c.b16 %v3795, %v3794
        %v3849 = vpack.c.b16 %v3797, %v3796
        %v3850 = vpack.c.b16 %v3799, %v3798
        %v3851 = vpack.c.b16 %v3801, %v3800
        %v3852 = vpack.c.b16 %v3803, %v3802
        %v3853 = vpack.c.b16 %v3805, %v3804
        %v3854 = vpack.c.b16 %v3807, %v3806
        %v3855 = vpack.c.b16 %v3809, %v3808
        %v3856 = vpack.c.b16 %v3811, %v3810
        %v3857 = vpack.c.b16 %v3813, %v3812
        %v3858 = vpack.c.b16 %v3815, %v3814
        %v3859 = vpack.c.b16 %v3817, %v3816
        %v3860 = vpack.c.b16 %v3819, %v3818
        %v3861 = vpack.c.b16 %v3821, %v3820
        %3902 = vmatpush.bf16.msra.mxu0 %v3829
        %3903 = vmatpush.bf16.msra.mxu0 %v3828
        %3904 = vmatpush.bf16.msra.mxu0 %v3827
        %3905 = vmatpush.bf16.msra.mxu0 %v3826
        %3906 = vmatpush.bf16.msra.mxu0 %v3825
        %3907 = vmatpush.bf16.msra.mxu0 %v3824
        %3908 = vmatpush.bf16.msra.mxu0 %v3823
        %3909 = vmatpush.bf16.msra.mxu0 %v3822
        %3910 = vmatmul.bf16.gmra.mxu0 %v3652
        %v3911 = vpop.f32.mrf.mxu0
        %v3912 = vadd.f32 0.0, %v3911
        %v3913 = vpop.f32.mrf.mxu0
        %3914 = vdwg.mxu0
        %3915 = vmatpush.bf16.msra.mxu0 %v3837
        %3916 = vmatpush.bf16.msra.mxu0 %v3836
        %3917 = vmatpush.bf16.msra.mxu0 %v3835
        %3918 = vmatpush.bf16.msra.mxu0 %v3834
        %3919 = vmatpush.bf16.msra.mxu0 %v3833
        %3920 = vmatpush.bf16.msra.mxu0 %v3832
        %3921 = vmatpush.bf16.msra.mxu0 %v3831
        %3922 = vmatpush.bf16.msra.mxu0 %v3830
        %3923 = vmatmul.bf16.gmra.mxu0 %v3653
        %v3924 = vpop.f32.mrf.mxu0
        %v3925 = vadd.f32 %v3912, %v3924
        %v3926 = vpop.f32.mrf.mxu0
        %3927 = vdwg.mxu0
        %3928 = vmatpush.bf16.msra.mxu0 %v3845
        %3929 = vmatpush.bf16.msra.mxu0 %v3844
        %3930 = vmatpush.bf16.msra.mxu0 %v3843
        %3931 = vmatpush.bf16.msra.mxu0 %v3842
        %3932 = vmatpush.bf16.msra.mxu0 %v3841
        %3933 = vmatpush.bf16.msra.mxu0 %v3840
        %3934 = vmatpush.bf16.msra.mxu0 %v3839
        %3935 = vmatpush.bf16.msra.mxu0 %v3838
        %3936 = vmatmul.bf16.gmra.mxu0 %v3654
        %v3937 = vpop.f32.mrf.mxu0
        %v3938 = vadd.f32 %v3925, %v3937
        %v3939 = vpop.f32.mrf.mxu0
        %3940 = vdwg.mxu0
        %3941 = vmatpush.bf16.msra.mxu0 %v3853
        %3942 = vmatpush.bf16.msra.mxu0 %v3852
        %3943 = vmatpush.bf16.msra.mxu0 %v3851
        %3944 = vmatpush.bf16.msra.mxu0 %v3850
        %3945 = vmatpush.bf16.msra.mxu0 %v3849
        %3946 = vmatpush.bf16.msra.mxu0 %v3848
        %3947 = vmatpush.bf16.msra.mxu0 %v3847
        %3948 = vmatpush.bf16.msra.mxu0 %v3846
        %3949 = vmatmul.bf16.gmra.mxu0 %v3655
        %v3950 = vpop.f32.mrf.mxu0
        %v3951 = vadd.f32 %v3938, %v3950
        %v3952 = vpop.f32.mrf.mxu0
        %3953 = vdwg.mxu0
        %3954 = vmatpush.bf16.msra.mxu0 %v3861
        %3955 = vmatpush.bf16.msra.mxu0 %v3860
        %3956 = vmatpush.bf16.msra.mxu0 %v3859
        %3957 = vmatpush.bf16.msra.mxu0 %v3858
        %3958 = vmatpush.bf16.msra.mxu0 %v3857
        %3959 = vmatpush.bf16.msra.mxu0 %v3856
        %3960 = vmatpush.bf16.msra.mxu0 %v3855
        %3961 = vmatpush.bf16.msra.mxu0 %v3854
        %3962 = vmatmul.bf16.gmra.mxu0 %v3656
        %v3963 = vpop.f32.mrf.mxu0
        %v3964 = vadd.f32 %v3951, %v3963
        %v3965 = vpop.f32.mrf.mxu0
        %3966 = vdwg.mxu0
        %v3967 = vadd.f32 %v3500, %v3964
        %s3968 = scalar_lea.vmem [#allocation4], 6
        %v3969 = vld [vmem:[%s3968] ss:$8 sm:$0xf]
        %v3970 = vld [vmem:[%s3968] ss:$8 sm:$0x10]
        %v3971 = vor.u32 %v3969, %v3970
        %s3972 = scalar_lea.vmem [#allocation4], 46
        %v3973 = vld [vmem:[%s3972] ss:$8 sm:$0xf]
        %v3974 = vld [vmem:[%s3972] ss:$8 sm:$0x10]
        %v3975 = vor.u32 %v3973, %v3974
        %v3978 = vperm.slane %v3971, 0
        %v3979 = vperm.slane %v3971, 1
        %v3980 = vperm.slane %v3971, 2
        %v3981 = vperm.slane %v3971, 3
        %v3982 = vperm.slane %v3971, 4
        %v3983 = vperm.slane %v3975, 0
        %v3984 = vperm.slane %v3975, 1
        %v3985 = vperm.slane %v3975, 2
        %v3986 = vperm.slane %v3975, 3
        %v3987 = vperm.slane %v3975, 4
        %v3998 = vpack.c.bf16 %v3978, %v3978
        %v3999 = vpack.c.bf16 %v3979, %v3979
        %v4000 = vpack.c.bf16 %v3980, %v3980
        %v4001 = vpack.c.bf16 %v3981, %v3981
        %v4002 = vpack.c.bf16 %v3982, %v3982
        %v4003 = vpack.c.bf16 %v3983, %v3983
        %v4004 = vpack.c.bf16 %v3984, %v3984
        %v4005 = vpack.c.bf16 %v3985, %v3985
        %v4006 = vpack.c.bf16 %v3986, %v3986
        %v4007 = vpack.c.bf16 %v3987, %v3987
        %s4008 = scalar_lea.vmem %s5, 1920
        %v4009 = vld [vmem:[%s4008] sm:$0xf]
        %v4010 = vld [vmem:[%s4008 + $0x4] sm:$0xf]
        %v4011 = vld [vmem:[%s4008 + $0x8] sm:$0xf]
        %v4012 = vld [vmem:[%s4008 + $0xc] sm:$0xf]
        %v4013 = vld [vmem:[%s4008 + $0x10] sm:$0xf]
        %v4014 = vld [vmem:[%s4008 + $0x14] sm:$0xf]
        %v4015 = vld [vmem:[%s4008 + $0x18] sm:$0xf]
        %v4016 = vld [vmem:[%s4008 + $0x1c] sm:$0xf]
        %v4017 = vld [vmem:[%s4008 + $0x20] sm:$0xf]
        %v4018 = vld [vmem:[%s4008 + $0x24] sm:$0xf]
        %v4019 = vld [vmem:[%s4008 + $0x28] sm:$0xf]
        %v4020 = vld [vmem:[%s4008 + $0x2c] sm:$0xf]
        %v4021 = vld [vmem:[%s4008 + $0x30] sm:$0xf]
        %v4022 = vld [vmem:[%s4008 + $0x34] sm:$0xf]
        %v4023 = vld [vmem:[%s4008 + $0x38] sm:$0xf]
        %v4024 = vld [vmem:[%s4008 + $0x3c] sm:$0xf]
        %v4025 = vld [vmem:[%s4008 + $0x40] sm:$0xf]
        %v4026 = vld [vmem:[%s4008 + $0x44] sm:$0xf]
        %v4027 = vld [vmem:[%s4008 + $0x48] sm:$0xf]
        %v4028 = vld [vmem:[%s4008 + $0x4c] sm:$0xf]
        %v4029 = vld [vmem:[%s4008 + $0x50] sm:$0xf]
        %v4030 = vld [vmem:[%s4008 + $0x54] sm:$0xf]
        %v4031 = vld [vmem:[%s4008 + $0x58] sm:$0xf]
        %v4032 = vld [vmem:[%s4008 + $0x5c] sm:$0xf]
        %v4033 = vld [vmem:[%s4008 + $0x60] sm:$0xf]
        %v4034 = vld [vmem:[%s4008 + $0x64] sm:$0xf]
        %v4035 = vld [vmem:[%s4008 + $0x68] sm:$0xf]
        %v4036 = vld [vmem:[%s4008 + $0x6c] sm:$0xf]
        %v4037 = vld [vmem:[%s4008 + $0x70] sm:$0xf]
        %v4038 = vld [vmem:[%s4008 + $0x74] sm:$0xf]
        %v4039 = vld [vmem:[%s4008 + $0x78] sm:$0xf]
        %v4040 = vld [vmem:[%s4008 + $0x7c] sm:$0xf]
        %v4041 = vld [vmem:[%s4008 + $0x80] sm:$0xf]
        %v4042 = vld [vmem:[%s4008 + $0x84] sm:$0xf]
        %v4043 = vld [vmem:[%s4008 + $0x88] sm:$0xf]
        %v4044 = vld [vmem:[%s4008 + $0x8c] sm:$0xf]
        %v4045 = vld [vmem:[%s4008 + $0x90] sm:$0xf]
        %v4046 = vld [vmem:[%s4008 + $0x94] sm:$0xf]
        %v4047 = vld [vmem:[%s4008 + $0x98] sm:$0xf]
        %v4048 = vld [vmem:[%s4008 + $0x9c] sm:$0xf]
        %v4049 = vld [vmem:[%s4008 + $0xa0] sm:$0xf]
        %v4050 = vld [vmem:[%s4008 + $0xa4] sm:$0xf]
        %v4051 = vld [vmem:[%s4008 + $0xa8] sm:$0xf]
        %v4052 = vld [vmem:[%s4008 + $0xac] sm:$0xf]
        %v4053 = vld [vmem:[%s4008 + $0xb0] sm:$0xf]
        %v4054 = vld [vmem:[%s4008 + $0xb4] sm:$0xf]
        %v4055 = vld [vmem:[%s4008 + $0xb8] sm:$0xf]
        %v4056 = vld [vmem:[%s4008 + $0xbc] sm:$0xf]
        %v4057 = vld [vmem:[%s4008 + $0xc0] sm:$0xf]
        %v4058 = vld [vmem:[%s4008 + $0xc4] sm:$0xf]
        %v4059 = vld [vmem:[%s4008 + $0xc8] sm:$0xf]
        %v4060 = vld [vmem:[%s4008 + $0xcc] sm:$0xf]
        %v4061 = vld [vmem:[%s4008 + $0xd0] sm:$0xf]
        %v4062 = vld [vmem:[%s4008 + $0xd4] sm:$0xf]
        %v4063 = vld [vmem:[%s4008 + $0xd8] sm:$0xf]
        %v4064 = vld [vmem:[%s4008 + $0xdc] sm:$0xf]
        %v4065 = vld [vmem:[%s4008 + $0xe0] sm:$0xf]
        %v4066 = vld [vmem:[%s4008 + $0xe4] sm:$0xf]
        %v4067 = vld [vmem:[%s4008 + $0xe8] sm:$0xf]
        %v4068 = vld [vmem:[%s4008 + $0xec] sm:$0xf]
        %v4069 = vld [vmem:[%s4008 + $0xf0] sm:$0xf]
        %v4070 = vld [vmem:[%s4008 + $0xf4] sm:$0xf]
        %v4071 = vld [vmem:[%s4008 + $0xf8] sm:$0xf]
        %v4072 = vld [vmem:[%s4008 + $0xfc] sm:$0xf]
        %v4073 = vld [vmem:[%s4008 + $0x100] sm:$0xf]
        %v4074 = vld [vmem:[%s4008 + $0x104] sm:$0xf]
        %v4075 = vld [vmem:[%s4008 + $0x108] sm:$0xf]
        %v4076 = vld [vmem:[%s4008 + $0x10c] sm:$0xf]
        %v4077 = vld [vmem:[%s4008 + $0x110] sm:$0xf]
        %v4078 = vld [vmem:[%s4008 + $0x114] sm:$0xf]
        %v4079 = vld [vmem:[%s4008 + $0x118] sm:$0xf]
        %v4080 = vld [vmem:[%s4008 + $0x11c] sm:$0xf]
        %v4081 = vld [vmem:[%s4008 + $0x120] sm:$0xf]
        %v4082 = vld [vmem:[%s4008 + $0x124] sm:$0xf]
        %v4083 = vld [vmem:[%s4008 + $0x128] sm:$0xf]
        %v4084 = vld [vmem:[%s4008 + $0x12c] sm:$0xf]
        %v4085 = vld [vmem:[%s4008 + $0x130] sm:$0xf]
        %v4086 = vld [vmem:[%s4008 + $0x134] sm:$0xf]
        %v4087 = vld [vmem:[%s4008 + $0x138] sm:$0xf]
        %v4088 = vld [vmem:[%s4008 + $0x13c] sm:$0xf]
        %v4099 = vunpack.c.l.b16 %v3998
        %v4100 = vunpack.c.l.b16 %v3999
        %v4101 = vunpack.c.l.b16 %v4000
        %v4102 = vunpack.c.l.b16 %v4001
        %v4103 = vunpack.c.l.b16 %v4002
        %v4104 = vunpack.c.l.b16 %v4003
        %v4105 = vunpack.c.l.b16 %v4004
        %v4106 = vunpack.c.l.b16 %v4005
        %v4107 = vunpack.c.l.b16 %v4006
        %v4108 = vunpack.c.l.b16 %v4007
        %v4109 = vrot.slane %v4104, 7
        %v4110 = vsel %vm1430, %v4109, %v4099
        %v4111 = vrot.slane %v4105, 7
        %v4112 = vsel %vm1430, %v4111, %v4100
        %v4113 = vrot.slane %v4106, 7
        %v4114 = vsel %vm1430, %v4113, %v4101
        %v4115 = vrot.slane %v4107, 7
        %v4116 = vsel %vm1430, %v4115, %v4102
        %v4117 = vrot.slane %v4108, 7
        %v4118 = vsel %vm1430, %v4117, %v4103
        %v4119 = vpack.c.b16 %v4110, %v4110
        %v4120 = vpack.c.b16 %v4112, %v4112
        %v4121 = vpack.c.b16 %v4114, %v4114
        %v4122 = vpack.c.b16 %v4116, %v4116
        %v4123 = vpack.c.b16 %v4118, %v4118
        %v4209 = vunpack.c.l.b16 %v4009
        %v4210 = vunpack.c.l.b16 %v4010
        %v4211 = vunpack.c.l.b16 %v4011
        %v4212 = vunpack.c.l.b16 %v4012
        %v4213 = vunpack.c.l.b16 %v4013
        %v4214 = vunpack.c.l.b16 %v4014
        %v4215 = vunpack.c.l.b16 %v4015
        %v4216 = vunpack.c.l.b16 %v4016
        %v4217 = vunpack.c.l.b16 %v4017
        %v4218 = vunpack.c.l.b16 %v4018
        %v4219 = vunpack.c.l.b16 %v4019
        %v4220 = vunpack.c.l.b16 %v4020
        %v4221 = vunpack.c.l.b16 %v4021
        %v4222 = vunpack.c.l.b16 %v4022
        %v4223 = vunpack.c.l.b16 %v4023
        %v4224 = vunpack.c.l.b16 %v4024
        %v4225 = vunpack.c.l.b16 %v4025
        %v4226 = vunpack.c.l.b16 %v4026
        %v4227 = vunpack.c.l.b16 %v4027
        %v4228 = vunpack.c.l.b16 %v4028
        %v4229 = vunpack.c.l.b16 %v4029
        %v4230 = vunpack.c.l.b16 %v4030
        %v4231 = vunpack.c.l.b16 %v4031
        %v4232 = vunpack.c.l.b16 %v4032
        %v4233 = vunpack.c.l.b16 %v4033
        %v4234 = vunpack.c.l.b16 %v4034
        %v4235 = vunpack.c.l.b16 %v4035
        %v4236 = vunpack.c.l.b16 %v4036
        %v4237 = vunpack.c.l.b16 %v4037
        %v4238 = vunpack.c.l.b16 %v4038
        %v4239 = vunpack.c.l.b16 %v4039
        %v4240 = vunpack.c.l.b16 %v4040
        %v4241 = vunpack.c.l.b16 %v4041
        %v4242 = vunpack.c.l.b16 %v4042
        %v4243 = vunpack.c.l.b16 %v4043
        %v4244 = vunpack.c.l.b16 %v4044
        %v4245 = vunpack.c.l.b16 %v4045
        %v4246 = vunpack.c.l.b16 %v4046
        %v4247 = vunpack.c.l.b16 %v4047
        %v4248 = vunpack.c.l.b16 %v4048
        %v4249 = vunpack.c.l.b16 %v4049
        %v4250 = vunpack.c.l.b16 %v4050
        %v4251 = vunpack.c.l.b16 %v4051
        %v4252 = vunpack.c.l.b16 %v4052
        %v4253 = vunpack.c.l.b16 %v4053
        %v4254 = vunpack.c.l.b16 %v4054
        %v4255 = vunpack.c.l.b16 %v4055
        %v4256 = vunpack.c.l.b16 %v4056
        %v4257 = vunpack.c.l.b16 %v4057
        %v4258 = vunpack.c.l.b16 %v4058
        %v4259 = vunpack.c.l.b16 %v4059
        %v4260 = vunpack.c.l.b16 %v4060
        %v4261 = vunpack.c.l.b16 %v4061
        %v4262 = vunpack.c.l.b16 %v4062
        %v4263 = vunpack.c.l.b16 %v4063
        %v4264 = vunpack.c.l.b16 %v4064
        %v4265 = vunpack.c.l.b16 %v4065
        %v4266 = vunpack.c.l.b16 %v4066
        %v4267 = vunpack.c.l.b16 %v4067
        %v4268 = vunpack.c.l.b16 %v4068
        %v4269 = vunpack.c.l.b16 %v4069
        %v4270 = vunpack.c.l.b16 %v4070
        %v4271 = vunpack.c.l.b16 %v4071
        %v4272 = vunpack.c.l.b16 %v4072
        %v4273 = vunpack.c.l.b16 %v4073
        %v4274 = vunpack.c.l.b16 %v4074
        %v4275 = vunpack.c.l.b16 %v4075
        %v4276 = vunpack.c.l.b16 %v4076
        %v4277 = vunpack.c.l.b16 %v4077
        %v4278 = vunpack.c.l.b16 %v4078
        %v4279 = vunpack.c.l.b16 %v4079
        %v4280 = vunpack.c.l.b16 %v4080
        %v4281 = vunpack.c.l.b16 %v4081
        %v4282 = vunpack.c.l.b16 %v4082
        %v4283 = vunpack.c.l.b16 %v4083
        %v4284 = vunpack.c.l.b16 %v4084
        %v4285 = vunpack.c.l.b16 %v4085
        %v4286 = vunpack.c.l.b16 %v4086
        %v4287 = vunpack.c.l.b16 %v4087
        %v4288 = vunpack.c.l.b16 %v4088
        %v4289 = vpack.c.b16 %v4210, %v4209
        %v4290 = vpack.c.b16 %v4212, %v4211
        %v4291 = vpack.c.b16 %v4214, %v4213
        %v4292 = vpack.c.b16 %v4216, %v4215
        %v4293 = vpack.c.b16 %v4218, %v4217
        %v4294 = vpack.c.b16 %v4220, %v4219
        %v4295 = vpack.c.b16 %v4222, %v4221
        %v4296 = vpack.c.b16 %v4224, %v4223
        %v4297 = vpack.c.b16 %v4226, %v4225
        %v4298 = vpack.c.b16 %v4228, %v4227
        %v4299 = vpack.c.b16 %v4230, %v4229
        %v4300 = vpack.c.b16 %v4232, %v4231
        %v4301 = vpack.c.b16 %v4234, %v4233
        %v4302 = vpack.c.b16 %v4236, %v4235
        %v4303 = vpack.c.b16 %v4238, %v4237
        %v4304 = vpack.c.b16 %v4240, %v4239
        %v4305 = vpack.c.b16 %v4242, %v4241
        %v4306 = vpack.c.b16 %v4244, %v4243
        %v4307 = vpack.c.b16 %v4246, %v4245
        %v4308 = vpack.c.b16 %v4248, %v4247
        %v4309 = vpack.c.b16 %v4250, %v4249
        %v4310 = vpack.c.b16 %v4252, %v4251
        %v4311 = vpack.c.b16 %v4254, %v4253
        %v4312 = vpack.c.b16 %v4256, %v4255
        %v4313 = vpack.c.b16 %v4258, %v4257
        %v4314 = vpack.c.b16 %v4260, %v4259
        %v4315 = vpack.c.b16 %v4262, %v4261
        %v4316 = vpack.c.b16 %v4264, %v4263
        %v4317 = vpack.c.b16 %v4266, %v4265
        %v4318 = vpack.c.b16 %v4268, %v4267
        %v4319 = vpack.c.b16 %v4270, %v4269
        %v4320 = vpack.c.b16 %v4272, %v4271
        %v4321 = vpack.c.b16 %v4274, %v4273
        %v4322 = vpack.c.b16 %v4276, %v4275
        %v4323 = vpack.c.b16 %v4278, %v4277
        %v4324 = vpack.c.b16 %v4280, %v4279
        %v4325 = vpack.c.b16 %v4282, %v4281
        %v4326 = vpack.c.b16 %v4284, %v4283
        %v4327 = vpack.c.b16 %v4286, %v4285
        %v4328 = vpack.c.b16 %v4288, %v4287
        %4369 = vmatpush.bf16.msra.mxu0 %v4296
        %4370 = vmatpush.bf16.msra.mxu0 %v4295
        %4371 = vmatpush.bf16.msra.mxu0 %v4294
        %4372 = vmatpush.bf16.msra.mxu0 %v4293
        %4373 = vmatpush.bf16.msra.mxu0 %v4292
        %4374 = vmatpush.bf16.msra.mxu0 %v4291
        %4375 = vmatpush.bf16.msra.mxu0 %v4290
        %4376 = vmatpush.bf16.msra.mxu0 %v4289
        %4377 = vmatmul.bf16.gmra.mxu0 %v4119
        %v4378 = vpop.f32.mrf.mxu0
        %v4379 = vadd.f32 0.0, %v4378
        %v4380 = vpop.f32.mrf.mxu0
        %4381 = vdwg.mxu0
        %4382 = vmatpush.bf16.msra.mxu0 %v4304
        %4383 = vmatpush.bf16.msra.mxu0 %v4303
        %4384 = vmatpush.bf16.msra.mxu0 %v4302
        %4385 = vmatpush.bf16.msra.mxu0 %v4301
        %4386 = vmatpush.bf16.msra.mxu0 %v4300
        %4387 = vmatpush.bf16.msra.mxu0 %v4299
        %4388 = vmatpush.bf16.msra.mxu0 %v4298
        %4389 = vmatpush.bf16.msra.mxu0 %v4297
        %4390 = vmatmul.bf16.gmra.mxu0 %v4120
        %v4391 = vpop.f32.mrf.mxu0
        %v4392 = vadd.f32 %v4379, %v4391
        %v4393 = vpop.f32.mrf.mxu0
        %4394 = vdwg.mxu0
        %4395 = vmatpush.bf16.msra.mxu0 %v4312
        %4396 = vmatpush.bf16.msra.mxu0 %v4311
        %4397 = vmatpush.bf16.msra.mxu0 %v4310
        %4398 = vmatpush.bf16.msra.mxu0 %v4309
        %4399 = vmatpush.bf16.msra.mxu0 %v4308
        %4400 = vmatpush.bf16.msra.mxu0 %v4307
        %4401 = vmatpush.bf16.msra.mxu0 %v4306
        %4402 = vmatpush.bf16.msra.mxu0 %v4305
        %4403 = vmatmul.bf16.gmra.mxu0 %v4121
        %v4404 = vpop.f32.mrf.mxu0
        %v4405 = vadd.f32 %v4392, %v4404
        %v4406 = vpop.f32.mrf.mxu0
        %4407 = vdwg.mxu0
        %4408 = vmatpush.bf16.msra.mxu0 %v4320
        %4409 = vmatpush.bf16.msra.mxu0 %v4319
        %4410 = vmatpush.bf16.msra.mxu0 %v4318
        %4411 = vmatpush.bf16.msra.mxu0 %v4317
        %4412 = vmatpush.bf16.msra.mxu0 %v4316
        %4413 = vmatpush.bf16.msra.mxu0 %v4315
        %4414 = vmatpush.bf16.msra.mxu0 %v4314
        %4415 = vmatpush.bf16.msra.mxu0 %v4313
        %4416 = vmatmul.bf16.gmra.mxu0 %v4122
        %v4417 = vpop.f32.mrf.mxu0
        %v4418 = vadd.f32 %v4405, %v4417
        %v4419 = vpop.f32.mrf.mxu0
        %4420 = vdwg.mxu0
        %4421 = vmatpush.bf16.msra.mxu0 %v4328
        %4422 = vmatpush.bf16.msra.mxu0 %v4327
        %4423 = vmatpush.bf16.msra.mxu0 %v4326
        %4424 = vmatpush.bf16.msra.mxu0 %v4325
        %4425 = vmatpush.bf16.msra.mxu0 %v4324
        %4426 = vmatpush.bf16.msra.mxu0 %v4323
        %4427 = vmatpush.bf16.msra.mxu0 %v4322
        %4428 = vmatpush.bf16.msra.mxu0 %v4321
        %4429 = vmatmul.bf16.gmra.mxu0 %v4123
        %v4430 = vpop.f32.mrf.mxu0
        %v4431 = vadd.f32 %v4418, %v4430
        %v4432 = vpop.f32.mrf.mxu0
        %4433 = vdwg.mxu0
        %v4434 = vadd.f32 %v3967, %v4431
        %s4435 = scalar_lea.vmem [#allocation4], 7
        %v4436 = vld [vmem:[%s4435] ss:$8 sm:$0xf]
        %v4437 = vld [vmem:[%s4435] ss:$8 sm:$0x10]
        %v4438 = vor.u32 %v4436, %v4437
        %s4439 = scalar_lea.vmem [#allocation4], 47
        %v4440 = vld [vmem:[%s4439] ss:$8 sm:$0xf]
        %v4441 = vld [vmem:[%s4439] ss:$8 sm:$0x10]
        %v4442 = vor.u32 %v4440, %v4441
        %v4445 = vperm.slane %v4438, 0
        %v4446 = vperm.slane %v4438, 1
        %v4447 = vperm.slane %v4438, 2
        %v4448 = vperm.slane %v4438, 3
        %v4449 = vperm.slane %v4438, 4
        %v4450 = vperm.slane %v4442, 0
        %v4451 = vperm.slane %v4442, 1
        %v4452 = vperm.slane %v4442, 2
        %v4453 = vperm.slane %v4442, 3
        %v4454 = vperm.slane %v4442, 4
        %v4465 = vpack.c.bf16 %v4445, %v4445
        %v4466 = vpack.c.bf16 %v4446, %v4446
        %v4467 = vpack.c.bf16 %v4447, %v4447
        %v4468 = vpack.c.bf16 %v4448, %v4448
        %v4469 = vpack.c.bf16 %v4449, %v4449
        %v4470 = vpack.c.bf16 %v4450, %v4450
        %v4471 = vpack.c.bf16 %v4451, %v4451
        %v4472 = vpack.c.bf16 %v4452, %v4452
        %v4473 = vpack.c.bf16 %v4453, %v4453
        %v4474 = vpack.c.bf16 %v4454, %v4454
        %s4475 = scalar_lea.vmem %s5, 2240
        %v4476 = vld [vmem:[%s4475] sm:$0xf]
        %v4477 = vld [vmem:[%s4475 + $0x4] sm:$0xf]
        %v4478 = vld [vmem:[%s4475 + $0x8] sm:$0xf]
        %v4479 = vld [vmem:[%s4475 + $0xc] sm:$0xf]
        %v4480 = vld [vmem:[%s4475 + $0x10] sm:$0xf]
        %v4481 = vld [vmem:[%s4475 + $0x14] sm:$0xf]
        %v4482 = vld [vmem:[%s4475 + $0x18] sm:$0xf]
        %v4483 = vld [vmem:[%s4475 + $0x1c] sm:$0xf]
        %v4484 = vld [vmem:[%s4475 + $0x20] sm:$0xf]
        %v4485 = vld [vmem:[%s4475 + $0x24] sm:$0xf]
        %v4486 = vld [vmem:[%s4475 + $0x28] sm:$0xf]
        %v4487 = vld [vmem:[%s4475 + $0x2c] sm:$0xf]
        %v4488 = vld [vmem:[%s4475 + $0x30] sm:$0xf]
        %v4489 = vld [vmem:[%s4475 + $0x34] sm:$0xf]
        %v4490 = vld [vmem:[%s4475 + $0x38] sm:$0xf]
        %v4491 = vld [vmem:[%s4475 + $0x3c] sm:$0xf]
        %v4492 = vld [vmem:[%s4475 + $0x40] sm:$0xf]
        %v4493 = vld [vmem:[%s4475 + $0x44] sm:$0xf]
        %v4494 = vld [vmem:[%s4475 + $0x48] sm:$0xf]
        %v4495 = vld [vmem:[%s4475 + $0x4c] sm:$0xf]
        %v4496 = vld [vmem:[%s4475 + $0x50] sm:$0xf]
        %v4497 = vld [vmem:[%s4475 + $0x54] sm:$0xf]
        %v4498 = vld [vmem:[%s4475 + $0x58] sm:$0xf]
        %v4499 = vld [vmem:[%s4475 + $0x5c] sm:$0xf]
        %v4500 = vld [vmem:[%s4475 + $0x60] sm:$0xf]
        %v4501 = vld [vmem:[%s4475 + $0x64] sm:$0xf]
        %v4502 = vld [vmem:[%s4475 + $0x68] sm:$0xf]
        %v4503 = vld [vmem:[%s4475 + $0x6c] sm:$0xf]
        %v4504 = vld [vmem:[%s4475 + $0x70] sm:$0xf]
        %v4505 = vld [vmem:[%s4475 + $0x74] sm:$0xf]
        %v4506 = vld [vmem:[%s4475 + $0x78] sm:$0xf]
        %v4507 = vld [vmem:[%s4475 + $0x7c] sm:$0xf]
        %v4508 = vld [vmem:[%s4475 + $0x80] sm:$0xf]
        %v4509 = vld [vmem:[%s4475 + $0x84] sm:$0xf]
        %v4510 = vld [vmem:[%s4475 + $0x88] sm:$0xf]
        %v4511 = vld [vmem:[%s4475 + $0x8c] sm:$0xf]
        %v4512 = vld [vmem:[%s4475 + $0x90] sm:$0xf]
        %v4513 = vld [vmem:[%s4475 + $0x94] sm:$0xf]
        %v4514 = vld [vmem:[%s4475 + $0x98] sm:$0xf]
        %v4515 = vld [vmem:[%s4475 + $0x9c] sm:$0xf]
        %v4516 = vld [vmem:[%s4475 + $0xa0] sm:$0xf]
        %v4517 = vld [vmem:[%s4475 + $0xa4] sm:$0xf]
        %v4518 = vld [vmem:[%s4475 + $0xa8] sm:$0xf]
        %v4519 = vld [vmem:[%s4475 + $0xac] sm:$0xf]
        %v4520 = vld [vmem:[%s4475 + $0xb0] sm:$0xf]
        %v4521 = vld [vmem:[%s4475 + $0xb4] sm:$0xf]
        %v4522 = vld [vmem:[%s4475 + $0xb8] sm:$0xf]
        %v4523 = vld [vmem:[%s4475 + $0xbc] sm:$0xf]
        %v4524 = vld [vmem:[%s4475 + $0xc0] sm:$0xf]
        %v4525 = vld [vmem:[%s4475 + $0xc4] sm:$0xf]
        %v4526 = vld [vmem:[%s4475 + $0xc8] sm:$0xf]
        %v4527 = vld [vmem:[%s4475 + $0xcc] sm:$0xf]
        %v4528 = vld [vmem:[%s4475 + $0xd0] sm:$0xf]
        %v4529 = vld [vmem:[%s4475 + $0xd4] sm:$0xf]
        %v4530 = vld [vmem:[%s4475 + $0xd8] sm:$0xf]
        %v4531 = vld [vmem:[%s4475 + $0xdc] sm:$0xf]
        %v4532 = vld [vmem:[%s4475 + $0xe0] sm:$0xf]
        %v4533 = vld [vmem:[%s4475 + $0xe4] sm:$0xf]
        %v4534 = vld [vmem:[%s4475 + $0xe8] sm:$0xf]
        %v4535 = vld [vmem:[%s4475 + $0xec] sm:$0xf]
        %v4536 = vld [vmem:[%s4475 + $0xf0] sm:$0xf]
        %v4537 = vld [vmem:[%s4475 + $0xf4] sm:$0xf]
        %v4538 = vld [vmem:[%s4475 + $0xf8] sm:$0xf]
        %v4539 = vld [vmem:[%s4475 + $0xfc] sm:$0xf]
        %v4540 = vld [vmem:[%s4475 + $0x100] sm:$0xf]
        %v4541 = vld [vmem:[%s4475 + $0x104] sm:$0xf]
        %v4542 = vld [vmem:[%s4475 + $0x108] sm:$0xf]
        %v4543 = vld [vmem:[%s4475 + $0x10c] sm:$0xf]
        %v4544 = vld [vmem:[%s4475 + $0x110] sm:$0xf]
        %v4545 = vld [vmem:[%s4475 + $0x114] sm:$0xf]
        %v4546 = vld [vmem:[%s4475 + $0x118] sm:$0xf]
        %v4547 = vld [vmem:[%s4475 + $0x11c] sm:$0xf]
        %v4548 = vld [vmem:[%s4475 + $0x120] sm:$0xf]
        %v4549 = vld [vmem:[%s4475 + $0x124] sm:$0xf]
        %v4550 = vld [vmem:[%s4475 + $0x128] sm:$0xf]
        %v4551 = vld [vmem:[%s4475 + $0x12c] sm:$0xf]
        %v4552 = vld [vmem:[%s4475 + $0x130] sm:$0xf]
        %v4553 = vld [vmem:[%s4475 + $0x134] sm:$0xf]
        %v4554 = vld [vmem:[%s4475 + $0x138] sm:$0xf]
        %v4555 = vld [vmem:[%s4475 + $0x13c] sm:$0xf]
        %v4566 = vunpack.c.l.b16 %v4465
        %v4567 = vunpack.c.l.b16 %v4466
        %v4568 = vunpack.c.l.b16 %v4467
        %v4569 = vunpack.c.l.b16 %v4468
        %v4570 = vunpack.c.l.b16 %v4469
        %v4571 = vunpack.c.l.b16 %v4470
        %v4572 = vunpack.c.l.b16 %v4471
        %v4573 = vunpack.c.l.b16 %v4472
        %v4574 = vunpack.c.l.b16 %v4473
        %v4575 = vunpack.c.l.b16 %v4474
        %v4576 = vrot.slane %v4571, 7
        %v4577 = vsel %vm1430, %v4576, %v4566
        %v4578 = vrot.slane %v4572, 7
        %v4579 = vsel %vm1430, %v4578, %v4567
        %v4580 = vrot.slane %v4573, 7
        %v4581 = vsel %vm1430, %v4580, %v4568
        %v4582 = vrot.slane %v4574, 7
        %v4583 = vsel %vm1430, %v4582, %v4569
        %v4584 = vrot.slane %v4575, 7
        %v4585 = vsel %vm1430, %v4584, %v4570
        %v4586 = vpack.c.b16 %v4577, %v4577
        %v4587 = vpack.c.b16 %v4579, %v4579
        %v4588 = vpack.c.b16 %v4581, %v4581
        %v4589 = vpack.c.b16 %v4583, %v4583
        %v4590 = vpack.c.b16 %v4585, %v4585
        %v4676 = vunpack.c.l.b16 %v4476
        %v4677 = vunpack.c.l.b16 %v4477
        %v4678 = vunpack.c.l.b16 %v4478
        %v4679 = vunpack.c.l.b16 %v4479
        %v4680 = vunpack.c.l.b16 %v4480
        %v4681 = vunpack.c.l.b16 %v4481
        %v4682 = vunpack.c.l.b16 %v4482
        %v4683 = vunpack.c.l.b16 %v4483
        %v4684 = vunpack.c.l.b16 %v4484
        %v4685 = vunpack.c.l.b16 %v4485
        %v4686 = vunpack.c.l.b16 %v4486
        %v4687 = vunpack.c.l.b16 %v4487
        %v4688 = vunpack.c.l.b16 %v4488
        %v4689 = vunpack.c.l.b16 %v4489
        %v4690 = vunpack.c.l.b16 %v4490
        %v4691 = vunpack.c.l.b16 %v4491
        %v4692 = vunpack.c.l.b16 %v4492
        %v4693 = vunpack.c.l.b16 %v4493
        %v4694 = vunpack.c.l.b16 %v4494
        %v4695 = vunpack.c.l.b16 %v4495
        %v4696 = vunpack.c.l.b16 %v4496
        %v4697 = vunpack.c.l.b16 %v4497
        %v4698 = vunpack.c.l.b16 %v4498
        %v4699 = vunpack.c.l.b16 %v4499
        %v4700 = vunpack.c.l.b16 %v4500
        %v4701 = vunpack.c.l.b16 %v4501
        %v4702 = vunpack.c.l.b16 %v4502
        %v4703 = vunpack.c.l.b16 %v4503
        %v4704 = vunpack.c.l.b16 %v4504
        %v4705 = vunpack.c.l.b16 %v4505
        %v4706 = vunpack.c.l.b16 %v4506
        %v4707 = vunpack.c.l.b16 %v4507
        %v4708 = vunpack.c.l.b16 %v4508
        %v4709 = vunpack.c.l.b16 %v4509
        %v4710 = vunpack.c.l.b16 %v4510
        %v4711 = vunpack.c.l.b16 %v4511
        %v4712 = vunpack.c.l.b16 %v4512
        %v4713 = vunpack.c.l.b16 %v4513
        %v4714 = vunpack.c.l.b16 %v4514
        %v4715 = vunpack.c.l.b16 %v4515
        %v4716 = vunpack.c.l.b16 %v4516
        %v4717 = vunpack.c.l.b16 %v4517
        %v4718 = vunpack.c.l.b16 %v4518
        %v4719 = vunpack.c.l.b16 %v4519
        %v4720 = vunpack.c.l.b16 %v4520
        %v4721 = vunpack.c.l.b16 %v4521
        %v4722 = vunpack.c.l.b16 %v4522
        %v4723 = vunpack.c.l.b16 %v4523
        %v4724 = vunpack.c.l.b16 %v4524
        %v4725 = vunpack.c.l.b16 %v4525
        %v4726 = vunpack.c.l.b16 %v4526
        %v4727 = vunpack.c.l.b16 %v4527
        %v4728 = vunpack.c.l.b16 %v4528
        %v4729 = vunpack.c.l.b16 %v4529
        %v4730 = vunpack.c.l.b16 %v4530
        %v4731 = vunpack.c.l.b16 %v4531
        %v4732 = vunpack.c.l.b16 %v4532
        %v4733 = vunpack.c.l.b16 %v4533
        %v4734 = vunpack.c.l.b16 %v4534
        %v4735 = vunpack.c.l.b16 %v4535
        %v4736 = vunpack.c.l.b16 %v4536
        %v4737 = vunpack.c.l.b16 %v4537
        %v4738 = vunpack.c.l.b16 %v4538
        %v4739 = vunpack.c.l.b16 %v4539
        %v4740 = vunpack.c.l.b16 %v4540
        %v4741 = vunpack.c.l.b16 %v4541
        %v4742 = vunpack.c.l.b16 %v4542
        %v4743 = vunpack.c.l.b16 %v4543
        %v4744 = vunpack.c.l.b16 %v4544
        %v4745 = vunpack.c.l.b16 %v4545
        %v4746 = vunpack.c.l.b16 %v4546
        %v4747 = vunpack.c.l.b16 %v4547
        %v4748 = vunpack.c.l.b16 %v4548
        %v4749 = vunpack.c.l.b16 %v4549
        %v4750 = vunpack.c.l.b16 %v4550
        %v4751 = vunpack.c.l.b16 %v4551
        %v4752 = vunpack.c.l.b16 %v4552
        %v4753 = vunpack.c.l.b16 %v4553
        %v4754 = vunpack.c.l.b16 %v4554
        %v4755 = vunpack.c.l.b16 %v4555
        %v4756 = vpack.c.b16 %v4677, %v4676
        %v4757 = vpack.c.b16 %v4679, %v4678
        %v4758 = vpack.c.b16 %v4681, %v4680
        %v4759 = vpack.c.b16 %v4683, %v4682
        %v4760 = vpack.c.b16 %v4685, %v4684
        %v4761 = vpack.c.b16 %v4687, %v4686
        %v4762 = vpack.c.b16 %v4689, %v4688
        %v4763 = vpack.c.b16 %v4691, %v4690
        %v4764 = vpack.c.b16 %v4693, %v4692
        %v4765 = vpack.c.b16 %v4695, %v4694
        %v4766 = vpack.c.b16 %v4697, %v4696
        %v4767 = vpack.c.b16 %v4699, %v4698
        %v4768 = vpack.c.b16 %v4701, %v4700
        %v4769 = vpack.c.b16 %v4703, %v4702
        %v4770 = vpack.c.b16 %v4705, %v4704
        %v4771 = vpack.c.b16 %v4707, %v4706
        %v4772 = vpack.c.b16 %v4709, %v4708
        %v4773 = vpack.c.b16 %v4711, %v4710
        %v4774 = vpack.c.b16 %v4713, %v4712
        %v4775 = vpack.c.b16 %v4715, %v4714
        %v4776 = vpack.c.b16 %v4717, %v4716
        %v4777 = vpack.c.b16 %v4719, %v4718
        %v4778 = vpack.c.b16 %v4721, %v4720
        %v4779 = vpack.c.b16 %v4723, %v4722
        %v4780 = vpack.c.b16 %v4725, %v4724
        %v4781 = vpack.c.b16 %v4727, %v4726
        %v4782 = vpack.c.b16 %v4729, %v4728
        %v4783 = vpack.c.b16 %v4731, %v4730
        %v4784 = vpack.c.b16 %v4733, %v4732
        %v4785 = vpack.c.b16 %v4735, %v4734
        %v4786 = vpack.c.b16 %v4737, %v4736
        %v4787 = vpack.c.b16 %v4739, %v4738
        %v4788 = vpack.c.b16 %v4741, %v4740
        %v4789 = vpack.c.b16 %v4743, %v4742
        %v4790 = vpack.c.b16 %v4745, %v4744
        %v4791 = vpack.c.b16 %v4747, %v4746
        %v4792 = vpack.c.b16 %v4749, %v4748
        %v4793 = vpack.c.b16 %v4751, %v4750
        %v4794 = vpack.c.b16 %v4753, %v4752
        %v4795 = vpack.c.b16 %v4755, %v4754
        %4836 = vmatpush.bf16.msra.mxu0 %v4763
        %4837 = vmatpush.bf16.msra.mxu0 %v4762
        %4838 = vmatpush.bf16.msra.mxu0 %v4761
        %4839 = vmatpush.bf16.msra.mxu0 %v4760
        %4840 = vmatpush.bf16.msra.mxu0 %v4759
        %4841 = vmatpush.bf16.msra.mxu0 %v4758
        %4842 = vmatpush.bf16.msra.mxu0 %v4757
        %4843 = vmatpush.bf16.msra.mxu0 %v4756
        %4844 = vmatmul.bf16.gmra.mxu0 %v4586
        %v4845 = vpop.f32.mrf.mxu0
        %v4846 = vadd.f32 0.0, %v4845
        %v4847 = vpop.f32.mrf.mxu0
        %4848 = vdwg.mxu0
        %4849 = vmatpush.bf16.msra.mxu0 %v4771
        %4850 = vmatpush.bf16.msra.mxu0 %v4770
        %4851 = vmatpush.bf16.msra.mxu0 %v4769
        %4852 = vmatpush.bf16.msra.mxu0 %v4768
        %4853 = vmatpush.bf16.msra.mxu0 %v4767
        %4854 = vmatpush.bf16.msra.mxu0 %v4766
        %4855 = vmatpush.bf16.msra.mxu0 %v4765
        %4856 = vmatpush.bf16.msra.mxu0 %v4764
        %4857 = vmatmul.bf16.gmra.mxu0 %v4587
        %v4858 = vpop.f32.mrf.mxu0
        %v4859 = vadd.f32 %v4846, %v4858
        %v4860 = vpop.f32.mrf.mxu0
        %4861 = vdwg.mxu0
        %4862 = vmatpush.bf16.msra.mxu0 %v4779
        %4863 = vmatpush.bf16.msra.mxu0 %v4778
        %4864 = vmatpush.bf16.msra.mxu0 %v4777
        %4865 = vmatpush.bf16.msra.mxu0 %v4776
        %4866 = vmatpush.bf16.msra.mxu0 %v4775
        %4867 = vmatpush.bf16.msra.mxu0 %v4774
        %4868 = vmatpush.bf16.msra.mxu0 %v4773
        %4869 = vmatpush.bf16.msra.mxu0 %v4772
        %4870 = vmatmul.bf16.gmra.mxu0 %v4588
        %v4871 = vpop.f32.mrf.mxu0
        %v4872 = vadd.f32 %v4859, %v4871
        %v4873 = vpop.f32.mrf.mxu0
        %4874 = vdwg.mxu0
        %4875 = vmatpush.bf16.msra.mxu0 %v4787
        %4876 = vmatpush.bf16.msra.mxu0 %v4786
        %4877 = vmatpush.bf16.msra.mxu0 %v4785
        %4878 = vmatpush.bf16.msra.mxu0 %v4784
        %4879 = vmatpush.bf16.msra.mxu0 %v4783
        %4880 = vmatpush.bf16.msra.mxu0 %v4782
        %4881 = vmatpush.bf16.msra.mxu0 %v4781
        %4882 = vmatpush.bf16.msra.mxu0 %v4780
        %4883 = vmatmul.bf16.gmra.mxu0 %v4589
        %v4884 = vpop.f32.mrf.mxu0
        %v4885 = vadd.f32 %v4872, %v4884
        %v4886 = vpop.f32.mrf.mxu0
        %4887 = vdwg.mxu0
        %4888 = vmatpush.bf16.msra.mxu0 %v4795
        %4889 = vmatpush.bf16.msra.mxu0 %v4794
        %4890 = vmatpush.bf16.msra.mxu0 %v4793
        %4891 = vmatpush.bf16.msra.mxu0 %v4792
        %4892 = vmatpush.bf16.msra.mxu0 %v4791
        %4893 = vmatpush.bf16.msra.mxu0 %v4790
        %4894 = vmatpush.bf16.msra.mxu0 %v4789
        %4895 = vmatpush.bf16.msra.mxu0 %v4788
        %4896 = vmatmul.bf16.gmra.mxu0 %v4590
        %v4897 = vpop.f32.mrf.mxu0
        %v4898 = vadd.f32 %v4885, %v4897
        %v4899 = vpop.f32.mrf.mxu0
        %4900 = vdwg.mxu0
        %v4901 = vadd.f32 %v4434, %v4898
        %v4902 = vld [vmem:[%s6] sm:$0x1]
        %v4904 = vperm.slane %v4902, 0
        %v4906 = vadd.f32 %v4901, %v4904
        %v4908 = vrot.slane %v4906, 1
        %vm4910 = vcmask 253952
        %4911 = vst.msk [vmem:[%s272] sm:$0x1] %vm4910, %v4906
        %4912 = vst.msk [vmem:[%s272 + $0x1] sm:$0x1] %vm4910, %v4908
        %s4913 = sand.u32 %s181, 1
        %s4914 = scalar_lea.sflag [#allocation6], %s4913
        %s4915 = sand.u32 %s181, 1
        %s4916 = smul.addr %s4915, 2
        %s4917 = scalar_lea.vmem [#allocation5], %s4916
        // Predicated region
        $region56: #{tpu_custom_call.1} parent=47 // pred_check
          %p4918 = pneg %p191
        $region57: #{tpu_custom_call.1} parent=47 // pred_check_branch
          %4920 = sbr.rel (%p4918) target = $region59
        $region58: #{tpu_custom_call.1} parent=47 // pred_region
          %s4921 = smul.u32 2, %s21
          %4923 = vsyncadd %s4914, 0
          %s4924 = scalar_lea.hbm %s7, %s4921
          %s4925 = sshll.u32 %s4917, 4
          %s4926 = int_to_ptr.vmem [resolvable:$true] %s4925
          %s4927 = sshll.u32 %s4924, 4
          %s4928 = int_to_ptr.hbm [resolvable:$true] %s4927
          %4933 = dma.vmem_to_hbm [thread:$0]  %s4926, 32, %s4928, %s4914, 16, 16, 1
        $region59: #{tpu_custom_call.1} parent=47 // pred_fallthru
          _
      $region48: #{tpu_custom_call.1} parent=5 // pred_fallthru
        _
      %p4934 = scmp.le.s32.totalorder 2, %s16
      // Predicated region
      $region60: #{tpu_custom_call.1} parent=5 // pred_check
        %p4935 = pneg %p4934
      $region61: #{tpu_custom_call.1} parent=5 // pred_check_branch
        %4937 = sbr.rel (%p4935) target = $region63
      $region62: #{tpu_custom_call.1} parent=5 // pred_region
        %s4938 = ssub.s32 %s16, 2
        // Predicated region
        $region64: #{tpu_custom_call.1} parent=62 // pred_check
          %p4939 = pneg %p197
        $region65: #{tpu_custom_call.1} parent=62 // pred_check_branch
          %4941 = sbr.rel (%p4939) target = $region67
        $region66: #{tpu_custom_call.1} parent=62 // pred_region
          %s4942 = sand.u32 %s182, 1
          %s4943 = scalar_lea.sflag [#allocation6], %s4942
          %s4944 = sand.u32 %s182, 1
          %s4945 = smul.addr %s4944, 2
          %s4946 = scalar_lea.vmem [#allocation5], %s4945
          %4948 = dma.done %s4943, 32
        $region67: #{tpu_custom_call.1} parent=62 // pred_fallthru
          _
      $region63: #{tpu_custom_call.1} parent=5 // pred_fallthru
        _
    $region6: #{tpu_custom_call.1} parent=1 // loop_footer
      %s20 = sadd.s32 1, %s16
    $region7: #{tpu_custom_call.1} parent=1 // loop_footer_branch
      %15 = sbr.rel target = $region3
    $region8: #{tpu_custom_call.1} parent=1 // loop_exit
      _
    %4949 = vsyncpa [#allocation6], 1
    %s4950 = scalar_lea.sflag [#allocation6], 1
    %4951 = vsyncpa %s4950, 1

</llo_original>
